<compile_context>
chip_gen: v6e
topology: v6e:2x2x1
jax: 0.10.0
libtpu: 0.0.40
codegen_flags: <defaults>
</compile_context>

<pallas_src>
import functools
import math

import jax
import jax.numpy as jnp
from jax import lax
from jax.experimental import pallas as pl
from jax.experimental.pallas import tpu as pltpu


# ------------------------------ fused kernel --------------------------------
def text_encoder_kernel(x_ref, mask_ref, invlen_ref, ybow_ref,
                        wi6_ref, bi6_ref, wh6_ref, bhn6_ref,
                        *rest, kernel_sizes, hidden, text_norm):
    """Fused bi-GRU + temporal mean + conv/relu/max-pool + Linear/ReLU + l2norm.

    Per batch tile (Bt rows, sublane-aligned):
      x_ref:      (T, Bt, D)   embedded words (time-major)
      mask_ref:   (T, Bt, 1)   1.0 where t < length
      invlen_ref: (Bt, 1)      1 / length
      ybow_ref:   (Bt, M)      precomputed bow @ W_map_bow (done in XLA)
      wi6_ref:    (D, 6H)      input gate weights [fwd r,z,n | bwd r,z,n]
      bi6_ref:    (1, 6H)      folded biases (b_ih+b_hh for r,z; b_ih for n)
      wh6_ref:    (2H, 6H)     block-diagonal recurrent weights (fwd / bwd)
      bhn6_ref:   (1, 6H)      recurrent n-gate bias at n columns, 0 at r/z
      rest:       per-ws conv (w:(ws,2H,K), b:(1,K)), w_map_gru (2H,M),
                  w_map_conv (K,M) per ws, b_map (1,M), out_ref (Bt,M),
                  scratch gi (T,Bt,6H), scratch gp (T+2Pmax,Bt,2H)
    """
    H = hidden
    H2 = 2 * H
    n_ws = len(kernel_sizes)
    T, Bt, D = x_ref.shape
    Pmax = max(kernel_sizes) - 1

    conv_w = [rest[2 * i] for i in range(n_ws)]
    conv_b = [rest[2 * i + 1] for i in range(n_ws)]
    p = 2 * n_ws
    wmap_gru_ref = rest[p]
    wmap_conv = rest[p + 1:p + 1 + n_ws]
    bmap_ref = rest[p + 1 + n_ws]
    out_ref = rest[p + 2 + n_ws]
    gi_ref = rest[p + 3 + n_ws]
    gp_ref = rest[p + 4 + n_ws]

    # ---- input projections hoisted out of the recurrence: one (T*Bt,D)@(D,6H)
    # matmul covers all timesteps and both directions; staged in VMEM scratch
    # and re-loaded per step (bounds vreg live ranges for larger T). ----
    xs = x_ref[...].reshape(T * Bt, D)
    gi = jnp.dot(xs, wi6_ref[...], preferred_element_type=jnp.float32) + bi6_ref[...]
    gi_ref[...] = gi.reshape(T, Bt, 6 * H)

    # zero ONLY the conv padding row-groups (interior rows are overwritten below)
    if Pmax > 0:
        gp_ref[0:Pmax, :, :] = jnp.zeros((Pmax, Bt, H2), jnp.float32)
        gp_ref[Pmax + T:Pmax + T + Pmax, :, :] = jnp.zeros((Pmax, Bt, H2), jnp.float32)

    wh6 = wh6_ref[...]
    bhn6 = bhn6_ref[...]

    hf = jnp.zeros((Bt, H), jnp.float32)
    hb = jnp.zeros((Bt, H), jnp.float32)

    # T is small and static -> fully unrolled recurrence with static indices.
    # TODO(synk): switch to lax.fori_loop(..., unroll=k) once T grows beyond ~16.
    for s in range(T):
        tf, tb = s, T - 1 - s
        mf = mask_ref[tf]                       # (Bt, 1)
        mb = mask_ref[tb]
        gif = gi_ref[tf]                        # (Bt, 6H): fwd gates in cols 0:3H
        gib = gi_ref[tb]                        # bwd gates in cols 3H:6H
        # ONE fused recurrent matmul per step for both directions (block-diag
        # weight => cols 0:3H depend only on hf, cols 3H:6H only on hb).
        h2 = jnp.concatenate([hf, hb], axis=1)  # (Bt, 2H)
        gh = jnp.dot(h2, wh6, preferred_element_type=jnp.float32) + bhn6
        rf = jax.nn.sigmoid(gif[:, 0:H] + gh[:, 0:H])
        zf = jax.nn.sigmoid(gif[:, H:2 * H] + gh[:, H:2 * H])
        nf = jnp.tanh(gif[:, 2 * H:3 * H] + rf * gh[:, 2 * H:3 * H])
        rb = jax.nn.sigmoid(gib[:, 3 * H:4 * H] + gh[:, 3 * H:4 * H])
        zb = jax.nn.sigmoid(gib[:, 4 * H:5 * H] + gh[:, 4 * H:5 * H])
        nb = jnp.tanh(gib[:, 5 * H:6 * H] + rb * gh[:, 5 * H:6 * H])
        hf_new = nf + zf * (hf - nf)            # == (1-z)*n + z*h
        hb_new = nb + zb * (hb - nb)
        hf = hf + mf * (hf_new - hf)            # length-masked state update
        hb = hb + mb * (hb_new - hb)
        of = mf * hf                            # zero at padded timesteps
        ob = mb * hb
        gp_ref[Pmax + tf, :, 0:H] = of          # merged [fwd | bwd] output slab
        gp_ref[Pmax + tb, :, H:H2] = ob

    gp = gp_ref[...]                            # (T+2Pmax, Bt, 2H)

    # masked temporal mean of the merged [fwd|bwd] GRU outputs
    mean2 = jnp.sum(gp[Pmax:Pmax + T], axis=0) * invlen_ref[...]        # (Bt, 2H)

    # mapping accumulated piecewise (== Linear over [bow|gru|conv] concat);
    # the bow term was computed outside the kernel.
    y = ybow_ref[...] + jnp.dot(mean2, wmap_gru_ref[...],
                                preferred_element_type=jnp.float32)

    # conv + ReLU + global max-pool: one (Tout*Bt, 2H)@(2H, K) matmul per tap
    for i, ws in enumerate(kernel_sizes):
        wc = conv_w[i][...]                     # (ws, 2H, K)
        bc = conv_b[i][...]                     # (1, K)
        K = wc.shape[2]
        Tout = T + ws - 1                       # PyTorch output length (pad=ws-1)
        d = Pmax - (ws - 1)                     # skip extra shared left padding
        acc = jnp.zeros((Tout * Bt, K), jnp.float32)
        for w in range(ws):                     # static unroll over taps
            win = gp[d + w:d + w + Tout].reshape(Tout * Bt, H2)
            acc = acc + jnp.dot(win, wc[w], preferred_element_type=jnp.float32)
        acc = jnp.maximum(acc + bc, 0.0).reshape(Tout, Bt, K)
        pooled = jnp.max(acc, axis=0)           # (Bt, K) global max-pool
        y = y + jnp.dot(pooled, wmap_conv[i][...],
                        preferred_element_type=jnp.float32)

    y = jnp.maximum(y + bmap_ref[...], 0.0)     # Linear bias + ReLU
    if text_norm:
        ssq = jnp.sum(y * y, axis=1, keepdims=True)
        y = y * lax.rsqrt(ssq + 1e-12)          # EUP rsqrt; eps avoids NaN
    out_ref[...] = y


# --------------------------------- wrapper ----------------------------------
def text_encoder_forward(params, cap_wids, cap_bows, lengths, cap_mask):
    del cap_mask  # not used by the reference forward either
    B, T = cap_wids.shape
    H = params["hidden"]
    kernel_sizes = params["kernel_sizes"]
    Pmax = max(kernel_sizes) - 1
    M = params["b_map"].shape[1]
    D = params["embed"].shape[1]

    # batch tile: sublane-aligned row count (8 for f32); the grid splits batch
    B_tile = min(64, 8 * ((B + 7) // 8))
    B_pad = ((B + B_tile - 1) // B_tile) * B_tile

    # pad ids/lengths along batch; pad rows get length 0 (fully masked out)
    wids_p = jnp.zeros((B_pad, T), cap_wids.dtype).at[:B].set(cap_wids)
    len_p = jnp.zeros((B_pad,), jnp.int32).at[:B].set(lengths.astype(jnp.int32))

    # embedding gathered directly in time-major order (no transpose/copy pass)
    x_tm = jnp.take(params["embed"], wids_p.T.reshape(-1), axis=0)
    x_tm = x_tm.reshape(T, B_pad, D).astype(jnp.float32)

    mask = (jnp.arange(T)[:, None] < len_p[None, :]).astype(jnp.float32)[..., None]
    invlen = (1.0 / jnp.maximum(len_p, 1).astype(jnp.float32))[:, None]   # (B_pad, 1)

    # bag-of-words projection stays in XLA: the (V, M) weight never enters VMEM
    y_bow = jnp.zeros((B_pad, M), jnp.float32).at[:B].set(
        jnp.dot(cap_bows.astype(jnp.float32), params["w_map_bow"],
                preferred_element_type=jnp.float32))

    conv_args, conv_specs = [], []
    for wc, bc in params["convs"]:
        conv_args.extend([wc, bc])
        conv_specs.append(pl.BlockSpec(wc.shape, lambda b: (0, 0, 0)))
        conv_specs.append(pl.BlockSpec(bc.shape, lambda b: (0, 0)))

    res2 = lambda shape: pl.BlockSpec(shape, lambda b: (0, 0))  # VMEM-resident weight
    in_specs = [
        pl.BlockSpec((T, B_tile, D), lambda b: (0, b, 0)),      # x (batch-tiled)
        pl.BlockSpec((T, B_tile, 1), lambda b: (0, b, 0)),      # mask
        pl.BlockSpec((B_tile, 1), lambda b: (b, 0)),            # 1/len
        pl.BlockSpec((B_tile, M), lambda b: (b, 0)),            # bow projection
        res2(params["w_ih6"].shape),
        res2(params["b_i6"].shape),
        res2(params["w_hh6"].shape),
        res2(params["b_hn6"].shape),
        *conv_specs,
        res2(params["w_map_gru"].shape),
        *[res2(w.shape) for w in params["w_map_conv"]],
        res2(params["b_map"].shape),
    ]
    out_specs = pl.BlockSpec((B_tile, M), lambda b: (b, 0))

    kern = functools.partial(text_encoder_kernel,
                             kernel_sizes=kernel_sizes, hidden=H,
                             text_norm=params["text_norm"])
    # TODO(synk): on v6e/v7x cast MXU operands (x tile, gi/gp scratches, weight
    # blocks) to bf16 with f32 accumulators/state and re-derive B_tile for the
    # 64 MiB v7x VMEM budget; kept f32 here to match the reference numerics.
    out = pl.pallas_call(
        kern,
        out_shape=jax.ShapeDtypeStruct((B_pad, M), jnp.float32),
        grid_spec=pltpu.PrefetchScalarGridSpec(
            num_scalar_prefetch=0,
            grid=(B_pad // B_tile,),
            in_specs=in_specs,
            out_specs=out_specs,
            scratch_shapes=[
                pltpu.VMEM((T, B_tile, 6 * H), jnp.float32),              # gi
                pltpu.VMEM((T + 2 * Pmax, B_tile, 2 * H), jnp.float32),   # gp
            ]),
        compiler_params=pltpu.CompilerParams(
            dimension_semantics=("parallel",)),
    )(x_tm, mask, invlen, y_bow,
      params["w_ih6"], params["b_i6"], params["w_hh6"], params["b_hn6"],
      *conv_args,
      params["w_map_gru"], *params["w_map_conv"], params["b_map"])
    return out[:B]


# ----------------------------- deterministic init ---------------------------
def init_params(key, vocab, word_dim, text_rnn_size, text_kernel_num,
                text_kernel_sizes, map_in, map_out, text_norm):
    ks = jax.random.split(key, 12)
    H, D = text_rnn_size, word_dim
    std = 1.0 / math.sqrt(H)

    def u(k, shape, lo, hi):
        return jax.random.uniform(k, shape, jnp.float32, lo, hi)

    embed = u(ks[0], (vocab, D), -0.1, 0.1)                 # nn.Embedding uniform(-0.1, 0.1)
    # nn.GRU weights, gates stacked [r, z, n] (PyTorch order), stored transposed
    w_ih_f = u(ks[1], (3, D, H), -std, std)
    w_hh_f = u(ks[2], (3, H, H), -std, std)
    b_ih_f = u(ks[3], (3, 1, H), -std, std)
    b_hh_f = u(ks[4], (3, 1, H), -std, std)
    w_ih_b = u(ks[5], (3, D, H), -std, std)
    w_hh_b = u(ks[6], (3, H, H), -std, std)
    b_ih_b = u(ks[7], (3, 1, H), -std, std)
    b_hh_b = u(ks[8], (3, 1, H), -std, std)

    zHH = jnp.zeros((H, 3 * H), jnp.float32)
    zb = jnp.zeros((1, H), jnp.float32)
    wh_f3 = jnp.concatenate([w_hh_f[0], w_hh_f[1], w_hh_f[2]], axis=1)   # (H, 3H)
    wh_b3 = jnp.concatenate([w_hh_b[0], w_hh_b[1], w_hh_b[2]], axis=1)

    params = {
        "embed": embed,
        "hidden": H,
        "kernel_sizes": tuple(text_kernel_sizes),
        "text_norm": text_norm,
        # fused layouts: (D, 6H) = [fwd r,z,n | bwd r,z,n]; r/z biases pre-summed
        # (b_ih + b_hh) into the hoisted projection, only the n gate keeps its
        # recurrent bias separate (it sits inside r * (W_hn h + b_hn)).
        "w_ih6": jnp.concatenate([w_ih_f[0], w_ih_f[1], w_ih_f[2],
                                  w_ih_b[0], w_ih_b[1], w_ih_b[2]], axis=1),
        "b_i6": jnp.concatenate([b_ih_f[0] + b_hh_f[0], b_ih_f[1] + b_hh_f[1], b_ih_f[2],
                                 b_ih_b[0] + b_hh_b[0], b_ih_b[1] + b_hh_b[1], b_ih_b[2]],
                                axis=1),
        # block-diagonal recurrent weight: one (B,2H)@(2H,6H) matmul per step
        "w_hh6": jnp.concatenate(
            [jnp.concatenate([wh_f3, zHH], axis=1),
             jnp.concatenate([zHH, wh_b3], axis=1)], axis=0),
        # recurrent n-gate bias placed at the n columns (zeros at r/z columns)
        "b_hn6": jnp.concatenate([zb, zb, b_hh_f[2], zb, zb, b_hh_b[2]], axis=1),
    }

    # conv weights: PyTorch (K, 1, ws, 2H) stored here as (ws, 2H, K)
    D2 = 2 * H
    convs = []
    ck = jax.random.split(ks[9], 2 * len(text_kernel_sizes))
    for i, ws in enumerate(text_kernel_sizes):
        bound = 1.0 / math.sqrt(ws * D2)
        convs.append((u(ck[2 * i], (ws, D2, text_kernel_num), -bound, bound),
                      u(ck[2 * i + 1], (1, text_kernel_num), -bound, bound)))
    params["convs"] = convs

    # MFC linear (xavier_init_fc: uniform +-sqrt(6)/sqrt(in+out), bias 0),
    # pre-split along input features so the kernel never concatenates
    # [bow|gru|conv]; the bow slice is used by XLA outside the kernel.
    r = math.sqrt(6.0) / math.sqrt(map_in + map_out)
    w_map = u(ks[10], (map_in, map_out), -r, r)
    V, K = vocab, text_kernel_num
    params["w_map_bow"] = w_map[:V]
    params["w_map_gru"] = w_map[V:V + 2 * H]                 # fused [fwd | bwd] rows
    params["w_map_conv"] = tuple(
        w_map[V + 2 * H + i * K: V + 2 * H + (i + 1) * K]
        for i in range(len(text_kernel_sizes)))
    params["b_map"] = jnp.zeros((1, map_out), jnp.float32)
    return params


if __name__ == "__main__":
    # small opt-like configuration
    B, T = 4, 8
    vocab_size = 50
    word_dim = 32
    text_rnn_size = 16            # rnn_output_size = 32
    text_kernel_num = 8
    text_kernel_sizes = (2, 3)
    map_out = 64
    # concate == 'full': bow + mean-GRU + conv features
    map_in = vocab_size + 2 * text_rnn_size + text_kernel_num * len(text_kernel_sizes)

    key = jax.random.PRNGKey(0)
    kp, kw, kb = jax.random.split(key, 3)
    params = init_params(kp, vocab_size, word_dim, text_rnn_size, text_kernel_num,
                         text_kernel_sizes, map_in, map_out, text_norm=True)

    cap_wids = jax.random.randint(kw, (B, T), 0, vocab_size, dtype=jnp.int32)
    cap_bows = jax.random.uniform(kb, (B, vocab_size), jnp.float32)
    lengths = jnp.array([8, 7, 5, 3], dtype=jnp.int32)   # descending (pack_padded_sequence)
    cap_mask = (jnp.arange(T)[None, :] < lengths[:, None]).astype(jnp.float32)

    feats = text_encoder_forward(params, cap_wids, cap_bows, lengths, cap_mask)
    feats = jax.block_until_ready(feats)
    assert feats.shape == (B, map_out), feats.shape
    assert bool(jnp.all(jnp.isfinite(feats)))
    print("KERNEL_OK")
</pallas_src>

<mosaic_0001>
module attributes {stable_mosaic.version = 11 : i64} {
  func.func @text_encoder_kernel(%arg0: i32, %arg1: memref<8x8x32xf32, #tpu.memory_space<vmem>>, %arg2: memref<8x8x1xf32, #tpu.memory_space<vmem>>, %arg3: memref<8x1xf32, #tpu.memory_space<vmem>>, %arg4: memref<8x64xf32, #tpu.memory_space<vmem>>, %arg5: memref<32x96xf32, #tpu.memory_space<vmem>>, %arg6: memref<1x96xf32, #tpu.memory_space<vmem>>, %arg7: memref<32x96xf32, #tpu.memory_space<vmem>>, %arg8: memref<1x96xf32, #tpu.memory_space<vmem>>, %arg9: memref<2x32x8xf32, #tpu.memory_space<vmem>>, %arg10: memref<1x8xf32, #tpu.memory_space<vmem>>, %arg11: memref<3x32x8xf32, #tpu.memory_space<vmem>>, %arg12: memref<1x8xf32, #tpu.memory_space<vmem>>, %arg13: memref<32x64xf32, #tpu.memory_space<vmem>>, %arg14: memref<8x64xf32, #tpu.memory_space<vmem>>, %arg15: memref<8x64xf32, #tpu.memory_space<vmem>>, %arg16: memref<1x64xf32, #tpu.memory_space<vmem>>, %arg17: memref<8x64xf32, #tpu.memory_space<vmem>>, %arg18: memref<8x8x96xf32, #tpu.memory_space<vmem>>, %arg19: memref<12x8x32xf32, #tpu.memory_space<vmem>>) attributes {dimension_semantics = [#tpu.dimension_semantics<parallel>], iteration_bounds = array<i64: 1>, scalar_prefetch = 0 : i64, scratch_operands = 2 : i64, tpu.core_type = #tpu.core_type<tc>, window_params = [{transform_indices = @transform_0, window_bounds = array<i64: 8, 8, 32>}, {transform_indices = @transform_1, window_bounds = array<i64: 8, 8, 1>}, {transform_indices = @transform_2, window_bounds = array<i64: 8, 1>}, {transform_indices = @transform_3, window_bounds = array<i64: 8, 64>}, {pipeline_mode = #tpu.pipeline_mode<synchronous>, transform_indices = @transform_4, window_bounds = array<i64: 32, 96>}, {pipeline_mode = #tpu.pipeline_mode<synchronous>, transform_indices = @transform_5, window_bounds = array<i64: 1, 96>}, {pipeline_mode = #tpu.pipeline_mode<synchronous>, transform_indices = @transform_6, window_bounds = array<i64: 32, 96>}, {pipeline_mode = #tpu.pipeline_mode<synchronous>, transform_indices = @transform_7, window_bounds = array<i64: 1, 96>}, {pipeline_mode = #tpu.pipeline_mode<synchronous>, transform_indices = @transform_8, window_bounds = array<i64: 2, 32, 8>}, {pipeline_mode = #tpu.pipeline_mode<synchronous>, transform_indices = @transform_9, window_bounds = array<i64: 1, 8>}, {pipeline_mode = #tpu.pipeline_mode<synchronous>, transform_indices = @transform_10, window_bounds = array<i64: 3, 32, 8>}, {pipeline_mode = #tpu.pipeline_mode<synchronous>, transform_indices = @transform_11, window_bounds = array<i64: 1, 8>}, {pipeline_mode = #tpu.pipeline_mode<synchronous>, transform_indices = @transform_12, window_bounds = array<i64: 32, 64>}, {pipeline_mode = #tpu.pipeline_mode<synchronous>, transform_indices = @transform_13, window_bounds = array<i64: 8, 64>}, {pipeline_mode = #tpu.pipeline_mode<synchronous>, transform_indices = @transform_14, window_bounds = array<i64: 8, 64>}, {pipeline_mode = #tpu.pipeline_mode<synchronous>, transform_indices = @transform_15, window_bounds = array<i64: 1, 64>}, {transform_indices = @transform_16, window_bounds = array<i64: 8, 64>}]} {
    %c0 = arith.constant 0 : index
    %c0_0 = arith.constant 0 : index
    %c0_1 = arith.constant 0 : index
    %0 = vector.load %arg1[%c0, %c0_0, %c0_1] : memref<8x8x32xf32, #tpu.memory_space<vmem>>, vector<8x8x32xf32>
    %1 = vector.shape_cast %0 : vector<8x8x32xf32> to vector<64x32xf32>
    %c0_2 = arith.constant 0 : index
    %c0_3 = arith.constant 0 : index
    %2 = vector.load %arg5[%c0_2, %c0_3] : memref<32x96xf32, #tpu.memory_space<vmem>>, vector<32x96xf32>
    %cst = arith.constant dense<0.000000e+00> : vector<64x96xf32>
    %3 = tpu.matmul %1, %2, %cst {dimension_numbers = #tpu.dot_dimension_numbers<[1], [0], [0], [1], [0, 0, 1, 1], [], []>} : vector<64x32xf32>, vector<32x96xf32>, vector<64x96xf32> -> vector<64x96xf32>
    %c0_4 = arith.constant 0 : index
    %c0_5 = arith.constant 0 : index
    %4 = vector.load %arg6[%c0_4, %c0_5] : memref<1x96xf32, #tpu.memory_space<vmem>>, vector<1x96xf32>
    %5 = vector.broadcast %4 : vector<1x96xf32> to vector<64x96xf32>
    %6 = arith.addf %3, %5 : vector<64x96xf32>
    %7 = vector.shape_cast %6 : vector<64x96xf32> to vector<8x8x96xf32>
    %c0_6 = arith.constant 0 : index
    %c0_7 = arith.constant 0 : index
    %c0_8 = arith.constant 0 : index
    %8 = vector.load %arg18[%c0_6, %c0_7, %c0_8] : memref<8x8x96xf32, #tpu.memory_space<vmem>>, vector<8x8x96xf32>
    tpu.vector_store %arg18[%c0_6, %c0_7, %c0_8], %7 {strides = array<i32>} : memref<8x8x96xf32, #tpu.memory_space<vmem>>, vector<8x8x96xf32>,
    %cst_9 = arith.constant 0.000000e+00 : f32
    %9 = vector.broadcast %cst_9 : f32 to vector<2x8x32xf32>
    %c0_10 = arith.constant 0 : index
    %c0_11 = arith.constant 0 : index
    %c0_12 = arith.constant 0 : index
    %10 = vector.load %arg19[%c0_10, %c0_11, %c0_12] : memref<12x8x32xf32, #tpu.memory_space<vmem>>, vector<2x8x32xf32>
    tpu.vector_store %arg19[%c0_10, %c0_11, %c0_12], %9 {strides = array<i32>} : memref<12x8x32xf32, #tpu.memory_space<vmem>>, vector<2x8x32xf32>,
    %cst_13 = arith.constant 0.000000e+00 : f32
    %11 = vector.broadcast %cst_13 : f32 to vector<2x8x32xf32>
    %c10 = arith.constant 10 : index
    %c0_14 = arith.constant 0 : index
    %c0_15 = arith.constant 0 : index
    %12 = vector.load %arg19[%c10, %c0_14, %c0_15] : memref<12x8x32xf32, #tpu.memory_space<vmem>>, vector<2x8x32xf32>
    tpu.vector_store %arg19[%c10, %c0_14, %c0_15], %11 {strides = array<i32>} : memref<12x8x32xf32, #tpu.memory_space<vmem>>, vector<2x8x32xf32>,
    %c0_16 = arith.constant 0 : index
    %c0_17 = arith.constant 0 : index
    %13 = vector.load %arg7[%c0_16, %c0_17] : memref<32x96xf32, #tpu.memory_space<vmem>>, vector<32x96xf32>
    %c0_18 = arith.constant 0 : index
    %c0_19 = arith.constant 0 : index
    %14 = vector.load %arg8[%c0_18, %c0_19] : memref<1x96xf32, #tpu.memory_space<vmem>>, vector<1x96xf32>
    %cst_20 = arith.constant 0.000000e+00 : f32
    %15 = vector.broadcast %cst_20 : f32 to vector<8x16xf32>
    %cst_21 = arith.constant 0.000000e+00 : f32
    %16 = vector.broadcast %cst_21 : f32 to vector<8x16xf32>
    %c0_22 = arith.constant 0 : index
    %c0_23 = arith.constant 0 : index
    %c0_24 = arith.constant 0 : index
    %17 = vector.load %arg2[%c0_22, %c0_23, %c0_24] : memref<8x8x1xf32, #tpu.memory_space<vmem>>, vector<1x8x1xf32>
    %18 = vector.shape_cast %17 : vector<1x8x1xf32> to vector<8x1xf32>
    %c7 = arith.constant 7 : index
    %c0_25 = arith.constant 0 : index
    %c0_26 = arith.constant 0 : index
    %19 = vector.load %arg2[%c7, %c0_25, %c0_26] : memref<8x8x1xf32, #tpu.memory_space<vmem>>, vector<1x8x1xf32>
    %20 = vector.shape_cast %19 : vector<1x8x1xf32> to vector<8x1xf32>
    %c0_27 = arith.constant 0 : index
    %c0_28 = arith.constant 0 : index
    %c0_29 = arith.constant 0 : index
    %21 = vector.load %arg18[%c0_27, %c0_28, %c0_29] : memref<8x8x96xf32, #tpu.memory_space<vmem>>, vector<1x8x96xf32>
    %22 = vector.shape_cast %21 : vector<1x8x96xf32> to vector<8x96xf32>
    %c7_30 = arith.constant 7 : index
    %c0_31 = arith.constant 0 : index
    %c0_32 = arith.constant 0 : index
    %23 = vector.load %arg18[%c7_30, %c0_31, %c0_32] : memref<8x8x96xf32, #tpu.memory_space<vmem>>, vector<1x8x96xf32>
    %24 = vector.shape_cast %23 : vector<1x8x96xf32> to vector<8x96xf32>
    %25 = tpu.concatenate %15, %16 in 1 : vector<8x16xf32>, vector<8x16xf32> -> vector<8x32xf32>
    %cst_33 = arith.constant dense<0.000000e+00> : vector<8x96xf32>
    %26 = tpu.matmul %25, %13, %cst_33 {dimension_numbers = #tpu.dot_dimension_numbers<[1], [0], [0], [1], [0, 0, 1, 1], [], []>} : vector<8x32xf32>, vector<32x96xf32>, vector<8x96xf32> -> vector<8x96xf32>
    %27 = vector.broadcast %14 : vector<1x96xf32> to vector<8x96xf32>
    %28 = arith.addf %26, %27 : vector<8x96xf32>
    %29 = vector.extract_strided_slice %22 {offsets = [0, 0], sizes = [8, 16], strides = [1, 1]} : vector<8x96xf32> to vector<8x16xf32>
    %30 = vector.extract_strided_slice %28 {offsets = [0, 0], sizes = [8, 16], strides = [1, 1]} : vector<8x96xf32> to vector<8x16xf32>
    %31 = arith.addf %29, %30 : vector<8x16xf32>
    %32 = arith.negf %31 : vector<8x16xf32>
    %33 = math.exp %32 : vector<8x16xf32>
    %cst_34 = arith.constant 1.000000e+00 : f32
    %34 = vector.broadcast %cst_34 : f32 to vector<8x16xf32>
    %35 = arith.addf %34, %33 : vector<8x16xf32>
    %36 = arith.divf %34, %35 : vector<8x16xf32>
    %37 = vector.extract_strided_slice %22 {offsets = [0, 16], sizes = [8, 16], strides = [1, 1]} : vector<8x96xf32> to vector<8x16xf32>
    %38 = vector.extract_strided_slice %28 {offsets = [0, 16], sizes = [8, 16], strides = [1, 1]} : vector<8x96xf32> to vector<8x16xf32>
    %39 = arith.addf %37, %38 : vector<8x16xf32>
    %40 = arith.negf %39 : vector<8x16xf32>
    %41 = math.exp %40 : vector<8x16xf32>
    %cst_35 = arith.constant 1.000000e+00 : f32
    %42 = vector.broadcast %cst_35 : f32 to vector<8x16xf32>
    %43 = arith.addf %42, %41 : vector<8x16xf32>
    %44 = arith.divf %42, %43 : vector<8x16xf32>
    %45 = vector.extract_strided_slice %22 {offsets = [0, 32], sizes = [8, 16], strides = [1, 1]} : vector<8x96xf32> to vector<8x16xf32>
    %46 = vector.extract_strided_slice %28 {offsets = [0, 32], sizes = [8, 16], strides = [1, 1]} : vector<8x96xf32> to vector<8x16xf32>
    %47 = arith.mulf %36, %46 : vector<8x16xf32>
    %48 = arith.addf %45, %47 : vector<8x16xf32>
    %49 = math.tanh %48 : vector<8x16xf32>
    %50 = vector.extract_strided_slice %24 {offsets = [0, 48], sizes = [8, 16], strides = [1, 1]} : vector<8x96xf32> to vector<8x16xf32>
    %51 = vector.extract_strided_slice %28 {offsets = [0, 48], sizes = [8, 16], strides = [1, 1]} : vector<8x96xf32> to vector<8x16xf32>
    %52 = arith.addf %50, %51 : vector<8x16xf32>
    %53 = arith.negf %52 : vector<8x16xf32>
    %54 = math.exp %53 : vector<8x16xf32>
    %cst_36 = arith.constant 1.000000e+00 : f32
    %55 = vector.broadcast %cst_36 : f32 to vector<8x16xf32>
    %56 = arith.addf %55, %54 : vector<8x16xf32>
    %57 = arith.divf %55, %56 : vector<8x16xf32>
    %58 = vector.extract_strided_slice %24 {offsets = [0, 64], sizes = [8, 16], strides = [1, 1]} : vector<8x96xf32> to vector<8x16xf32>
    %59 = vector.extract_strided_slice %28 {offsets = [0, 64], sizes = [8, 16], strides = [1, 1]} : vector<8x96xf32> to vector<8x16xf32>
    %60 = arith.addf %58, %59 : vector<8x16xf32>
    %61 = arith.negf %60 : vector<8x16xf32>
    %62 = math.exp %61 : vector<8x16xf32>
    %cst_37 = arith.constant 1.000000e+00 : f32
    %63 = vector.broadcast %cst_37 : f32 to vector<8x16xf32>
    %64 = arith.addf %63, %62 : vector<8x16xf32>
    %65 = arith.divf %63, %64 : vector<8x16xf32>
    %66 = vector.extract_strided_slice %24 {offsets = [0, 80], sizes = [8, 16], strides = [1, 1]} : vector<8x96xf32> to vector<8x16xf32>
    %67 = vector.extract_strided_slice %28 {offsets = [0, 80], sizes = [8, 16], strides = [1, 1]} : vector<8x96xf32> to vector<8x16xf32>
    %68 = arith.mulf %57, %67 : vector<8x16xf32>
    %69 = arith.addf %66, %68 : vector<8x16xf32>
    %70 = math.tanh %69 : vector<8x16xf32>
    %71 = arith.subf %15, %49 : vector<8x16xf32>
    %72 = arith.mulf %44, %71 : vector<8x16xf32>
    %73 = arith.addf %49, %72 : vector<8x16xf32>
    %74 = arith.subf %16, %70 : vector<8x16xf32>
    %75 = arith.mulf %65, %74 : vector<8x16xf32>
    %76 = arith.addf %70, %75 : vector<8x16xf32>
    %77 = arith.subf %73, %15 : vector<8x16xf32>
    %78 = vector.broadcast %18 : vector<8x1xf32> to vector<8x16xf32>
    %79 = arith.mulf %78, %77 : vector<8x16xf32>
    %80 = arith.addf %15, %79 : vector<8x16xf32>
    %81 = arith.subf %76, %16 : vector<8x16xf32>
    %82 = vector.broadcast %20 : vector<8x1xf32> to vector<8x16xf32>
    %83 = arith.mulf %82, %81 : vector<8x16xf32>
    %84 = arith.addf %16, %83 : vector<8x16xf32>
    %85 = vector.broadcast %18 : vector<8x1xf32> to vector<8x16xf32>
    %86 = arith.mulf %85, %80 : vector<8x16xf32>
    %87 = vector.broadcast %20 : vector<8x1xf32> to vector<8x16xf32>
    %88 = arith.mulf %87, %84 : vector<8x16xf32>
    %c2 = arith.constant 2 : index
    %c0_38 = arith.constant 0 : index
    %c0_39 = arith.constant 0 : index
    %89 = vector.load %arg19[%c2, %c0_38, %c0_39] : memref<12x8x32xf32, #tpu.memory_space<vmem>>, vector<1x8x16xf32>
    %90 = vector.shape_cast %89 : vector<1x8x16xf32> to vector<8x16xf32>
    %91 = vector.shape_cast %86 : vector<8x16xf32> to vector<1x8x16xf32>
    tpu.vector_store %arg19[%c2, %c0_38, %c0_39], %91 {strides = array<i32>} : memref<12x8x32xf32, #tpu.memory_space<vmem>>, vector<1x8x16xf32>,
    %c9 = arith.constant 9 : index
    %c0_40 = arith.constant 0 : index
    %c16 = arith.constant 16 : index
    %92 = vector.load %arg19[%c9, %c0_40, %c16] : memref<12x8x32xf32, #tpu.memory_space<vmem>>, vector<1x8x16xf32>
    %93 = vector.shape_cast %92 : vector<1x8x16xf32> to vector<8x16xf32>
    %94 = vector.shape_cast %88 : vector<8x16xf32> to vector<1x8x16xf32>
    tpu.vector_store %arg19[%c9, %c0_40, %c16], %94 {strides = array<i32>} : memref<12x8x32xf32, #tpu.memory_space<vmem>>, vector<1x8x16xf32>,
    %c1 = arith.constant 1 : index
    %c0_41 = arith.constant 0 : index
    %c0_42 = arith.constant 0 : index
    %95 = vector.load %arg2[%c1, %c0_41, %c0_42] : memref<8x8x1xf32, #tpu.memory_space<vmem>>, vector<1x8x1xf32>
    %96 = vector.shape_cast %95 : vector<1x8x1xf32> to vector<8x1xf32>
    %c6 = arith.constant 6 : index
    %c0_43 = arith.constant 0 : index
    %c0_44 = arith.constant 0 : index
    %97 = vector.load %arg2[%c6, %c0_43, %c0_44] : memref<8x8x1xf32, #tpu.memory_space<vmem>>, vector<1x8x1xf32>
    %98 = vector.shape_cast %97 : vector<1x8x1xf32> to vector<8x1xf32>
    %c1_45 = arith.constant 1 : index
    %c0_46 = arith.constant 0 : index
    %c0_47 = arith.constant 0 : index
    %99 = vector.load %arg18[%c1_45, %c0_46, %c0_47] : memref<8x8x96xf32, #tpu.memory_space<vmem>>, vector<1x8x96xf32>
    %100 = vector.shape_cast %99 : vector<1x8x96xf32> to vector<8x96xf32>
    %c6_48 = arith.constant 6 : index
    %c0_49 = arith.constant 0 : index
    %c0_50 = arith.constant 0 : index
    %101 = vector.load %arg18[%c6_48, %c0_49, %c0_50] : memref<8x8x96xf32, #tpu.memory_space<vmem>>, vector<1x8x96xf32>
    %102 = vector.shape_cast %101 : vector<1x8x96xf32> to vector<8x96xf32>
    %103 = tpu.concatenate %80, %84 in 1 : vector<8x16xf32>, vector<8x16xf32> -> vector<8x32xf32>
    %cst_51 = arith.constant dense<0.000000e+00> : vector<8x96xf32>
    %104 = tpu.matmul %103, %13, %cst_51 {dimension_numbers = #tpu.dot_dimension_numbers<[1], [0], [0], [1], [0, 0, 1, 1], [], []>} : vector<8x32xf32>, vector<32x96xf32>, vector<8x96xf32> -> vector<8x96xf32>
    %105 = vector.broadcast %14 : vector<1x96xf32> to vector<8x96xf32>
    %106 = arith.addf %104, %105 : vector<8x96xf32>
    %107 = vector.extract_strided_slice %100 {offsets = [0, 0], sizes = [8, 16], strides = [1, 1]} : vector<8x96xf32> to vector<8x16xf32>
    %108 = vector.extract_strided_slice %106 {offsets = [0, 0], sizes = [8, 16], strides = [1, 1]} : vector<8x96xf32> to vector<8x16xf32>
    %109 = arith.addf %107, %108 : vector<8x16xf32>
    %110 = arith.negf %109 : vector<8x16xf32>
    %111 = math.exp %110 : vector<8x16xf32>
    %cst_52 = arith.constant 1.000000e+00 : f32
    %112 = vector.broadcast %cst_52 : f32 to vector<8x16xf32>
    %113 = arith.addf %112, %111 : vector<8x16xf32>
    %114 = arith.divf %112, %113 : vector<8x16xf32>
    %115 = vector.extract_strided_slice %100 {offsets = [0, 16], sizes = [8, 16], strides = [1, 1]} : vector<8x96xf32> to vector<8x16xf32>
    %116 = vector.extract_strided_slice %106 {offsets = [0, 16], sizes = [8, 16], strides = [1, 1]} : vector<8x96xf32> to vector<8x16xf32>
    %117 = arith.addf %115, %116 : vector<8x16xf32>
    %118 = arith.negf %117 : vector<8x16xf32>
    %119 = math.exp %118 : vector<8x16xf32>
    %cst_53 = arith.constant 1.000000e+00 : f32
    %120 = vector.broadcast %cst_53 : f32 to vector<8x16xf32>
    %121 = arith.addf %120, %119 : vector<8x16xf32>
    %122 = arith.divf %120, %121 : vector<8x16xf32>
    %123 = vector.extract_strided_slice %100 {offsets = [0, 32], sizes = [8, 16], strides = [1, 1]} : vector<8x96xf32> to vector<8x16xf32>
    %124 = vector.extract_strided_slice %106 {offsets = [0, 32], sizes = [8, 16], strides = [1, 1]} : vector<8x96xf32> to vector<8x16xf32>
    %125 = arith.mulf %114, %124 : vector<8x16xf32>
    %126 = arith.addf %123, %125 : vector<8x16xf32>
    %127 = math.tanh %126 : vector<8x16xf32>
    %128 = vector.extract_strided_slice %102 {offsets = [0, 48], sizes = [8, 16], strides = [1, 1]} : vector<8x96xf32> to vector<8x16xf32>
    %129 = vector.extract_strided_slice %106 {offsets = [0, 48], sizes = [8, 16], strides = [1, 1]} : vector<8x96xf32> to vector<8x16xf32>
    %130 = arith.addf %128, %129 : vector<8x16xf32>
    %131 = arith.negf %130 : vector<8x16xf32>
    %132 = math.exp %131 : vector<8x16xf32>
    %cst_54 = arith.constant 1.000000e+00 : f32
    %133 = vector.broadcast %cst_54 : f32 to vector<8x16xf32>
    %134 = arith.addf %133, %132 : vector<8x16xf32>
    %135 = arith.divf %133, %134 : vector<8x16xf32>
    %136 = vector.extract_strided_slice %102 {offsets = [0, 64], sizes = [8, 16], strides = [1, 1]} : vector<8x96xf32> to vector<8x16xf32>
    %137 = vector.extract_strided_slice %106 {offsets = [0, 64], sizes = [8, 16], strides = [1, 1]} : vector<8x96xf32> to vector<8x16xf32>
    %138 = arith.addf %136, %137 : vector<8x16xf32>
    %139 = arith.negf %138 : vector<8x16xf32>
    %140 = math.exp %139 : vector<8x16xf32>
    %cst_55 = arith.constant 1.000000e+00 : f32
    %141 = vector.broadcast %cst_55 : f32 to vector<8x16xf32>
    %142 = arith.addf %141, %140 : vector<8x16xf32>
    %143 = arith.divf %141, %142 : vector<8x16xf32>
    %144 = vector.extract_strided_slice %102 {offsets = [0, 80], sizes = [8, 16], strides = [1, 1]} : vector<8x96xf32> to vector<8x16xf32>
    %145 = vector.extract_strided_slice %106 {offsets = [0, 80], sizes = [8, 16], strides = [1, 1]} : vector<8x96xf32> to vector<8x16xf32>
    %146 = arith.mulf %135, %145 : vector<8x16xf32>
    %147 = arith.addf %144, %146 : vector<8x16xf32>
    %148 = math.tanh %147 : vector<8x16xf32>
    %149 = arith.subf %80, %127 : vector<8x16xf32>
    %150 = arith.mulf %122, %149 : vector<8x16xf32>
    %151 = arith.addf %127, %150 : vector<8x16xf32>
    %152 = arith.subf %84, %148 : vector<8x16xf32>
    %153 = arith.mulf %143, %152 : vector<8x16xf32>
    %154 = arith.addf %148, %153 : vector<8x16xf32>
    %155 = arith.subf %151, %80 : vector<8x16xf32>
    %156 = vector.broadcast %96 : vector<8x1xf32> to vector<8x16xf32>
    %157 = arith.mulf %156, %155 : vector<8x16xf32>
    %158 = arith.addf %80, %157 : vector<8x16xf32>
    %159 = arith.subf %154, %84 : vector<8x16xf32>
    %160 = vector.broadcast %98 : vector<8x1xf32> to vector<8x16xf32>
    %161 = arith.mulf %160, %159 : vector<8x16xf32>
    %162 = arith.addf %84, %161 : vector<8x16xf32>
    %163 = vector.broadcast %96 : vector<8x1xf32> to vector<8x16xf32>
    %164 = arith.mulf %163, %158 : vector<8x16xf32>
    %165 = vector.broadcast %98 : vector<8x1xf32> to vector<8x16xf32>
    %166 = arith.mulf %165, %162 : vector<8x16xf32>
    %c3 = arith.constant 3 : index
    %c0_56 = arith.constant 0 : index
    %c0_57 = arith.constant 0 : index
    %167 = vector.load %arg19[%c3, %c0_56, %c0_57] : memref<12x8x32xf32, #tpu.memory_space<vmem>>, vector<1x8x16xf32>
    %168 = vector.shape_cast %167 : vector<1x8x16xf32> to vector<8x16xf32>
    %169 = vector.shape_cast %164 : vector<8x16xf32> to vector<1x8x16xf32>
    tpu.vector_store %arg19[%c3, %c0_56, %c0_57], %169 {strides = array<i32>} : memref<12x8x32xf32, #tpu.memory_space<vmem>>, vector<1x8x16xf32>,
    %c8 = arith.constant 8 : index
    %c0_58 = arith.constant 0 : index
    %c16_59 = arith.constant 16 : index
    %170 = vector.load %arg19[%c8, %c0_58, %c16_59] : memref<12x8x32xf32, #tpu.memory_space<vmem>>, vector<1x8x16xf32>
    %171 = vector.shape_cast %170 : vector<1x8x16xf32> to vector<8x16xf32>
    %172 = vector.shape_cast %166 : vector<8x16xf32> to vector<1x8x16xf32>
    tpu.vector_store %arg19[%c8, %c0_58, %c16_59], %172 {strides = array<i32>} : memref<12x8x32xf32, #tpu.memory_space<vmem>>, vector<1x8x16xf32>,
    %c2_60 = arith.constant 2 : index
    %c0_61 = arith.constant 0 : index
    %c0_62 = arith.constant 0 : index
    %173 = vector.load %arg2[%c2_60, %c0_61, %c0_62] : memref<8x8x1xf32, #tpu.memory_space<vmem>>, vector<1x8x1xf32>
    %174 = vector.shape_cast %173 : vector<1x8x1xf32> to vector<8x1xf32>
    %c5 = arith.constant 5 : index
    %c0_63 = arith.constant 0 : index
    %c0_64 = arith.constant 0 : index
    %175 = vector.load %arg2[%c5, %c0_63, %c0_64] : memref<8x8x1xf32, #tpu.memory_space<vmem>>, vector<1x8x1xf32>
    %176 = vector.shape_cast %175 : vector<1x8x1xf32> to vector<8x1xf32>
    %c2_65 = arith.constant 2 : index
    %c0_66 = arith.constant 0 : index
    %c0_67 = arith.constant 0 : index
    %177 = vector.load %arg18[%c2_65, %c0_66, %c0_67] : memref<8x8x96xf32, #tpu.memory_space<vmem>>, vector<1x8x96xf32>
    %178 = vector.shape_cast %177 : vector<1x8x96xf32> to vector<8x96xf32>
    %c5_68 = arith.constant 5 : index
    %c0_69 = arith.constant 0 : index
    %c0_70 = arith.constant 0 : index
    %179 = vector.load %arg18[%c5_68, %c0_69, %c0_70] : memref<8x8x96xf32, #tpu.memory_space<vmem>>, vector<1x8x96xf32>
    %180 = vector.shape_cast %179 : vector<1x8x96xf32> to vector<8x96xf32>
    %181 = tpu.concatenate %158, %162 in 1 : vector<8x16xf32>, vector<8x16xf32> -> vector<8x32xf32>
    %cst_71 = arith.constant dense<0.000000e+00> : vector<8x96xf32>
    %182 = tpu.matmul %181, %13, %cst_71 {dimension_numbers = #tpu.dot_dimension_numbers<[1], [0], [0], [1], [0, 0, 1, 1], [], []>} : vector<8x32xf32>, vector<32x96xf32>, vector<8x96xf32> -> vector<8x96xf32>
    %183 = vector.broadcast %14 : vector<1x96xf32> to vector<8x96xf32>
    %184 = arith.addf %182, %183 : vector<8x96xf32>
    %185 = vector.extract_strided_slice %178 {offsets = [0, 0], sizes = [8, 16], strides = [1, 1]} : vector<8x96xf32> to vector<8x16xf32>
    %186 = vector.extract_strided_slice %184 {offsets = [0, 0], sizes = [8, 16], strides = [1, 1]} : vector<8x96xf32> to vector<8x16xf32>
    %187 = arith.addf %185, %186 : vector<8x16xf32>
    %188 = arith.negf %187 : vector<8x16xf32>
    %189 = math.exp %188 : vector<8x16xf32>
    %cst_72 = arith.constant 1.000000e+00 : f32
    %190 = vector.broadcast %cst_72 : f32 to vector<8x16xf32>
    %191 = arith.addf %190, %189 : vector<8x16xf32>
    %192 = arith.divf %190, %191 : vector<8x16xf32>
    %193 = vector.extract_strided_slice %178 {offsets = [0, 16], sizes = [8, 16], strides = [1, 1]} : vector<8x96xf32> to vector<8x16xf32>
    %194 = vector.extract_strided_slice %184 {offsets = [0, 16], sizes = [8, 16], strides = [1, 1]} : vector<8x96xf32> to vector<8x16xf32>
    %195 = arith.addf %193, %194 : vector<8x16xf32>
    %196 = arith.negf %195 : vector<8x16xf32>
    %197 = math.exp %196 : vector<8x16xf32>
    %cst_73 = arith.constant 1.000000e+00 : f32
    %198 = vector.broadcast %cst_73 : f32 to vector<8x16xf32>
    %199 = arith.addf %198, %197 : vector<8x16xf32>
    %200 = arith.divf %198, %199 : vector<8x16xf32>
    %201 = vector.extract_strided_slice %178 {offsets = [0, 32], sizes = [8, 16], strides = [1, 1]} : vector<8x96xf32> to vector<8x16xf32>
    %202 = vector.extract_strided_slice %184 {offsets = [0, 32], sizes = [8, 16], strides = [1, 1]} : vector<8x96xf32> to vector<8x16xf32>
    %203 = arith.mulf %192, %202 : vector<8x16xf32>
    %204 = arith.addf %201, %203 : vector<8x16xf32>
    %205 = math.tanh %204 : vector<8x16xf32>
    %206 = vector.extract_strided_slice %180 {offsets = [0, 48], sizes = [8, 16], strides = [1, 1]} : vector<8x96xf32> to vector<8x16xf32>
    %207 = vector.extract_strided_slice %184 {offsets = [0, 48], sizes = [8, 16], strides = [1, 1]} : vector<8x96xf32> to vector<8x16xf32>
    %208 = arith.addf %206, %207 : vector<8x16xf32>
    %209 = arith.negf %208 : vector<8x16xf32>
    %210 = math.exp %209 : vector<8x16xf32>
    %cst_74 = arith.constant 1.000000e+00 : f32
    %211 = vector.broadcast %cst_74 : f32 to vector<8x16xf32>
    %212 = arith.addf %211, %210 : vector<8x16xf32>
    %213 = arith.divf %211, %212 : vector<8x16xf32>
    %214 = vector.extract_strided_slice %180 {offsets = [0, 64], sizes = [8, 16], strides = [1, 1]} : vector<8x96xf32> to vector<8x16xf32>
    %215 = vector.extract_strided_slice %184 {offsets = [0, 64], sizes = [8, 16], strides = [1, 1]} : vector<8x96xf32> to vector<8x16xf32>
    %216 = arith.addf %214, %215 : vector<8x16xf32>
    %217 = arith.negf %216 : vector<8x16xf32>
    %218 = math.exp %217 : vector<8x16xf32>
    %cst_75 = arith.constant 1.000000e+00 : f32
    %219 = vector.broadcast %cst_75 : f32 to vector<8x16xf32>
    %220 = arith.addf %219, %218 : vector<8x16xf32>
    %221 = arith.divf %219, %220 : vector<8x16xf32>
    %222 = vector.extract_strided_slice %180 {offsets = [0, 80], sizes = [8, 16], strides = [1, 1]} : vector<8x96xf32> to vector<8x16xf32>
    %223 = vector.extract_strided_slice %184 {offsets = [0, 80], sizes = [8, 16], strides = [1, 1]} : vector<8x96xf32> to vector<8x16xf32>
    %224 = arith.mulf %213, %223 : vector<8x16xf32>
    %225 = arith.addf %222, %224 : vector<8x16xf32>
    %226 = math.tanh %225 : vector<8x16xf32>
    %227 = arith.subf %158, %205 : vector<8x16xf32>
    %228 = arith.mulf %200, %227 : vector<8x16xf32>
    %229 = arith.addf %205, %228 : vector<8x16xf32>
    %230 = arith.subf %162, %226 : vector<8x16xf32>
    %231 = arith.mulf %221, %230 : vector<8x16xf32>
    %232 = arith.addf %226, %231 : vector<8x16xf32>
    %233 = arith.subf %229, %158 : vector<8x16xf32>
    %234 = vector.broadcast %174 : vector<8x1xf32> to vector<8x16xf32>
    %235 = arith.mulf %234, %233 : vector<8x16xf32>
    %236 = arith.addf %158, %235 : vector<8x16xf32>
    %237 = arith.subf %232, %162 : vector<8x16xf32>
    %238 = vector.broadcast %176 : vector<8x1xf32> to vector<8x16xf32>
    %239 = arith.mulf %238, %237 : vector<8x16xf32>
    %240 = arith.addf %162, %239 : vector<8x16xf32>
    %241 = vector.broadcast %174 : vector<8x1xf32> to vector<8x16xf32>
    %242 = arith.mulf %241, %236 : vector<8x16xf32>
    %243 = vector.broadcast %176 : vector<8x1xf32> to vector<8x16xf32>
    %244 = arith.mulf %243, %240 : vector<8x16xf32>
    %c4 = arith.constant 4 : index
    %c0_76 = arith.constant 0 : index
    %c0_77 = arith.constant 0 : index
    %245 = vector.load %arg19[%c4, %c0_76, %c0_77] : memref<12x8x32xf32, #tpu.memory_space<vmem>>, vector<1x8x16xf32>
    %246 = vector.shape_cast %245 : vector<1x8x16xf32> to vector<8x16xf32>
    %247 = vector.shape_cast %242 : vector<8x16xf32> to vector<1x8x16xf32>
    tpu.vector_store %arg19[%c4, %c0_76, %c0_77], %247 {strides = array<i32>} : memref<12x8x32xf32, #tpu.memory_space<vmem>>, vector<1x8x16xf32>,
    %c7_78 = arith.constant 7 : index
    %c0_79 = arith.constant 0 : index
    %c16_80 = arith.constant 16 : index
    %248 = vector.load %arg19[%c7_78, %c0_79, %c16_80] : memref<12x8x32xf32, #tpu.memory_space<vmem>>, vector<1x8x16xf32>
    %249 = vector.shape_cast %248 : vector<1x8x16xf32> to vector<8x16xf32>
    %250 = vector.shape_cast %244 : vector<8x16xf32> to vector<1x8x16xf32>
    tpu.vector_store %arg19[%c7_78, %c0_79, %c16_80], %250 {strides = array<i32>} : memref<12x8x32xf32, #tpu.memory_space<vmem>>, vector<1x8x16xf32>,
    %c3_81 = arith.constant 3 : index
    %c0_82 = arith.constant 0 : index
    %c0_83 = arith.constant 0 : index
    %251 = vector.load %arg2[%c3_81, %c0_82, %c0_83] : memref<8x8x1xf32, #tpu.memory_space<vmem>>, vector<1x8x1xf32>
    %252 = vector.shape_cast %251 : vector<1x8x1xf32> to vector<8x1xf32>
    %c4_84 = arith.constant 4 : index
    %c0_85 = arith.constant 0 : index
    %c0_86 = arith.constant 0 : index
    %253 = vector.load %arg2[%c4_84, %c0_85, %c0_86] : memref<8x8x1xf32, #tpu.memory_space<vmem>>, vector<1x8x1xf32>
    %254 = vector.shape_cast %253 : vector<1x8x1xf32> to vector<8x1xf32>
    %c3_87 = arith.constant 3 : index
    %c0_88 = arith.constant 0 : index
    %c0_89 = arith.constant 0 : index
    %255 = vector.load %arg18[%c3_87, %c0_88, %c0_89] : memref<8x8x96xf32, #tpu.memory_space<vmem>>, vector<1x8x96xf32>
    %256 = vector.shape_cast %255 : vector<1x8x96xf32> to vector<8x96xf32>
    %c4_90 = arith.constant 4 : index
    %c0_91 = arith.constant 0 : index
    %c0_92 = arith.constant 0 : index
    %257 = vector.load %arg18[%c4_90, %c0_91, %c0_92] : memref<8x8x96xf32, #tpu.memory_space<vmem>>, vector<1x8x96xf32>
    %258 = vector.shape_cast %257 : vector<1x8x96xf32> to vector<8x96xf32>
    %259 = tpu.concatenate %236, %240 in 1 : vector<8x16xf32>, vector<8x16xf32> -> vector<8x32xf32>
    %cst_93 = arith.constant dense<0.000000e+00> : vector<8x96xf32>
    %260 = tpu.matmul %259, %13, %cst_93 {dimension_numbers = #tpu.dot_dimension_numbers<[1], [0], [0], [1], [0, 0, 1, 1], [], []>} : vector<8x32xf32>, vector<32x96xf32>, vector<8x96xf32> -> vector<8x96xf32>
    %261 = vector.broadcast %14 : vector<1x96xf32> to vector<8x96xf32>
    %262 = arith.addf %260, %261 : vector<8x96xf32>
    %263 = vector.extract_strided_slice %256 {offsets = [0, 0], sizes = [8, 16], strides = [1, 1]} : vector<8x96xf32> to vector<8x16xf32>
    %264 = vector.extract_strided_slice %262 {offsets = [0, 0], sizes = [8, 16], strides = [1, 1]} : vector<8x96xf32> to vector<8x16xf32>
    %265 = arith.addf %263, %264 : vector<8x16xf32>
    %266 = arith.negf %265 : vector<8x16xf32>
    %267 = math.exp %266 : vector<8x16xf32>
    %cst_94 = arith.constant 1.000000e+00 : f32
    %268 = vector.broadcast %cst_94 : f32 to vector<8x16xf32>
    %269 = arith.addf %268, %267 : vector<8x16xf32>
    %270 = arith.divf %268, %269 : vector<8x16xf32>
    %271 = vector.extract_strided_slice %256 {offsets = [0, 16], sizes = [8, 16], strides = [1, 1]} : vector<8x96xf32> to vector<8x16xf32>
    %272 = vector.extract_strided_slice %262 {offsets = [0, 16], sizes = [8, 16], strides = [1, 1]} : vector<8x96xf32> to vector<8x16xf32>
    %273 = arith.addf %271, %272 : vector<8x16xf32>
    %274 = arith.negf %273 : vector<8x16xf32>
    %275 = math.exp %274 : vector<8x16xf32>
    %cst_95 = arith.constant 1.000000e+00 : f32
    %276 = vector.broadcast %cst_95 : f32 to vector<8x16xf32>
    %277 = arith.addf %276, %275 : vector<8x16xf32>
    %278 = arith.divf %276, %277 : vector<8x16xf32>
    %279 = vector.extract_strided_slice %256 {offsets = [0, 32], sizes = [8, 16], strides = [1, 1]} : vector<8x96xf32> to vector<8x16xf32>
    %280 = vector.extract_strided_slice %262 {offsets = [0, 32], sizes = [8, 16], strides = [1, 1]} : vector<8x96xf32> to vector<8x16xf32>
    %281 = arith.mulf %270, %280 : vector<8x16xf32>
    %282 = arith.addf %279, %281 : vector<8x16xf32>
    %283 = math.tanh %282 : vector<8x16xf32>
    %284 = vector.extract_strided_slice %258 {offsets = [0, 48], sizes = [8, 16], strides = [1, 1]} : vector<8x96xf32> to vector<8x16xf32>
    %285 = vector.extract_strided_slice %262 {offsets = [0, 48], sizes = [8, 16], strides = [1, 1]} : vector<8x96xf32> to vector<8x16xf32>
    %286 = arith.addf %284, %285 : vector<8x16xf32>
    %287 = arith.negf %286 : vector<8x16xf32>
    %288 = math.exp %287 : vector<8x16xf32>
    %cst_96 = arith.constant 1.000000e+00 : f32
    %289 = vector.broadcast %cst_96 : f32 to vector<8x16xf32>
    %290 = arith.addf %289, %288 : vector<8x16xf32>
    %291 = arith.divf %289, %290 : vector<8x16xf32>
    %292 = vector.extract_strided_slice %258 {offsets = [0, 64], sizes = [8, 16], strides = [1, 1]} : vector<8x96xf32> to vector<8x16xf32>
    %293 = vector.extract_strided_slice %262 {offsets = [0, 64], sizes = [8, 16], strides = [1, 1]} : vector<8x96xf32> to vector<8x16xf32>
    %294 = arith.addf %292, %293 : vector<8x16xf32>
    %295 = arith.negf %294 : vector<8x16xf32>
    %296 = math.exp %295 : vector<8x16xf32>
    %cst_97 = arith.constant 1.000000e+00 : f32
    %297 = vector.broadcast %cst_97 : f32 to vector<8x16xf32>
    %298 = arith.addf %297, %296 : vector<8x16xf32>
    %299 = arith.divf %297, %298 : vector<8x16xf32>
    %300 = vector.extract_strided_slice %258 {offsets = [0, 80], sizes = [8, 16], strides = [1, 1]} : vector<8x96xf32> to vector<8x16xf32>
    %301 = vector.extract_strided_slice %262 {offsets = [0, 80], sizes = [8, 16], strides = [1, 1]} : vector<8x96xf32> to vector<8x16xf32>
    %302 = arith.mulf %291, %301 : vector<8x16xf32>
    %303 = arith.addf %300, %302 : vector<8x16xf32>
    %304 = math.tanh %303 : vector<8x16xf32>
    %305 = arith.subf %236, %283 : vector<8x16xf32>
    %306 = arith.mulf %278, %305 : vector<8x16xf32>
    %307 = arith.addf %283, %306 : vector<8x16xf32>
    %308 = arith.subf %240, %304 : vector<8x16xf32>
    %309 = arith.mulf %299, %308 : vector<8x16xf32>
    %310 = arith.addf %304, %309 : vector<8x16xf32>
    %311 = arith.subf %307, %236 : vector<8x16xf32>
    %312 = vector.broadcast %252 : vector<8x1xf32> to vector<8x16xf32>
    %313 = arith.mulf %312, %311 : vector<8x16xf32>
    %314 = arith.addf %236, %313 : vector<8x16xf32>
    %315 = arith.subf %310, %240 : vector<8x16xf32>
    %316 = vector.broadcast %254 : vector<8x1xf32> to vector<8x16xf32>
    %317 = arith.mulf %316, %315 : vector<8x16xf32>
    %318 = arith.addf %240, %317 : vector<8x16xf32>
    %319 = vector.broadcast %252 : vector<8x1xf32> to vector<8x16xf32>
    %320 = arith.mulf %319, %314 : vector<8x16xf32>
    %321 = vector.broadcast %254 : vector<8x1xf32> to vector<8x16xf32>
    %322 = arith.mulf %321, %318 : vector<8x16xf32>
    %c5_98 = arith.constant 5 : index
    %c0_99 = arith.constant 0 : index
    %c0_100 = arith.constant 0 : index
    %323 = vector.load %arg19[%c5_98, %c0_99, %c0_100] : memref<12x8x32xf32, #tpu.memory_space<vmem>>, vector<1x8x16xf32>
    %324 = vector.shape_cast %323 : vector<1x8x16xf32> to vector<8x16xf32>
    %325 = vector.shape_cast %320 : vector<8x16xf32> to vector<1x8x16xf32>
    tpu.vector_store %arg19[%c5_98, %c0_99, %c0_100], %325 {strides = array<i32>} : memref<12x8x32xf32, #tpu.memory_space<vmem>>, vector<1x8x16xf32>,
    %c6_101 = arith.constant 6 : index
    %c0_102 = arith.constant 0 : index
    %c16_103 = arith.constant 16 : index
    %326 = vector.load %arg19[%c6_101, %c0_102, %c16_103] : memref<12x8x32xf32, #tpu.memory_space<vmem>>, vector<1x8x16xf32>
    %327 = vector.shape_cast %326 : vector<1x8x16xf32> to vector<8x16xf32>
    %328 = vector.shape_cast %322 : vector<8x16xf32> to vector<1x8x16xf32>
    tpu.vector_store %arg19[%c6_101, %c0_102, %c16_103], %328 {strides = array<i32>} : memref<12x8x32xf32, #tpu.memory_space<vmem>>, vector<1x8x16xf32>,
    %c4_104 = arith.constant 4 : index
    %c0_105 = arith.constant 0 : index
    %c0_106 = arith.constant 0 : index
    %329 = vector.load %arg2[%c4_104, %c0_105, %c0_106] : memref<8x8x1xf32, #tpu.memory_space<vmem>>, vector<1x8x1xf32>
    %330 = vector.shape_cast %329 : vector<1x8x1xf32> to vector<8x1xf32>
    %c3_107 = arith.constant 3 : index
    %c0_108 = arith.constant 0 : index
    %c0_109 = arith.constant 0 : index
    %331 = vector.load %arg2[%c3_107, %c0_108, %c0_109] : memref<8x8x1xf32, #tpu.memory_space<vmem>>, vector<1x8x1xf32>
    %332 = vector.shape_cast %331 : vector<1x8x1xf32> to vector<8x1xf32>
    %c4_110 = arith.constant 4 : index
    %c0_111 = arith.constant 0 : index
    %c0_112 = arith.constant 0 : index
    %333 = vector.load %arg18[%c4_110, %c0_111, %c0_112] : memref<8x8x96xf32, #tpu.memory_space<vmem>>, vector<1x8x96xf32>
    %334 = vector.shape_cast %333 : vector<1x8x96xf32> to vector<8x96xf32>
    %c3_113 = arith.constant 3 : index
    %c0_114 = arith.constant 0 : index
    %c0_115 = arith.constant 0 : index
    %335 = vector.load %arg18[%c3_113, %c0_114, %c0_115] : memref<8x8x96xf32, #tpu.memory_space<vmem>>, vector<1x8x96xf32>
    %336 = vector.shape_cast %335 : vector<1x8x96xf32> to vector<8x96xf32>
    %337 = tpu.concatenate %314, %318 in 1 : vector<8x16xf32>, vector<8x16xf32> -> vector<8x32xf32>
    %cst_116 = arith.constant dense<0.000000e+00> : vector<8x96xf32>
    %338 = tpu.matmul %337, %13, %cst_116 {dimension_numbers = #tpu.dot_dimension_numbers<[1], [0], [0], [1], [0, 0, 1, 1], [], []>} : vector<8x32xf32>, vector<32x96xf32>, vector<8x96xf32> -> vector<8x96xf32>
    %339 = vector.broadcast %14 : vector<1x96xf32> to vector<8x96xf32>
    %340 = arith.addf %338, %339 : vector<8x96xf32>
    %341 = vector.extract_strided_slice %334 {offsets = [0, 0], sizes = [8, 16], strides = [1, 1]} : vector<8x96xf32> to vector<8x16xf32>
    %342 = vector.extract_strided_slice %340 {offsets = [0, 0], sizes = [8, 16], strides = [1, 1]} : vector<8x96xf32> to vector<8x16xf32>
    %343 = arith.addf %341, %342 : vector<8x16xf32>
    %344 = arith.negf %343 : vector<8x16xf32>
    %345 = math.exp %344 : vector<8x16xf32>
    %cst_117 = arith.constant 1.000000e+00 : f32
    %346 = vector.broadcast %cst_117 : f32 to vector<8x16xf32>
    %347 = arith.addf %346, %345 : vector<8x16xf32>
    %348 = arith.divf %346, %347 : vector<8x16xf32>
    %349 = vector.extract_strided_slice %334 {offsets = [0, 16], sizes = [8, 16], strides = [1, 1]} : vector<8x96xf32> to vector<8x16xf32>
    %350 = vector.extract_strided_slice %340 {offsets = [0, 16], sizes = [8, 16], strides = [1, 1]} : vector<8x96xf32> to vector<8x16xf32>
    %351 = arith.addf %349, %350 : vector<8x16xf32>
    %352 = arith.negf %351 : vector<8x16xf32>
    %353 = math.exp %352 : vector<8x16xf32>
    %cst_118 = arith.constant 1.000000e+00 : f32
    %354 = vector.broadcast %cst_118 : f32 to vector<8x16xf32>
    %355 = arith.addf %354, %353 : vector<8x16xf32>
    %356 = arith.divf %354, %355 : vector<8x16xf32>
    %357 = vector.extract_strided_slice %334 {offsets = [0, 32], sizes = [8, 16], strides = [1, 1]} : vector<8x96xf32> to vector<8x16xf32>
    %358 = vector.extract_strided_slice %340 {offsets = [0, 32], sizes = [8, 16], strides = [1, 1]} : vector<8x96xf32> to vector<8x16xf32>
    %359 = arith.mulf %348, %358 : vector<8x16xf32>
    %360 = arith.addf %357, %359 : vector<8x16xf32>
    %361 = math.tanh %360 : vector<8x16xf32>
    %362 = vector.extract_strided_slice %336 {offsets = [0, 48], sizes = [8, 16], strides = [1, 1]} : vector<8x96xf32> to vector<8x16xf32>
    %363 = vector.extract_strided_slice %340 {offsets = [0, 48], sizes = [8, 16], strides = [1, 1]} : vector<8x96xf32> to vector<8x16xf32>
    %364 = arith.addf %362, %363 : vector<8x16xf32>
    %365 = arith.negf %364 : vector<8x16xf32>
    %366 = math.exp %365 : vector<8x16xf32>
    %cst_119 = arith.constant 1.000000e+00 : f32
    %367 = vector.broadcast %cst_119 : f32 to vector<8x16xf32>
    %368 = arith.addf %367, %366 : vector<8x16xf32>
    %369 = arith.divf %367, %368 : vector<8x16xf32>
    %370 = vector.extract_strided_slice %336 {offsets = [0, 64], sizes = [8, 16], strides = [1, 1]} : vector<8x96xf32> to vector<8x16xf32>
    %371 = vector.extract_strided_slice %340 {offsets = [0, 64], sizes = [8, 16], strides = [1, 1]} : vector<8x96xf32> to vector<8x16xf32>
    %372 = arith.addf %370, %371 : vector<8x16xf32>
    %373 = arith.negf %372 : vector<8x16xf32>
    %374 = math.exp %373 : vector<8x16xf32>
    %cst_120 = arith.constant 1.000000e+00 : f32
    %375 = vector.broadcast %cst_120 : f32 to vector<8x16xf32>
    %376 = arith.addf %375, %374 : vector<8x16xf32>
    %377 = arith.divf %375, %376 : vector<8x16xf32>
    %378 = vector.extract_strided_slice %336 {offsets = [0, 80], sizes = [8, 16], strides = [1, 1]} : vector<8x96xf32> to vector<8x16xf32>
    %379 = vector.extract_strided_slice %340 {offsets = [0, 80], sizes = [8, 16], strides = [1, 1]} : vector<8x96xf32> to vector<8x16xf32>
    %380 = arith.mulf %369, %379 : vector<8x16xf32>
    %381 = arith.addf %378, %380 : vector<8x16xf32>
    %382 = math.tanh %381 : vector<8x16xf32>
    %383 = arith.subf %314, %361 : vector<8x16xf32>
    %384 = arith.mulf %356, %383 : vector<8x16xf32>
    %385 = arith.addf %361, %384 : vector<8x16xf32>
    %386 = arith.subf %318, %382 : vector<8x16xf32>
    %387 = arith.mulf %377, %386 : vector<8x16xf32>
    %388 = arith.addf %382, %387 : vector<8x16xf32>
    %389 = arith.subf %385, %314 : vector<8x16xf32>
    %390 = vector.broadcast %330 : vector<8x1xf32> to vector<8x16xf32>
    %391 = arith.mulf %390, %389 : vector<8x16xf32>
    %392 = arith.addf %314, %391 : vector<8x16xf32>
    %393 = arith.subf %388, %318 : vector<8x16xf32>
    %394 = vector.broadcast %332 : vector<8x1xf32> to vector<8x16xf32>
    %395 = arith.mulf %394, %393 : vector<8x16xf32>
    %396 = arith.addf %318, %395 : vector<8x16xf32>
    %397 = vector.broadcast %330 : vector<8x1xf32> to vector<8x16xf32>
    %398 = arith.mulf %397, %392 : vector<8x16xf32>
    %399 = vector.broadcast %332 : vector<8x1xf32> to vector<8x16xf32>
    %400 = arith.mulf %399, %396 : vector<8x16xf32>
    %c6_121 = arith.constant 6 : index
    %c0_122 = arith.constant 0 : index
    %c0_123 = arith.constant 0 : index
    %401 = vector.load %arg19[%c6_121, %c0_122, %c0_123] : memref<12x8x32xf32, #tpu.memory_space<vmem>>, vector<1x8x16xf32>
    %402 = vector.shape_cast %401 : vector<1x8x16xf32> to vector<8x16xf32>
    %403 = vector.shape_cast %398 : vector<8x16xf32> to vector<1x8x16xf32>
    tpu.vector_store %arg19[%c6_121, %c0_122, %c0_123], %403 {strides = array<i32>} : memref<12x8x32xf32, #tpu.memory_space<vmem>>, vector<1x8x16xf32>,
    %c5_124 = arith.constant 5 : index
    %c0_125 = arith.constant 0 : index
    %c16_126 = arith.constant 16 : index
    %404 = vector.load %arg19[%c5_124, %c0_125, %c16_126] : memref<12x8x32xf32, #tpu.memory_space<vmem>>, vector<1x8x16xf32>
    %405 = vector.shape_cast %404 : vector<1x8x16xf32> to vector<8x16xf32>
    %406 = vector.shape_cast %400 : vector<8x16xf32> to vector<1x8x16xf32>
    tpu.vector_store %arg19[%c5_124, %c0_125, %c16_126], %406 {strides = array<i32>} : memref<12x8x32xf32, #tpu.memory_space<vmem>>, vector<1x8x16xf32>,
    %c5_127 = arith.constant 5 : index
    %c0_128 = arith.constant 0 : index
    %c0_129 = arith.constant 0 : index
    %407 = vector.load %arg2[%c5_127, %c0_128, %c0_129] : memref<8x8x1xf32, #tpu.memory_space<vmem>>, vector<1x8x1xf32>
    %408 = vector.shape_cast %407 : vector<1x8x1xf32> to vector<8x1xf32>
    %c2_130 = arith.constant 2 : index
    %c0_131 = arith.constant 0 : index
    %c0_132 = arith.constant 0 : index
    %409 = vector.load %arg2[%c2_130, %c0_131, %c0_132] : memref<8x8x1xf32, #tpu.memory_space<vmem>>, vector<1x8x1xf32>
    %410 = vector.shape_cast %409 : vector<1x8x1xf32> to vector<8x1xf32>
    %c5_133 = arith.constant 5 : index
    %c0_134 = arith.constant 0 : index
    %c0_135 = arith.constant 0 : index
    %411 = vector.load %arg18[%c5_133, %c0_134, %c0_135] : memref<8x8x96xf32, #tpu.memory_space<vmem>>, vector<1x8x96xf32>
    %412 = vector.shape_cast %411 : vector<1x8x96xf32> to vector<8x96xf32>
    %c2_136 = arith.constant 2 : index
    %c0_137 = arith.constant 0 : index
    %c0_138 = arith.constant 0 : index
    %413 = vector.load %arg18[%c2_136, %c0_137, %c0_138] : memref<8x8x96xf32, #tpu.memory_space<vmem>>, vector<1x8x96xf32>
    %414 = vector.shape_cast %413 : vector<1x8x96xf32> to vector<8x96xf32>
    %415 = tpu.concatenate %392, %396 in 1 : vector<8x16xf32>, vector<8x16xf32> -> vector<8x32xf32>
    %cst_139 = arith.constant dense<0.000000e+00> : vector<8x96xf32>
    %416 = tpu.matmul %415, %13, %cst_139 {dimension_numbers = #tpu.dot_dimension_numbers<[1], [0], [0], [1], [0, 0, 1, 1], [], []>} : vector<8x32xf32>, vector<32x96xf32>, vector<8x96xf32> -> vector<8x96xf32>
    %417 = vector.broadcast %14 : vector<1x96xf32> to vector<8x96xf32>
    %418 = arith.addf %416, %417 : vector<8x96xf32>
    %419 = vector.extract_strided_slice %412 {offsets = [0, 0], sizes = [8, 16], strides = [1, 1]} : vector<8x96xf32> to vector<8x16xf32>
    %420 = vector.extract_strided_slice %418 {offsets = [0, 0], sizes = [8, 16], strides = [1, 1]} : vector<8x96xf32> to vector<8x16xf32>
    %421 = arith.addf %419, %420 : vector<8x16xf32>
    %422 = arith.negf %421 : vector<8x16xf32>
    %423 = math.exp %422 : vector<8x16xf32>
    %cst_140 = arith.constant 1.000000e+00 : f32
    %424 = vector.broadcast %cst_140 : f32 to vector<8x16xf32>
    %425 = arith.addf %424, %423 : vector<8x16xf32>
    %426 = arith.divf %424, %425 : vector<8x16xf32>
    %427 = vector.extract_strided_slice %412 {offsets = [0, 16], sizes = [8, 16], strides = [1, 1]} : vector<8x96xf32> to vector<8x16xf32>
    %428 = vector.extract_strided_slice %418 {offsets = [0, 16], sizes = [8, 16], strides = [1, 1]} : vector<8x96xf32> to vector<8x16xf32>
    %429 = arith.addf %427, %428 : vector<8x16xf32>
    %430 = arith.negf %429 : vector<8x16xf32>
    %431 = math.exp %430 : vector<8x16xf32>
    %cst_141 = arith.constant 1.000000e+00 : f32
    %432 = vector.broadcast %cst_141 : f32 to vector<8x16xf32>
    %433 = arith.addf %432, %431 : vector<8x16xf32>
    %434 = arith.divf %432, %433 : vector<8x16xf32>
    %435 = vector.extract_strided_slice %412 {offsets = [0, 32], sizes = [8, 16], strides = [1, 1]} : vector<8x96xf32> to vector<8x16xf32>
    %436 = vector.extract_strided_slice %418 {offsets = [0, 32], sizes = [8, 16], strides = [1, 1]} : vector<8x96xf32> to vector<8x16xf32>
    %437 = arith.mulf %426, %436 : vector<8x16xf32>
    %438 = arith.addf %435, %437 : vector<8x16xf32>
    %439 = math.tanh %438 : vector<8x16xf32>
    %440 = vector.extract_strided_slice %414 {offsets = [0, 48], sizes = [8, 16], strides = [1, 1]} : vector<8x96xf32> to vector<8x16xf32>
    %441 = vector.extract_strided_slice %418 {offsets = [0, 48], sizes = [8, 16], strides = [1, 1]} : vector<8x96xf32> to vector<8x16xf32>
    %442 = arith.addf %440, %441 : vector<8x16xf32>
    %443 = arith.negf %442 : vector<8x16xf32>
    %444 = math.exp %443 : vector<8x16xf32>
    %cst_142 = arith.constant 1.000000e+00 : f32
    %445 = vector.broadcast %cst_142 : f32 to vector<8x16xf32>
    %446 = arith.addf %445, %444 : vector<8x16xf32>
    %447 = arith.divf %445, %446 : vector<8x16xf32>
    %448 = vector.extract_strided_slice %414 {offsets = [0, 64], sizes = [8, 16], strides = [1, 1]} : vector<8x96xf32> to vector<8x16xf32>
    %449 = vector.extract_strided_slice %418 {offsets = [0, 64], sizes = [8, 16], strides = [1, 1]} : vector<8x96xf32> to vector<8x16xf32>
    %450 = arith.addf %448, %449 : vector<8x16xf32>
    %451 = arith.negf %450 : vector<8x16xf32>
    %452 = math.exp %451 : vector<8x16xf32>
    %cst_143 = arith.constant 1.000000e+00 : f32
    %453 = vector.broadcast %cst_143 : f32 to vector<8x16xf32>
    %454 = arith.addf %453, %452 : vector<8x16xf32>
    %455 = arith.divf %453, %454 : vector<8x16xf32>
    %456 = vector.extract_strided_slice %414 {offsets = [0, 80], sizes = [8, 16], strides = [1, 1]} : vector<8x96xf32> to vector<8x16xf32>
    %457 = vector.extract_strided_slice %418 {offsets = [0, 80], sizes = [8, 16], strides = [1, 1]} : vector<8x96xf32> to vector<8x16xf32>
    %458 = arith.mulf %447, %457 : vector<8x16xf32>
    %459 = arith.addf %456, %458 : vector<8x16xf32>
    %460 = math.tanh %459 : vector<8x16xf32>
    %461 = arith.subf %392, %439 : vector<8x16xf32>
    %462 = arith.mulf %434, %461 : vector<8x16xf32>
    %463 = arith.addf %439, %462 : vector<8x16xf32>
    %464 = arith.subf %396, %460 : vector<8x16xf32>
    %465 = arith.mulf %455, %464 : vector<8x16xf32>
    %466 = arith.addf %460, %465 : vector<8x16xf32>
    %467 = arith.subf %463, %392 : vector<8x16xf32>
    %468 = vector.broadcast %408 : vector<8x1xf32> to vector<8x16xf32>
    %469 = arith.mulf %468, %467 : vector<8x16xf32>
    %470 = arith.addf %392, %469 : vector<8x16xf32>
    %471 = arith.subf %466, %396 : vector<8x16xf32>
    %472 = vector.broadcast %410 : vector<8x1xf32> to vector<8x16xf32>
    %473 = arith.mulf %472, %471 : vector<8x16xf32>
    %474 = arith.addf %396, %473 : vector<8x16xf32>
    %475 = vector.broadcast %408 : vector<8x1xf32> to vector<8x16xf32>
    %476 = arith.mulf %475, %470 : vector<8x16xf32>
    %477 = vector.broadcast %410 : vector<8x1xf32> to vector<8x16xf32>
    %478 = arith.mulf %477, %474 : vector<8x16xf32>
    %c7_144 = arith.constant 7 : index
    %c0_145 = arith.constant 0 : index
    %c0_146 = arith.constant 0 : index
    %479 = vector.load %arg19[%c7_144, %c0_145, %c0_146] : memref<12x8x32xf32, #tpu.memory_space<vmem>>, vector<1x8x16xf32>
    %480 = vector.shape_cast %479 : vector<1x8x16xf32> to vector<8x16xf32>
    %481 = vector.shape_cast %476 : vector<8x16xf32> to vector<1x8x16xf32>
    tpu.vector_store %arg19[%c7_144, %c0_145, %c0_146], %481 {strides = array<i32>} : memref<12x8x32xf32, #tpu.memory_space<vmem>>, vector<1x8x16xf32>,
    %c4_147 = arith.constant 4 : index
    %c0_148 = arith.constant 0 : index
    %c16_149 = arith.constant 16 : index
    %482 = vector.load %arg19[%c4_147, %c0_148, %c16_149] : memref<12x8x32xf32, #tpu.memory_space<vmem>>, vector<1x8x16xf32>
    %483 = vector.shape_cast %482 : vector<1x8x16xf32> to vector<8x16xf32>
    %484 = vector.shape_cast %478 : vector<8x16xf32> to vector<1x8x16xf32>
    tpu.vector_store %arg19[%c4_147, %c0_148, %c16_149], %484 {strides = array<i32>} : memref<12x8x32xf32, #tpu.memory_space<vmem>>, vector<1x8x16xf32>,
    %c6_150 = arith.constant 6 : index
    %c0_151 = arith.constant 0 : index
    %c0_152 = arith.constant 0 : index
    %485 = vector.load %arg2[%c6_150, %c0_151, %c0_152] : memref<8x8x1xf32, #tpu.memory_space<vmem>>, vector<1x8x1xf32>
    %486 = vector.shape_cast %485 : vector<1x8x1xf32> to vector<8x1xf32>
    %c1_153 = arith.constant 1 : index
    %c0_154 = arith.constant 0 : index
    %c0_155 = arith.constant 0 : index
    %487 = vector.load %arg2[%c1_153, %c0_154, %c0_155] : memref<8x8x1xf32, #tpu.memory_space<vmem>>, vector<1x8x1xf32>
    %488 = vector.shape_cast %487 : vector<1x8x1xf32> to vector<8x1xf32>
    %c6_156 = arith.constant 6 : index
    %c0_157 = arith.constant 0 : index
    %c0_158 = arith.constant 0 : index
    %489 = vector.load %arg18[%c6_156, %c0_157, %c0_158] : memref<8x8x96xf32, #tpu.memory_space<vmem>>, vector<1x8x96xf32>
    %490 = vector.shape_cast %489 : vector<1x8x96xf32> to vector<8x96xf32>
    %c1_159 = arith.constant 1 : index
    %c0_160 = arith.constant 0 : index
    %c0_161 = arith.constant 0 : index
    %491 = vector.load %arg18[%c1_159, %c0_160, %c0_161] : memref<8x8x96xf32, #tpu.memory_space<vmem>>, vector<1x8x96xf32>
    %492 = vector.shape_cast %491 : vector<1x8x96xf32> to vector<8x96xf32>
    %493 = tpu.concatenate %470, %474 in 1 : vector<8x16xf32>, vector<8x16xf32> -> vector<8x32xf32>
    %cst_162 = arith.constant dense<0.000000e+00> : vector<8x96xf32>
    %494 = tpu.matmul %493, %13, %cst_162 {dimension_numbers = #tpu.dot_dimension_numbers<[1], [0], [0], [1], [0, 0, 1, 1], [], []>} : vector<8x32xf32>, vector<32x96xf32>, vector<8x96xf32> -> vector<8x96xf32>
    %495 = vector.broadcast %14 : vector<1x96xf32> to vector<8x96xf32>
    %496 = arith.addf %494, %495 : vector<8x96xf32>
    %497 = vector.extract_strided_slice %490 {offsets = [0, 0], sizes = [8, 16], strides = [1, 1]} : vector<8x96xf32> to vector<8x16xf32>
    %498 = vector.extract_strided_slice %496 {offsets = [0, 0], sizes = [8, 16], strides = [1, 1]} : vector<8x96xf32> to vector<8x16xf32>
    %499 = arith.addf %497, %498 : vector<8x16xf32>
    %500 = arith.negf %499 : vector<8x16xf32>
    %501 = math.exp %500 : vector<8x16xf32>
    %cst_163 = arith.constant 1.000000e+00 : f32
    %502 = vector.broadcast %cst_163 : f32 to vector<8x16xf32>
    %503 = arith.addf %502, %501 : vector<8x16xf32>
    %504 = arith.divf %502, %503 : vector<8x16xf32>
    %505 = vector.extract_strided_slice %490 {offsets = [0, 16], sizes = [8, 16], strides = [1, 1]} : vector<8x96xf32> to vector<8x16xf32>
    %506 = vector.extract_strided_slice %496 {offsets = [0, 16], sizes = [8, 16], strides = [1, 1]} : vector<8x96xf32> to vector<8x16xf32>
    %507 = arith.addf %505, %506 : vector<8x16xf32>
    %508 = arith.negf %507 : vector<8x16xf32>
    %509 = math.exp %508 : vector<8x16xf32>
    %cst_164 = arith.constant 1.000000e+00 : f32
    %510 = vector.broadcast %cst_164 : f32 to vector<8x16xf32>
    %511 = arith.addf %510, %509 : vector<8x16xf32>
    %512 = arith.divf %510, %511 : vector<8x16xf32>
    %513 = vector.extract_strided_slice %490 {offsets = [0, 32], sizes = [8, 16], strides = [1, 1]} : vector<8x96xf32> to vector<8x16xf32>
    %514 = vector.extract_strided_slice %496 {offsets = [0, 32], sizes = [8, 16], strides = [1, 1]} : vector<8x96xf32> to vector<8x16xf32>
    %515 = arith.mulf %504, %514 : vector<8x16xf32>
    %516 = arith.addf %513, %515 : vector<8x16xf32>
    %517 = math.tanh %516 : vector<8x16xf32>
    %518 = vector.extract_strided_slice %492 {offsets = [0, 48], sizes = [8, 16], strides = [1, 1]} : vector<8x96xf32> to vector<8x16xf32>
    %519 = vector.extract_strided_slice %496 {offsets = [0, 48], sizes = [8, 16], strides = [1, 1]} : vector<8x96xf32> to vector<8x16xf32>
    %520 = arith.addf %518, %519 : vector<8x16xf32>
    %521 = arith.negf %520 : vector<8x16xf32>
    %522 = math.exp %521 : vector<8x16xf32>
    %cst_165 = arith.constant 1.000000e+00 : f32
    %523 = vector.broadcast %cst_165 : f32 to vector<8x16xf32>
    %524 = arith.addf %523, %522 : vector<8x16xf32>
    %525 = arith.divf %523, %524 : vector<8x16xf32>
    %526 = vector.extract_strided_slice %492 {offsets = [0, 64], sizes = [8, 16], strides = [1, 1]} : vector<8x96xf32> to vector<8x16xf32>
    %527 = vector.extract_strided_slice %496 {offsets = [0, 64], sizes = [8, 16], strides = [1, 1]} : vector<8x96xf32> to vector<8x16xf32>
    %528 = arith.addf %526, %527 : vector<8x16xf32>
    %529 = arith.negf %528 : vector<8x16xf32>
    %530 = math.exp %529 : vector<8x16xf32>
    %cst_166 = arith.constant 1.000000e+00 : f32
    %531 = vector.broadcast %cst_166 : f32 to vector<8x16xf32>
    %532 = arith.addf %531, %530 : vector<8x16xf32>
    %533 = arith.divf %531, %532 : vector<8x16xf32>
    %534 = vector.extract_strided_slice %492 {offsets = [0, 80], sizes = [8, 16], strides = [1, 1]} : vector<8x96xf32> to vector<8x16xf32>
    %535 = vector.extract_strided_slice %496 {offsets = [0, 80], sizes = [8, 16], strides = [1, 1]} : vector<8x96xf32> to vector<8x16xf32>
    %536 = arith.mulf %525, %535 : vector<8x16xf32>
    %537 = arith.addf %534, %536 : vector<8x16xf32>
    %538 = math.tanh %537 : vector<8x16xf32>
    %539 = arith.subf %470, %517 : vector<8x16xf32>
    %540 = arith.mulf %512, %539 : vector<8x16xf32>
    %541 = arith.addf %517, %540 : vector<8x16xf32>
    %542 = arith.subf %474, %538 : vector<8x16xf32>
    %543 = arith.mulf %533, %542 : vector<8x16xf32>
    %544 = arith.addf %538, %543 : vector<8x16xf32>
    %545 = arith.subf %541, %470 : vector<8x16xf32>
    %546 = vector.broadcast %486 : vector<8x1xf32> to vector<8x16xf32>
    %547 = arith.mulf %546, %545 : vector<8x16xf32>
    %548 = arith.addf %470, %547 : vector<8x16xf32>
    %549 = arith.subf %544, %474 : vector<8x16xf32>
    %550 = vector.broadcast %488 : vector<8x1xf32> to vector<8x16xf32>
    %551 = arith.mulf %550, %549 : vector<8x16xf32>
    %552 = arith.addf %474, %551 : vector<8x16xf32>
    %553 = vector.broadcast %486 : vector<8x1xf32> to vector<8x16xf32>
    %554 = arith.mulf %553, %548 : vector<8x16xf32>
    %555 = vector.broadcast %488 : vector<8x1xf32> to vector<8x16xf32>
    %556 = arith.mulf %555, %552 : vector<8x16xf32>
    %c8_167 = arith.constant 8 : index
    %c0_168 = arith.constant 0 : index
    %c0_169 = arith.constant 0 : index
    %557 = vector.load %arg19[%c8_167, %c0_168, %c0_169] : memref<12x8x32xf32, #tpu.memory_space<vmem>>, vector<1x8x16xf32>
    %558 = vector.shape_cast %557 : vector<1x8x16xf32> to vector<8x16xf32>
    %559 = vector.shape_cast %554 : vector<8x16xf32> to vector<1x8x16xf32>
    tpu.vector_store %arg19[%c8_167, %c0_168, %c0_169], %559 {strides = array<i32>} : memref<12x8x32xf32, #tpu.memory_space<vmem>>, vector<1x8x16xf32>,
    %c3_170 = arith.constant 3 : index
    %c0_171 = arith.constant 0 : index
    %c16_172 = arith.constant 16 : index
    %560 = vector.load %arg19[%c3_170, %c0_171, %c16_172] : memref<12x8x32xf32, #tpu.memory_space<vmem>>, vector<1x8x16xf32>
    %561 = vector.shape_cast %560 : vector<1x8x16xf32> to vector<8x16xf32>
    %562 = vector.shape_cast %556 : vector<8x16xf32> to vector<1x8x16xf32>
    tpu.vector_store %arg19[%c3_170, %c0_171, %c16_172], %562 {strides = array<i32>} : memref<12x8x32xf32, #tpu.memory_space<vmem>>, vector<1x8x16xf32>,
    %c7_173 = arith.constant 7 : index
    %c0_174 = arith.constant 0 : index
    %c0_175 = arith.constant 0 : index
    %563 = vector.load %arg2[%c7_173, %c0_174, %c0_175] : memref<8x8x1xf32, #tpu.memory_space<vmem>>, vector<1x8x1xf32>
    %564 = vector.shape_cast %563 : vector<1x8x1xf32> to vector<8x1xf32>
    %c0_176 = arith.constant 0 : index
    %c0_177 = arith.constant 0 : index
    %c0_178 = arith.constant 0 : index
    %565 = vector.load %arg2[%c0_176, %c0_177, %c0_178] : memref<8x8x1xf32, #tpu.memory_space<vmem>>, vector<1x8x1xf32>
    %566 = vector.shape_cast %565 : vector<1x8x1xf32> to vector<8x1xf32>
    %c7_179 = arith.constant 7 : index
    %c0_180 = arith.constant 0 : index
    %c0_181 = arith.constant 0 : index
    %567 = vector.load %arg18[%c7_179, %c0_180, %c0_181] : memref<8x8x96xf32, #tpu.memory_space<vmem>>, vector<1x8x96xf32>
    %568 = vector.shape_cast %567 : vector<1x8x96xf32> to vector<8x96xf32>
    %c0_182 = arith.constant 0 : index
    %c0_183 = arith.constant 0 : index
    %c0_184 = arith.constant 0 : index
    %569 = vector.load %arg18[%c0_182, %c0_183, %c0_184] : memref<8x8x96xf32, #tpu.memory_space<vmem>>, vector<1x8x96xf32>
    %570 = vector.shape_cast %569 : vector<1x8x96xf32> to vector<8x96xf32>
    %571 = tpu.concatenate %548, %552 in 1 : vector<8x16xf32>, vector<8x16xf32> -> vector<8x32xf32>
    %cst_185 = arith.constant dense<0.000000e+00> : vector<8x96xf32>
    %572 = tpu.matmul %571, %13, %cst_185 {dimension_numbers = #tpu.dot_dimension_numbers<[1], [0], [0], [1], [0, 0, 1, 1], [], []>} : vector<8x32xf32>, vector<32x96xf32>, vector<8x96xf32> -> vector<8x96xf32>
    %573 = vector.broadcast %14 : vector<1x96xf32> to vector<8x96xf32>
    %574 = arith.addf %572, %573 : vector<8x96xf32>
    %575 = vector.extract_strided_slice %568 {offsets = [0, 0], sizes = [8, 16], strides = [1, 1]} : vector<8x96xf32> to vector<8x16xf32>
    %576 = vector.extract_strided_slice %574 {offsets = [0, 0], sizes = [8, 16], strides = [1, 1]} : vector<8x96xf32> to vector<8x16xf32>
    %577 = arith.addf %575, %576 : vector<8x16xf32>
    %578 = arith.negf %577 : vector<8x16xf32>
    %579 = math.exp %578 : vector<8x16xf32>
    %cst_186 = arith.constant 1.000000e+00 : f32
    %580 = vector.broadcast %cst_186 : f32 to vector<8x16xf32>
    %581 = arith.addf %580, %579 : vector<8x16xf32>
    %582 = arith.divf %580, %581 : vector<8x16xf32>
    %583 = vector.extract_strided_slice %568 {offsets = [0, 16], sizes = [8, 16], strides = [1, 1]} : vector<8x96xf32> to vector<8x16xf32>
    %584 = vector.extract_strided_slice %574 {offsets = [0, 16], sizes = [8, 16], strides = [1, 1]} : vector<8x96xf32> to vector<8x16xf32>
    %585 = arith.addf %583, %584 : vector<8x16xf32>
    %586 = arith.negf %585 : vector<8x16xf32>
    %587 = math.exp %586 : vector<8x16xf32>
    %cst_187 = arith.constant 1.000000e+00 : f32
    %588 = vector.broadcast %cst_187 : f32 to vector<8x16xf32>
    %589 = arith.addf %588, %587 : vector<8x16xf32>
    %590 = arith.divf %588, %589 : vector<8x16xf32>
    %591 = vector.extract_strided_slice %568 {offsets = [0, 32], sizes = [8, 16], strides = [1, 1]} : vector<8x96xf32> to vector<8x16xf32>
    %592 = vector.extract_strided_slice %574 {offsets = [0, 32], sizes = [8, 16], strides = [1, 1]} : vector<8x96xf32> to vector<8x16xf32>
    %593 = arith.mulf %582, %592 : vector<8x16xf32>
    %594 = arith.addf %591, %593 : vector<8x16xf32>
    %595 = math.tanh %594 : vector<8x16xf32>
    %596 = vector.extract_strided_slice %570 {offsets = [0, 48], sizes = [8, 16], strides = [1, 1]} : vector<8x96xf32> to vector<8x16xf32>
    %597 = vector.extract_strided_slice %574 {offsets = [0, 48], sizes = [8, 16], strides = [1, 1]} : vector<8x96xf32> to vector<8x16xf32>
    %598 = arith.addf %596, %597 : vector<8x16xf32>
    %599 = arith.negf %598 : vector<8x16xf32>
    %600 = math.exp %599 : vector<8x16xf32>
    %cst_188 = arith.constant 1.000000e+00 : f32
    %601 = vector.broadcast %cst_188 : f32 to vector<8x16xf32>
    %602 = arith.addf %601, %600 : vector<8x16xf32>
    %603 = arith.divf %601, %602 : vector<8x16xf32>
    %604 = vector.extract_strided_slice %570 {offsets = [0, 64], sizes = [8, 16], strides = [1, 1]} : vector<8x96xf32> to vector<8x16xf32>
    %605 = vector.extract_strided_slice %574 {offsets = [0, 64], sizes = [8, 16], strides = [1, 1]} : vector<8x96xf32> to vector<8x16xf32>
    %606 = arith.addf %604, %605 : vector<8x16xf32>
    %607 = arith.negf %606 : vector<8x16xf32>
    %608 = math.exp %607 : vector<8x16xf32>
    %cst_189 = arith.constant 1.000000e+00 : f32
    %609 = vector.broadcast %cst_189 : f32 to vector<8x16xf32>
    %610 = arith.addf %609, %608 : vector<8x16xf32>
    %611 = arith.divf %609, %610 : vector<8x16xf32>
    %612 = vector.extract_strided_slice %570 {offsets = [0, 80], sizes = [8, 16], strides = [1, 1]} : vector<8x96xf32> to vector<8x16xf32>
    %613 = vector.extract_strided_slice %574 {offsets = [0, 80], sizes = [8, 16], strides = [1, 1]} : vector<8x96xf32> to vector<8x16xf32>
    %614 = arith.mulf %603, %613 : vector<8x16xf32>
    %615 = arith.addf %612, %614 : vector<8x16xf32>
    %616 = math.tanh %615 : vector<8x16xf32>
    %617 = arith.subf %548, %595 : vector<8x16xf32>
    %618 = arith.mulf %590, %617 : vector<8x16xf32>
    %619 = arith.addf %595, %618 : vector<8x16xf32>
    %620 = arith.subf %552, %616 : vector<8x16xf32>
    %621 = arith.mulf %611, %620 : vector<8x16xf32>
    %622 = arith.addf %616, %621 : vector<8x16xf32>
    %623 = arith.subf %619, %548 : vector<8x16xf32>
    %624 = vector.broadcast %564 : vector<8x1xf32> to vector<8x16xf32>
    %625 = arith.mulf %624, %623 : vector<8x16xf32>
    %626 = arith.addf %548, %625 : vector<8x16xf32>
    %627 = arith.subf %622, %552 : vector<8x16xf32>
    %628 = vector.broadcast %566 : vector<8x1xf32> to vector<8x16xf32>
    %629 = arith.mulf %628, %627 : vector<8x16xf32>
    %630 = arith.addf %552, %629 : vector<8x16xf32>
    %631 = vector.broadcast %564 : vector<8x1xf32> to vector<8x16xf32>
    %632 = arith.mulf %631, %626 : vector<8x16xf32>
    %633 = vector.broadcast %566 : vector<8x1xf32> to vector<8x16xf32>
    %634 = arith.mulf %633, %630 : vector<8x16xf32>
    %c9_190 = arith.constant 9 : index
    %c0_191 = arith.constant 0 : index
    %c0_192 = arith.constant 0 : index
    %635 = vector.load %arg19[%c9_190, %c0_191, %c0_192] : memref<12x8x32xf32, #tpu.memory_space<vmem>>, vector<1x8x16xf32>
    %636 = vector.shape_cast %635 : vector<1x8x16xf32> to vector<8x16xf32>
    %637 = vector.shape_cast %632 : vector<8x16xf32> to vector<1x8x16xf32>
    tpu.vector_store %arg19[%c9_190, %c0_191, %c0_192], %637 {strides = array<i32>} : memref<12x8x32xf32, #tpu.memory_space<vmem>>, vector<1x8x16xf32>,
    %c2_193 = arith.constant 2 : index
    %c0_194 = arith.constant 0 : index
    %c16_195 = arith.constant 16 : index
    %638 = vector.load %arg19[%c2_193, %c0_194, %c16_195] : memref<12x8x32xf32, #tpu.memory_space<vmem>>, vector<1x8x16xf32>
    %639 = vector.shape_cast %638 : vector<1x8x16xf32> to vector<8x16xf32>
    %640 = vector.shape_cast %634 : vector<8x16xf32> to vector<1x8x16xf32>
    tpu.vector_store %arg19[%c2_193, %c0_194, %c16_195], %640 {strides = array<i32>} : memref<12x8x32xf32, #tpu.memory_space<vmem>>, vector<1x8x16xf32>,
    %c0_196 = arith.constant 0 : index
    %c0_197 = arith.constant 0 : index
    %c0_198 = arith.constant 0 : index
    %641 = vector.load %arg19[%c0_196, %c0_197, %c0_198] : memref<12x8x32xf32, #tpu.memory_space<vmem>>, vector<12x8x32xf32>
    %642 = vector.extract_strided_slice %641 {offsets = [2, 0, 0], sizes = [8, 8, 32], strides = [1, 1, 1]} : vector<12x8x32xf32> to vector<8x8x32xf32>
    %cst_199 = arith.constant dense<0.000000e+00> : vector<8x32xf32>
    %643 = vector.multi_reduction <add>, %642, %cst_199 [0] : vector<8x8x32xf32> to vector<8x32xf32>
    %c0_200 = arith.constant 0 : index
    %c0_201 = arith.constant 0 : index
    %644 = vector.load %arg3[%c0_200, %c0_201] : memref<8x1xf32, #tpu.memory_space<vmem>>, vector<8x1xf32>
    %645 = vector.broadcast %644 : vector<8x1xf32> to vector<8x32xf32>
    %646 = arith.mulf %643, %645 : vector<8x32xf32>
    %c0_202 = arith.constant 0 : index
    %c0_203 = arith.constant 0 : index
    %647 = vector.load %arg4[%c0_202, %c0_203] : memref<8x64xf32, #tpu.memory_space<vmem>>, vector<8x64xf32>
    %c0_204 = arith.constant 0 : index
    %c0_205 = arith.constant 0 : index
    %648 = vector.load %arg13[%c0_204, %c0_205] : memref<32x64xf32, #tpu.memory_space<vmem>>, vector<32x64xf32>
    %cst_206 = arith.constant dense<0.000000e+00> : vector<8x64xf32>
    %649 = tpu.matmul %646, %648, %cst_206 {dimension_numbers = #tpu.dot_dimension_numbers<[1], [0], [0], [1], [0, 0, 1, 1], [], []>} : vector<8x32xf32>, vector<32x64xf32>, vector<8x64xf32> -> vector<8x64xf32>
    %650 = arith.addf %647, %649 : vector<8x64xf32>
    %c0_207 = arith.constant 0 : index
    %c0_208 = arith.constant 0 : index
    %c0_209 = arith.constant 0 : index
    %651 = vector.load %arg9[%c0_207, %c0_208, %c0_209] : memref<2x32x8xf32, #tpu.memory_space<vmem>>, vector<2x32x8xf32>
    %c0_210 = arith.constant 0 : index
    %c0_211 = arith.constant 0 : index
    %652 = vector.load %arg10[%c0_210, %c0_211] : memref<1x8xf32, #tpu.memory_space<vmem>>, vector<1x8xf32>
    %cst_212 = arith.constant 0.000000e+00 : f32
    %653 = vector.broadcast %cst_212 : f32 to vector<72x8xf32>
    %654 = vector.extract_strided_slice %641 {offsets = [1, 0, 0], sizes = [9, 8, 32], strides = [1, 1, 1]} : vector<12x8x32xf32> to vector<9x8x32xf32>
    %655 = vector.shape_cast %654 : vector<9x8x32xf32> to vector<72x32xf32>
    %656 = vector.extract_strided_slice %651 {offsets = [0, 0, 0], sizes = [1, 32, 8], strides = [1, 1, 1]} : vector<2x32x8xf32> to vector<1x32x8xf32>
    %657 = vector.shape_cast %656 : vector<1x32x8xf32> to vector<32x8xf32>
    %cst_213 = arith.constant dense<0.000000e+00> : vector<72x8xf32>
    %658 = tpu.matmul %655, %657, %cst_213 {dimension_numbers = #tpu.dot_dimension_numbers<[1], [0], [0], [1], [0, 0, 1, 1], [], []>} : vector<72x32xf32>, vector<32x8xf32>, vector<72x8xf32> -> vector<72x8xf32>
    %659 = arith.addf %653, %658 : vector<72x8xf32>
    %660 = vector.extract_strided_slice %641 {offsets = [2, 0, 0], sizes = [9, 8, 32], strides = [1, 1, 1]} : vector<12x8x32xf32> to vector<9x8x32xf32>
    %661 = vector.shape_cast %660 : vector<9x8x32xf32> to vector<72x32xf32>
    %662 = vector.extract_strided_slice %651 {offsets = [1, 0, 0], sizes = [1, 32, 8], strides = [1, 1, 1]} : vector<2x32x8xf32> to vector<1x32x8xf32>
    %663 = vector.shape_cast %662 : vector<1x32x8xf32> to vector<32x8xf32>
    %cst_214 = arith.constant dense<0.000000e+00> : vector<72x8xf32>
    %664 = tpu.matmul %661, %663, %cst_214 {dimension_numbers = #tpu.dot_dimension_numbers<[1], [0], [0], [1], [0, 0, 1, 1], [], []>} : vector<72x32xf32>, vector<32x8xf32>, vector<72x8xf32> -> vector<72x8xf32>
    %665 = arith.addf %659, %664 : vector<72x8xf32>
    %666 = vector.broadcast %652 : vector<1x8xf32> to vector<72x8xf32>
    %667 = arith.addf %665, %666 : vector<72x8xf32>
    %cst_215 = arith.constant 0.000000e+00 : f32
    %668 = vector.broadcast %cst_215 : f32 to vector<72x8xf32>
    %669 = arith.maximumf %667, %668 : vector<72x8xf32>
    %670 = vector.shape_cast %669 : vector<72x8xf32> to vector<9x8x8xf32>
    %cst_216 = arith.constant dense<0xFF800000> : vector<8x8xf32>
    %671 = vector.multi_reduction <maximumf>, %670, %cst_216 [0] : vector<9x8x8xf32> to vector<8x8xf32>
    %c0_217 = arith.constant 0 : index
    %c0_218 = arith.constant 0 : index
    %672 = vector.load %arg14[%c0_217, %c0_218] : memref<8x64xf32, #tpu.memory_space<vmem>>, vector<8x64xf32>
    %cst_219 = arith.constant dense<0.000000e+00> : vector<8x64xf32>
    %673 = tpu.matmul %671, %672, %cst_219 {dimension_numbers = #tpu.dot_dimension_numbers<[1], [0], [0], [1], [0, 0, 1, 1], [], []>} : vector<8x8xf32>, vector<8x64xf32>, vector<8x64xf32> -> vector<8x64xf32>
    %674 = arith.addf %650, %673 : vector<8x64xf32>
    %c0_220 = arith.constant 0 : index
    %c0_221 = arith.constant 0 : index
    %c0_222 = arith.constant 0 : index
    %675 = vector.load %arg11[%c0_220, %c0_221, %c0_222] : memref<3x32x8xf32, #tpu.memory_space<vmem>>, vector<3x32x8xf32>
    %c0_223 = arith.constant 0 : index
    %c0_224 = arith.constant 0 : index
    %676 = vector.load %arg12[%c0_223, %c0_224] : memref<1x8xf32, #tpu.memory_space<vmem>>, vector<1x8xf32>
    %cst_225 = arith.constant 0.000000e+00 : f32
    %677 = vector.broadcast %cst_225 : f32 to vector<80x8xf32>
    %678 = vector.extract_strided_slice %641 {offsets = [0, 0, 0], sizes = [10, 8, 32], strides = [1, 1, 1]} : vector<12x8x32xf32> to vector<10x8x32xf32>
    %679 = vector.shape_cast %678 : vector<10x8x32xf32> to vector<80x32xf32>
    %680 = vector.extract_strided_slice %675 {offsets = [0, 0, 0], sizes = [1, 32, 8], strides = [1, 1, 1]} : vector<3x32x8xf32> to vector<1x32x8xf32>
    %681 = vector.shape_cast %680 : vector<1x32x8xf32> to vector<32x8xf32>
    %cst_226 = arith.constant dense<0.000000e+00> : vector<80x8xf32>
    %682 = tpu.matmul %679, %681, %cst_226 {dimension_numbers = #tpu.dot_dimension_numbers<[1], [0], [0], [1], [0, 0, 1, 1], [], []>} : vector<80x32xf32>, vector<32x8xf32>, vector<80x8xf32> -> vector<80x8xf32>
    %683 = arith.addf %677, %682 : vector<80x8xf32>
    %684 = vector.extract_strided_slice %641 {offsets = [1, 0, 0], sizes = [10, 8, 32], strides = [1, 1, 1]} : vector<12x8x32xf32> to vector<10x8x32xf32>
    %685 = vector.shape_cast %684 : vector<10x8x32xf32> to vector<80x32xf32>
    %686 = vector.extract_strided_slice %675 {offsets = [1, 0, 0], sizes = [1, 32, 8], strides = [1, 1, 1]} : vector<3x32x8xf32> to vector<1x32x8xf32>
    %687 = vector.shape_cast %686 : vector<1x32x8xf32> to vector<32x8xf32>
    %cst_227 = arith.constant dense<0.000000e+00> : vector<80x8xf32>
    %688 = tpu.matmul %685, %687, %cst_227 {dimension_numbers = #tpu.dot_dimension_numbers<[1], [0], [0], [1], [0, 0, 1, 1], [], []>} : vector<80x32xf32>, vector<32x8xf32>, vector<80x8xf32> -> vector<80x8xf32>
    %689 = arith.addf %683, %688 : vector<80x8xf32>
    %690 = vector.extract_strided_slice %641 {offsets = [2, 0, 0], sizes = [10, 8, 32], strides = [1, 1, 1]} : vector<12x8x32xf32> to vector<10x8x32xf32>
    %691 = vector.shape_cast %690 : vector<10x8x32xf32> to vector<80x32xf32>
    %692 = vector.extract_strided_slice %675 {offsets = [2, 0, 0], sizes = [1, 32, 8], strides = [1, 1, 1]} : vector<3x32x8xf32> to vector<1x32x8xf32>
    %693 = vector.shape_cast %692 : vector<1x32x8xf32> to vector<32x8xf32>
    %cst_228 = arith.constant dense<0.000000e+00> : vector<80x8xf32>
    %694 = tpu.matmul %691, %693, %cst_228 {dimension_numbers = #tpu.dot_dimension_numbers<[1], [0], [0], [1], [0, 0, 1, 1], [], []>} : vector<80x32xf32>, vector<32x8xf32>, vector<80x8xf32> -> vector<80x8xf32>
    %695 = arith.addf %689, %694 : vector<80x8xf32>
    %696 = vector.broadcast %676 : vector<1x8xf32> to vector<80x8xf32>
    %697 = arith.addf %695, %696 : vector<80x8xf32>
    %cst_229 = arith.constant 0.000000e+00 : f32
    %698 = vector.broadcast %cst_229 : f32 to vector<80x8xf32>
    %699 = arith.maximumf %697, %698 : vector<80x8xf32>
    %700 = vector.shape_cast %699 : vector<80x8xf32> to vector<10x8x8xf32>
    %cst_230 = arith.constant dense<0xFF800000> : vector<8x8xf32>
    %701 = vector.multi_reduction <maximumf>, %700, %cst_230 [0] : vector<10x8x8xf32> to vector<8x8xf32>
    %c0_231 = arith.constant 0 : index
    %c0_232 = arith.constant 0 : index
    %702 = vector.load %arg15[%c0_231, %c0_232] : memref<8x64xf32, #tpu.memory_space<vmem>>, vector<8x64xf32>
    %cst_233 = arith.constant dense<0.000000e+00> : vector<8x64xf32>
    %703 = tpu.matmul %701, %702, %cst_233 {dimension_numbers = #tpu.dot_dimension_numbers<[1], [0], [0], [1], [0, 0, 1, 1], [], []>} : vector<8x8xf32>, vector<8x64xf32>, vector<8x64xf32> -> vector<8x64xf32>
    %704 = arith.addf %674, %703 : vector<8x64xf32>
    %c0_234 = arith.constant 0 : index
    %c0_235 = arith.constant 0 : index
    %705 = vector.load %arg16[%c0_234, %c0_235] : memref<1x64xf32, #tpu.memory_space<vmem>>, vector<1x64xf32>
    %706 = vector.broadcast %705 : vector<1x64xf32> to vector<8x64xf32>
    %707 = arith.addf %704, %706 : vector<8x64xf32>
    %cst_236 = arith.constant 0.000000e+00 : f32
    %708 = vector.broadcast %cst_236 : f32 to vector<8x64xf32>
    %709 = arith.maximumf %707, %708 : vector<8x64xf32>
    %710 = arith.mulf %709, %709 : vector<8x64xf32>
    %cst_237 = arith.constant dense<0.000000e+00> : vector<8xf32>
    %711 = vector.multi_reduction <add>, %710, %cst_237 [1] : vector<8x64xf32> to vector<8xf32>
    %712 = vector.shape_cast %711 : vector<8xf32> to vector<8x1xf32>
    %cst_238 = arith.constant 9.99999996E-13 : f32
    %713 = vector.broadcast %cst_238 : f32 to vector<8x1xf32>
    %714 = arith.addf %712, %713 : vector<8x1xf32>
    %715 = math.rsqrt %714 : vector<8x1xf32>
    %716 = vector.broadcast %715 : vector<8x1xf32> to vector<8x64xf32>
    %717 = arith.mulf %709, %716 : vector<8x64xf32>
    %c0_239 = arith.constant 0 : index
    %c0_240 = arith.constant 0 : index
    %718 = vector.load %arg17[%c0_239, %c0_240] : memref<8x64xf32, #tpu.memory_space<vmem>>, vector<8x64xf32>
    tpu.vector_store %arg17[%c0_239, %c0_240], %717 {strides = array<i32>} : memref<8x64xf32, #tpu.memory_space<vmem>>, vector<8x64xf32>,
    return
  }
  func.func @transform_0(%arg0: i32) -> (i32, i32, i32) {
    %c0_i32 = arith.constant 0 : i32
    %c0_i32_0 = arith.constant 0 : i32
    %c0_i32_1 = arith.constant 0 : i32
    return %c0_i32, %arg0, %c0_i32_0 : i32, i32, i32
  }
  func.func @transform_1(%arg0: i32) -> (i32, i32, i32) {
    %c0_i32 = arith.constant 0 : i32
    %c0_i32_0 = arith.constant 0 : i32
    %c0_i32_1 = arith.constant 0 : i32
    return %c0_i32, %arg0, %c0_i32_0 : i32, i32, i32
  }
  func.func @transform_2(%arg0: i32) -> (i32, i32) {
    %c0_i32 = arith.constant 0 : i32
    %c0_i32_0 = arith.constant 0 : i32
    return %arg0, %c0_i32 : i32, i32
  }
  func.func @transform_3(%arg0: i32) -> (i32, i32) {
    %c0_i32 = arith.constant 0 : i32
    %c0_i32_0 = arith.constant 0 : i32
    return %arg0, %c0_i32 : i32, i32
  }
  func.func @transform_4(%arg0: i32) -> (i32, i32) {
    %c0_i32 = arith.constant 0 : i32
    %c0_i32_0 = arith.constant 0 : i32
    %c0_i32_1 = arith.constant 0 : i32
    return %c0_i32, %c0_i32_0 : i32, i32
  }
  func.func @transform_5(%arg0: i32) -> (i32, i32) {
    %c0_i32 = arith.constant 0 : i32
    %c0_i32_0 = arith.constant 0 : i32
    %c0_i32_1 = arith.constant 0 : i32
    return %c0_i32, %c0_i32_0 : i32, i32
  }
  func.func @transform_6(%arg0: i32) -> (i32, i32) {
    %c0_i32 = arith.constant 0 : i32
    %c0_i32_0 = arith.constant 0 : i32
    %c0_i32_1 = arith.constant 0 : i32
    return %c0_i32, %c0_i32_0 : i32, i32
  }
  func.func @transform_7(%arg0: i32) -> (i32, i32) {
    %c0_i32 = arith.constant 0 : i32
    %c0_i32_0 = arith.constant 0 : i32
    %c0_i32_1 = arith.constant 0 : i32
    return %c0_i32, %c0_i32_0 : i32, i32
  }
  func.func @transform_8(%arg0: i32) -> (i32, i32, i32) {
    %c0_i32 = arith.constant 0 : i32
    %c0_i32_0 = arith.constant 0 : i32
    %c0_i32_1 = arith.constant 0 : i32
    %c0_i32_2 = arith.constant 0 : i32
    return %c0_i32, %c0_i32_0, %c0_i32_1 : i32, i32, i32
  }
  func.func @transform_9(%arg0: i32) -> (i32, i32) {
    %c0_i32 = arith.constant 0 : i32
    %c0_i32_0 = arith.constant 0 : i32
    %c0_i32_1 = arith.constant 0 : i32
    return %c0_i32, %c0_i32_0 : i32, i32
  }
  func.func @transform_10(%arg0: i32) -> (i32, i32, i32) {
    %c0_i32 = arith.constant 0 : i32
    %c0_i32_0 = arith.constant 0 : i32
    %c0_i32_1 = arith.constant 0 : i32
    %c0_i32_2 = arith.constant 0 : i32
    return %c0_i32, %c0_i32_0, %c0_i32_1 : i32, i32, i32
  }
  func.func @transform_11(%arg0: i32) -> (i32, i32) {
    %c0_i32 = arith.constant 0 : i32
    %c0_i32_0 = arith.constant 0 : i32
    %c0_i32_1 = arith.constant 0 : i32
    return %c0_i32, %c0_i32_0 : i32, i32
  }
  func.func @transform_12(%arg0: i32) -> (i32, i32) {
    %c0_i32 = arith.constant 0 : i32
    %c0_i32_0 = arith.constant 0 : i32
    %c0_i32_1 = arith.constant 0 : i32
    return %c0_i32, %c0_i32_0 : i32, i32
  }
  func.func @transform_13(%arg0: i32) -> (i32, i32) {
    %c0_i32 = arith.constant 0 : i32
    %c0_i32_0 = arith.constant 0 : i32
    %c0_i32_1 = arith.constant 0 : i32
    return %c0_i32, %c0_i32_0 : i32, i32
  }
  func.func @transform_14(%arg0: i32) -> (i32, i32) {
    %c0_i32 = arith.constant 0 : i32
    %c0_i32_0 = arith.constant 0 : i32
    %c0_i32_1 = arith.constant 0 : i32
    return %c0_i32, %c0_i32_0 : i32, i32
  }
  func.func @transform_15(%arg0: i32) -> (i32, i32) {
    %c0_i32 = arith.constant 0 : i32
    %c0_i32_0 = arith.constant 0 : i32
    %c0_i32_1 = arith.constant 0 : i32
    return %c0_i32, %c0_i32_0 : i32, i32
  }
  func.func @transform_16(%arg0: i32) -> (i32, i32) {
    %c0_i32 = arith.constant 0 : i32
    %c0_i32_0 = arith.constant 0 : i32
    return %arg0, %c0_i32 : i32, i32
  }
}

</mosaic_0001>

<llo_original>
// kernel: tpu_custom_call.1
$region0: #{tpu_custom_call.1}
  #allocation0 [shape = 'u32[]', space=smem, size = 0x4, offset = 0x4, fixed_abs, tag = 'smem constant byte address 0x4 - core index']
  #allocation1 [shape = 'u32[144,128]{1,0:T(1,128)}', space=vmem, size = 0x12000, scoped, tag = 'internal scratch']
  #allocation2 [shape = 'f32[8,8,96]{2,1,0:T(8,128)}', space=vmem, size = 0x8000, scoped, tag = 'scratch operand']
  #allocation3 [shape = 'f32[12,8,32]{2,1,0:T(8,128)}', space=vmem, size = 0xc000, scoped, tag = 'scratch operand']
  %s0 = inlined_call_operand.vmem [shape: f32[8,8,32], index: 0, kind: input, shape index: {}]
  %s1 = inlined_call_operand.vmem [shape: f32[8,8,1], index: 1, kind: input, shape index: {}]
  %s2 = inlined_call_operand.vmem [shape: f32[8,1], index: 2, kind: input, shape index: {}]
  %s3 = inlined_call_operand.vmem [shape: f32[8,64], index: 3, kind: input, shape index: {}]
  %s4 = inlined_call_operand.vmem [shape: f32[32,96], index: 4, kind: input, shape index: {}]
  %s5 = inlined_call_operand.vmem [shape: f32[1,96], index: 5, kind: input, shape index: {}]
  %s6 = inlined_call_operand.vmem [shape: f32[32,96], index: 6, kind: input, shape index: {}]
  %s7 = inlined_call_operand.vmem [shape: f32[1,96], index: 7, kind: input, shape index: {}]
  %s8 = inlined_call_operand.vmem [shape: f32[2,32,8], index: 8, kind: input, shape index: {}]
  %s9 = inlined_call_operand.vmem [shape: f32[1,8], index: 9, kind: input, shape index: {}]
  %s10 = inlined_call_operand.vmem [shape: f32[3,32,8], index: 10, kind: input, shape index: {}]
  %s11 = inlined_call_operand.vmem [shape: f32[1,8], index: 11, kind: input, shape index: {}]
  %s12 = inlined_call_operand.vmem [shape: f32[32,64], index: 12, kind: input, shape index: {}]
  %s13 = inlined_call_operand.vmem [shape: f32[8,64], index: 13, kind: input, shape index: {}]
  %s14 = inlined_call_operand.vmem [shape: f32[8,64], index: 14, kind: input, shape index: {}]
  %s15 = inlined_call_operand.vmem [shape: f32[1,64], index: 15, kind: input, shape index: {}]
  %s16 = inlined_call_operand.hbm [shape: f32[8,64], index: 16, kind: output, shape index: {}]
  %s17 = sld [smem:[#allocation0]]
  $region74: #{tpu_custom_call.1} parent=0
    _
  %s19 = ssub.s32 1, %s17
  %s20 = scalar_select 0, %s19, %s17
  $region1: #{tpu_custom_call.1} parent=0
    #allocation4 [shape = 'u8[4096]{0}', space=vmem, size = 0x1000, scoped, tag = 'output window, operand 0, single buffered']
    #allocation5 [shape = 's32[1]{0}', space=sflag, size = 0x4, scoped, tag = 'scoped memory for tpu_custom_call.1']
    %21 = vsyncpa [#allocation5], 0
    // Predicated region
    $region2: #{tpu_custom_call.1} parent=1 // pred_check
      _
    $region3: #{tpu_custom_call.1} parent=1 // pred_check_branch
      %23 = sbr.rel (0) target = $region5
    $region4: #{tpu_custom_call.1} parent=1 // pred_region
      _
    $region5: #{tpu_custom_call.1} parent=1 // pred_fallthru
      _
    // Predicated region
    $region6: #{tpu_custom_call.1} parent=1 // pred_check
      _
    $region7: #{tpu_custom_call.1} parent=1 // pred_check_branch
      %25 = sbr.rel (0) target = $region9
    $region8: #{tpu_custom_call.1} parent=1 // pred_region
      _
    $region9: #{tpu_custom_call.1} parent=1 // pred_fallthru
      _
    // Predicated region
    $region10: #{tpu_custom_call.1} parent=1 // pred_check
      _
    $region11: #{tpu_custom_call.1} parent=1 // pred_check_branch
      %27 = sbr.rel (0) target = $region13
    $region12: #{tpu_custom_call.1} parent=1 // pred_region
      _
    $region13: #{tpu_custom_call.1} parent=1 // pred_fallthru
      _
    // Predicated region
    $region14: #{tpu_custom_call.1} parent=1 // pred_check
      _
    $region15: #{tpu_custom_call.1} parent=1 // pred_check_branch
      %29 = sbr.rel (0) target = $region17
    $region16: #{tpu_custom_call.1} parent=1 // pred_region
      _
    $region17: #{tpu_custom_call.1} parent=1 // pred_fallthru
      _
    // Predicated region
    $region18: #{tpu_custom_call.1} parent=1 // pred_check
      _
    $region19: #{tpu_custom_call.1} parent=1 // pred_check_branch
      %31 = sbr.rel (0) target = $region21
    $region20: #{tpu_custom_call.1} parent=1 // pred_region
      _
    $region21: #{tpu_custom_call.1} parent=1 // pred_fallthru
      _
    // Predicated region
    $region22: #{tpu_custom_call.1} parent=1 // pred_check
      _
    $region23: #{tpu_custom_call.1} parent=1 // pred_check_branch
      %33 = sbr.rel (0) target = $region25
    $region24: #{tpu_custom_call.1} parent=1 // pred_region
      _
    $region25: #{tpu_custom_call.1} parent=1 // pred_fallthru
      _
    // Predicated region
    $region26: #{tpu_custom_call.1} parent=1 // pred_check
      _
    $region27: #{tpu_custom_call.1} parent=1 // pred_check_branch
      %35 = sbr.rel (0) target = $region29
    $region28: #{tpu_custom_call.1} parent=1 // pred_region
      _
    $region29: #{tpu_custom_call.1} parent=1 // pred_fallthru
      _
    // Predicated region
    $region30: #{tpu_custom_call.1} parent=1 // pred_check
      _
    $region31: #{tpu_custom_call.1} parent=1 // pred_check_branch
      %37 = sbr.rel (0) target = $region33
    $region32: #{tpu_custom_call.1} parent=1 // pred_region
      _
    $region33: #{tpu_custom_call.1} parent=1 // pred_fallthru
      _
    // Predicated region
    $region34: #{tpu_custom_call.1} parent=1 // pred_check
      _
    $region35: #{tpu_custom_call.1} parent=1 // pred_check_branch
      %39 = sbr.rel (0) target = $region37
    $region36: #{tpu_custom_call.1} parent=1 // pred_region
      _
    $region37: #{tpu_custom_call.1} parent=1 // pred_fallthru
      _
    // Predicated region
    $region38: #{tpu_custom_call.1} parent=1 // pred_check
      _
    $region39: #{tpu_custom_call.1} parent=1 // pred_check_branch
      %41 = sbr.rel (0) target = $region41
    $region40: #{tpu_custom_call.1} parent=1 // pred_region
      _
    $region41: #{tpu_custom_call.1} parent=1 // pred_fallthru
      _
    // Predicated region
    $region42: #{tpu_custom_call.1} parent=1 // pred_check
      _
    $region43: #{tpu_custom_call.1} parent=1 // pred_check_branch
      %43 = sbr.rel (0) target = $region45
    $region44: #{tpu_custom_call.1} parent=1 // pred_region
      _
    $region45: #{tpu_custom_call.1} parent=1 // pred_fallthru
      _
    // Predicated region
    $region46: #{tpu_custom_call.1} parent=1 // pred_check
      _
    $region47: #{tpu_custom_call.1} parent=1 // pred_check_branch
      %45 = sbr.rel (0) target = $region49
    $region48: #{tpu_custom_call.1} parent=1 // pred_region
      _
    $region49: #{tpu_custom_call.1} parent=1 // pred_fallthru
      _
    // Predicated region
    $region50: #{tpu_custom_call.1} parent=1 // pred_check
      _
    $region51: #{tpu_custom_call.1} parent=1 // pred_check_branch
      %47 = sbr.rel (0) target = $region53
    $region52: #{tpu_custom_call.1} parent=1 // pred_region
      _
    $region53: #{tpu_custom_call.1} parent=1 // pred_fallthru
      _
    // Predicated region
    $region54: #{tpu_custom_call.1} parent=1 // pred_check
      _
    $region55: #{tpu_custom_call.1} parent=1 // pred_check_branch
      %49 = sbr.rel (0) target = $region57
    $region56: #{tpu_custom_call.1} parent=1 // pred_region
      _
    $region57: #{tpu_custom_call.1} parent=1 // pred_fallthru
      _
    // Predicated region
    $region58: #{tpu_custom_call.1} parent=1 // pred_check
      _
    $region59: #{tpu_custom_call.1} parent=1 // pred_check_branch
      %51 = sbr.rel (0) target = $region61
    $region60: #{tpu_custom_call.1} parent=1 // pred_region
      _
    $region61: #{tpu_custom_call.1} parent=1 // pred_fallthru
      _
    // Predicated region
    $region62: #{tpu_custom_call.1} parent=1 // pred_check
      _
    $region63: #{tpu_custom_call.1} parent=1 // pred_check_branch
      %53 = sbr.rel (0) target = $region65
    $region64: #{tpu_custom_call.1} parent=1 // pred_region
      _
    $region65: #{tpu_custom_call.1} parent=1 // pred_fallthru
      _
    %v54 = vld [vmem:[%s0] sm:$0xff]
    %v55 = vld [vmem:[%s0 + $0x8] sm:$0xff]
    %v56 = vld [vmem:[%s0 + $0x10] sm:$0xff]
    %v57 = vld [vmem:[%s0 + $0x18] sm:$0xff]
    %v58 = vld [vmem:[%s0 + $0x20] sm:$0xff]
    %v59 = vld [vmem:[%s0 + $0x28] sm:$0xff]
    %v60 = vld [vmem:[%s0 + $0x30] sm:$0xff]
    %v61 = vld [vmem:[%s0 + $0x38] sm:$0xff]
    %v62 = vld [vmem:[%s4] sm:$0xff]
    %v63 = vld [vmem:[%s4 + $0x8] sm:$0xff]
    %v64 = vld [vmem:[%s4 + $0x10] sm:$0xff]
    %v65 = vld [vmem:[%s4 + $0x18] sm:$0xff]
    %v66 = vld [vmem:[%s5] sm:$0x1]
    %v68 = vlaneseq
    %v69 = vshrl.u32 %v68, 7
    %v70 = vsub.s32 0, %v69
    %v71 = vrot.slane %v66, %v70
    %vm73 = vcmask 261120
    %v75 = vsel %vm73, %v54, 0
    %v78 = vsel %vm73, %v55, 0
    %v81 = vsel %vm73, %v56, 0
    %v84 = vsel %vm73, %v57, 0
    %v87 = vsel %vm73, %v58, 0
    %v90 = vsel %vm73, %v59, 0
    %v93 = vsel %vm73, %v60, 0
    %v96 = vsel %vm73, %v61, 0
    %98 = vmatprep.subr.mxu0 0.0
    %99 = vmatpush1.msra.mxu0 0.0
    %100 = vmatprep.subr.mxu0 0.0
    %101 = vmatpush1.msra.mxu0 0.0
    %102 = vmatprep.subr.mxu0 0.0
    %103 = vmatpush1.msra.mxu0 0.0
    %104 = vmatprep.subr.mxu0 0.0
    %105 = vmatpush1.msra.mxu0 0.0
    %106 = vmatprep.subr.mxu0 0.0
    %107 = vmatpush1.msra.mxu0 0.0
    %108 = vmatprep.subr.mxu0 0.0
    %109 = vmatpush1.msra.mxu0 0.0
    %110 = vmatprep.subr.mxu0 0.0
    %111 = vmatpush1.msra.mxu0 0.0
    %112 = vmatprep.subr.mxu0 0.0
    %113 = vmatpush1.msra.mxu0 0.0
    %114 = vmatprep.subr.mxu0 0.0
    %115 = vmatpush1.msra.mxu0 0.0
    %116 = vmatprep.subr.mxu0 0.0
    %117 = vmatpush1.msra.mxu0 0.0
    %118 = vmatprep.subr.mxu0 0.0
    %119 = vmatpush1.msra.mxu0 0.0
    %120 = vmatprep.subr.mxu0 0.0
    %121 = vmatpush1.msra.mxu0 0.0
    %122 = vmatprep.subr.mxu0 0.0
    %123 = vmatpush1.msra.mxu0 %v65
    %124 = vmatprep.subr.mxu0 0.0
    %125 = vmatpush1.msra.mxu0 %v64
    %126 = vmatprep.subr.mxu0 0.0
    %127 = vmatpush1.msra.mxu0 %v63
    %128 = vmatprep.subr.mxu0 0.0
    %129 = vmatpush1.msra.mxu0 %v62
    %130 = vmatprep.subr.mxu0 0.0
    %131 = vmatpush2.msra.mxu0 0.0
    %132 = vmatprep.subr.mxu0 0.0
    %133 = vmatpush2.msra.mxu0 0.0
    %134 = vmatprep.subr.mxu0 0.0
    %135 = vmatpush2.msra.mxu0 0.0
    %136 = vmatprep.subr.mxu0 0.0
    %137 = vmatpush2.msra.mxu0 0.0
    %138 = vmatprep.subr.mxu0 0.0
    %139 = vmatpush2.msra.mxu0 0.0
    %140 = vmatprep.subr.mxu0 0.0
    %141 = vmatpush2.msra.mxu0 0.0
    %142 = vmatprep.subr.mxu0 0.0
    %143 = vmatpush2.msra.mxu0 0.0
    %144 = vmatprep.subr.mxu0 0.0
    %145 = vmatpush2.msra.mxu0 0.0
    %146 = vmatprep.subr.mxu0 0.0
    %147 = vmatpush2.msra.mxu0 0.0
    %148 = vmatprep.subr.mxu0 0.0
    %149 = vmatpush2.msra.mxu0 0.0
    %150 = vmatprep.subr.mxu0 0.0
    %151 = vmatpush2.msra.mxu0 0.0
    %152 = vmatprep.subr.mxu0 0.0
    %153 = vmatpush2.msra.mxu0 0.0
    %154 = vmatprep.subr.mxu0 0.0
    %155 = vmatpush2.msra.mxu0 0.0
    %156 = vmatprep.subr.mxu0 0.0
    %157 = vmatpush2.msra.mxu0 0.0
    %158 = vmatprep.subr.mxu0 0.0
    %159 = vmatpush2.msra.mxu0 0.0
    %160 = vmatprep.subr.mxu0 0.0
    %161 = vmatpush2.msra.mxu0 0.0
    %162 = vmatprep.mubr.f32.mxu0 0.0
    %163 = vmatmul.mubr.f32.gmra.mxu0 %v75
    %v164 = vpop.f32.mrf.mxu0
    %v165 = vadd.f32 %v71, %v164
    %v166 = vpop.f32.mrf.mxu0
    %167 = vmatprep.mubr.f32.mxu0 0.0
    %168 = vmatmul.mubr.f32.gmra.mxu0 %v78
    %v169 = vpop.f32.mrf.mxu0
    %v170 = vadd.f32 %v71, %v169
    %v171 = vpop.f32.mrf.mxu0
    %172 = vmatprep.mubr.f32.mxu0 0.0
    %173 = vmatmul.mubr.f32.gmra.mxu0 %v81
    %v174 = vpop.f32.mrf.mxu0
    %v175 = vadd.f32 %v71, %v174
    %v176 = vpop.f32.mrf.mxu0
    %177 = vmatprep.mubr.f32.mxu0 0.0
    %178 = vmatmul.mubr.f32.gmra.mxu0 %v84
    %v179 = vpop.f32.mrf.mxu0
    %v180 = vadd.f32 %v71, %v179
    %v181 = vpop.f32.mrf.mxu0
    %182 = vmatprep.mubr.f32.mxu0 0.0
    %183 = vmatmul.mubr.f32.gmra.mxu0 %v87
    %v184 = vpop.f32.mrf.mxu0
    %v185 = vadd.f32 %v71, %v184
    %v186 = vpop.f32.mrf.mxu0
    %187 = vmatprep.mubr.f32.mxu0 0.0
    %188 = vmatmul.mubr.f32.gmra.mxu0 %v90
    %v189 = vpop.f32.mrf.mxu0
    %v190 = vadd.f32 %v71, %v189
    %v191 = vpop.f32.mrf.mxu0
    %192 = vmatprep.mubr.f32.mxu0 0.0
    %193 = vmatmul.mubr.f32.gmra.mxu0 %v93
    %v194 = vpop.f32.mrf.mxu0
    %v195 = vadd.f32 %v71, %v194
    %v196 = vpop.f32.mrf.mxu0
    %197 = vmatprep.mubr.f32.mxu0 0.0
    %198 = vmatmul.mubr.f32.gmra.mxu0 %v96
    %v199 = vpop.f32.mrf.mxu0
    %v200 = vadd.f32 %v71, %v199
    %v201 = vpop.f32.mrf.mxu0
    %202 = vdwg.mxu0
    %vm203 = vcmask 785408
    %204 = vst.msk [vmem:[#allocation2] sm:$0xff] %vm203, %v165
    %205 = vst.msk [vmem:[#allocation2 + $0x8] sm:$0xff] %vm203, %v170
    %206 = vst.msk [vmem:[#allocation2 + $0x10] sm:$0xff] %vm203, %v175
    %207 = vst.msk [vmem:[#allocation2 + $0x18] sm:$0xff] %vm203, %v180
    %208 = vst.msk [vmem:[#allocation2 + $0x20] sm:$0xff] %vm203, %v185
    %209 = vst.msk [vmem:[#allocation2 + $0x28] sm:$0xff] %vm203, %v190
    %210 = vst.msk [vmem:[#allocation2 + $0x30] sm:$0xff] %vm203, %v195
    %211 = vst.msk [vmem:[#allocation2 + $0x38] sm:$0xff] %vm203, %v200
    %212 = vst.msk [vmem:[#allocation3] sm:$0xff] %vm73, 0.0
    %213 = vst.msk [vmem:[#allocation3 + $0x8] sm:$0xff] %vm73, 0.0
    %s214 = scalar_lea.vmem [#allocation3], 80
    %215 = vst.msk [vmem:[%s214] sm:$0xff] %vm73, 0.0
    %216 = vst.msk [vmem:[%s214 + $0x8] sm:$0xff] %vm73, 0.0
    %v217 = vld [vmem:[%s6] sm:$0xff]
    %v218 = vld [vmem:[%s6 + $0x8] sm:$0xff]
    %v219 = vld [vmem:[%s6 + $0x10] sm:$0xff]
    %v220 = vld [vmem:[%s6 + $0x18] sm:$0xff]
    %v221 = vld [vmem:[%s7] sm:$0x1]
    %v222 = vld [vmem:[%s1] sm:$0xff]
    %s223 = scalar_lea.vmem %s1, 56
    %v224 = vld [vmem:[%s223] sm:$0xff]
    %v225 = vld [vmem:[#allocation2] sm:$0xff]
    %s226 = scalar_lea.vmem [#allocation2], 56
    %v227 = vld [vmem:[%s226] sm:$0xff]
    %v229 = vlaneseq
    %v230 = vshrl.u32 %v229, 7
    %v231 = vsub.s32 0, %v230
    %v232 = vrot.slane %v221, %v231
    %v235 = vsel %vm73, 0.0, 0
    %237 = vmatprep.subr.mxu0 0.0
    %238 = vmatpush1.msra.mxu0 0.0
    %239 = vmatprep.subr.mxu0 0.0
    %240 = vmatpush1.msra.mxu0 0.0
    %241 = vmatprep.subr.mxu0 0.0
    %242 = vmatpush1.msra.mxu0 0.0
    %243 = vmatprep.subr.mxu0 0.0
    %244 = vmatpush1.msra.mxu0 0.0
    %245 = vmatprep.subr.mxu0 0.0
    %246 = vmatpush1.msra.mxu0 0.0
    %247 = vmatprep.subr.mxu0 0.0
    %248 = vmatpush1.msra.mxu0 0.0
    %249 = vmatprep.subr.mxu0 0.0
    %250 = vmatpush1.msra.mxu0 0.0
    %251 = vmatprep.subr.mxu0 0.0
    %252 = vmatpush1.msra.mxu0 0.0
    %253 = vmatprep.subr.mxu0 0.0
    %254 = vmatpush1.msra.mxu0 0.0
    %255 = vmatprep.subr.mxu0 0.0
    %256 = vmatpush1.msra.mxu0 0.0
    %257 = vmatprep.subr.mxu0 0.0
    %258 = vmatpush1.msra.mxu0 0.0
    %259 = vmatprep.subr.mxu0 0.0
    %260 = vmatpush1.msra.mxu0 0.0
    %261 = vmatprep.subr.mxu0 0.0
    %262 = vmatpush1.msra.mxu0 %v220
    %263 = vmatprep.subr.mxu0 0.0
    %264 = vmatpush1.msra.mxu0 %v219
    %265 = vmatprep.subr.mxu0 0.0
    %266 = vmatpush1.msra.mxu0 %v218
    %267 = vmatprep.subr.mxu0 0.0
    %268 = vmatpush1.msra.mxu0 %v217
    %269 = vmatprep.subr.mxu0 0.0
    %270 = vmatpush2.msra.mxu0 0.0
    %271 = vmatprep.subr.mxu0 0.0
    %272 = vmatpush2.msra.mxu0 0.0
    %273 = vmatprep.subr.mxu0 0.0
    %274 = vmatpush2.msra.mxu0 0.0
    %275 = vmatprep.subr.mxu0 0.0
    %276 = vmatpush2.msra.mxu0 0.0
    %277 = vmatprep.subr.mxu0 0.0
    %278 = vmatpush2.msra.mxu0 0.0
    %279 = vmatprep.subr.mxu0 0.0
    %280 = vmatpush2.msra.mxu0 0.0
    %281 = vmatprep.subr.mxu0 0.0
    %282 = vmatpush2.msra.mxu0 0.0
    %283 = vmatprep.subr.mxu0 0.0
    %284 = vmatpush2.msra.mxu0 0.0
    %285 = vmatprep.subr.mxu0 0.0
    %286 = vmatpush2.msra.mxu0 0.0
    %287 = vmatprep.subr.mxu0 0.0
    %288 = vmatpush2.msra.mxu0 0.0
    %289 = vmatprep.subr.mxu0 0.0
    %290 = vmatpush2.msra.mxu0 0.0
    %291 = vmatprep.subr.mxu0 0.0
    %292 = vmatpush2.msra.mxu0 0.0
    %293 = vmatprep.subr.mxu0 0.0
    %294 = vmatpush2.msra.mxu0 0.0
    %295 = vmatprep.subr.mxu0 0.0
    %296 = vmatpush2.msra.mxu0 0.0
    %297 = vmatprep.subr.mxu0 0.0
    %298 = vmatpush2.msra.mxu0 0.0
    %299 = vmatprep.subr.mxu0 0.0
    %300 = vmatpush2.msra.mxu0 0.0
    %301 = vmatprep.mubr.f32.mxu0 0.0
    %302 = vmatmul.mubr.f32.gmra.mxu0 %v235
    %v303 = vpop.f32.mrf.mxu0
    %v304 = vadd.f32 %v232, %v303
    %v305 = vpop.f32.mrf.mxu0
    %306 = vdwg.mxu0
    %v307 = vadd.f32 %v225, %v304
    %v308 = vxor.u32 %v307, 2147483648
    %v309 = vmul.f32 %v308, 1.442695
    %v310 = vpow.pop %v309
    %v311 = vadd.f32 %v310, 1.0
    %v312 = vrcp.pop %v311
    %v313 = vmul.f32 1.0, %v312
    %315 = vrot.lane.b32.xlu0 %v304, 96
    %v316 = vpop.permute.xlu0 %315
    %v318 = vmul.f32 %v313, %v316
    %320 = vrot.lane.b32.xlu0 %v318, 32
    %v321 = vpop.permute.xlu0 %320
    %v323 = vadd.f32 %v225, %v321
    %v324 = vtanh.pop %v323
    %v325 = vadd.f32 %v227, %v304
    %v326 = vxor.u32 %v325, 2147483648
    %v327 = vmul.f32 %v326, 1.442695
    %v328 = vpow.pop %v327
    %v329 = vadd.f32 %v328, 1.0
    %v330 = vrcp.pop %v329
    %v331 = vmul.f32 1.0, %v330
    %v332 = vmul.f32 %v331, %v316
    %334 = vrot.lane.b32.xlu0 %v332, 32
    %v335 = vpop.permute.xlu0 %334
    %v337 = vadd.f32 %v227, %v335
    %v338 = vtanh.pop %v337
    %v339 = vsub.f32 0.0, %v324
    %341 = vrot.lane.b32.xlu0 %v339, 112
    %v342 = vpop.permute.xlu0 %341
    %v344 = vmul.f32 %v313, %v342
    %346 = vrot.lane.b32.xlu0 %v344, 16
    %v347 = vpop.permute.xlu0 %346
    %v349 = vadd.f32 %v324, %v347
    %v350 = vsub.f32 0.0, %v338
    %352 = vrot.lane.b32.xlu0 %v350, 112
    %v353 = vpop.permute.xlu0 %352
    %v355 = vmul.f32 %v331, %v353
    %357 = vrot.lane.b32.xlu0 %v355, 16
    %v358 = vpop.permute.xlu0 %357
    %v360 = vadd.f32 %v338, %v358
    %362 = vset.pattern.permute.xlu0 0
    %363 = vperm.xlu0 %362, %v222
    %v364 = vpop.permute.xlu0 %363
    %v366 = vmul.f32 %v364, %v349
    %v367 = vadd.f32 %v366, 0.0
    %369 = vset.pattern.permute.xlu0 0
    %370 = vperm.xlu0 %369, %v224
    %v371 = vpop.permute.xlu0 %370
    %v373 = vmul.f32 %v371, %v360
    %v374 = vadd.f32 %v373, 0.0
    %v375 = vmul.f32 %v364, %v367
    %v376 = vmul.f32 %v371, %v374
    %378 = vrot.lane.b32.xlu0 %v375, 96
    %v379 = vpop.permute.xlu0 %378
    %s381 = scalar_lea.vmem [#allocation3], 16
    %vm382 = vcmask 130048
    %383 = vst.msk [vmem:[%s381] sm:$0xff] %vm382, %v379
    %385 = vrot.lane.b32.xlu0 %v376, 64
    %v386 = vpop.permute.xlu0 %385
    %s388 = scalar_lea.vmem [#allocation3], 72
    %vm389 = vcmask 261248
    %390 = vst.msk [vmem:[%s388] sm:$0xff] %vm389, %v386
    %s391 = scalar_lea.vmem %s1, 8
    %v392 = vld [vmem:[%s391] sm:$0xff]
    %s393 = scalar_lea.vmem %s1, 48
    %v394 = vld [vmem:[%s393] sm:$0xff]
    %s395 = scalar_lea.vmem [#allocation2], 8
    %v396 = vld [vmem:[%s395] sm:$0xff]
    %s397 = scalar_lea.vmem [#allocation2], 48
    %v398 = vld [vmem:[%s397] sm:$0xff]
    %400 = vrot.lane.b32.xlu0 %v367, 96
    %v401 = vpop.permute.xlu0 %400
    %404 = vrot.lane.b32.xlu0 %v374, 64
    %v405 = vpop.permute.xlu0 %404
    %v407 = vsel %vm382, %v401, %v405
    %v409 = vsel %vm73, %v407, 0
    %411 = vmatprep.subr.mxu0 0.0
    %412 = vmatpush1.msra.mxu0 0.0
    %413 = vmatprep.subr.mxu0 0.0
    %414 = vmatpush1.msra.mxu0 0.0
    %415 = vmatprep.subr.mxu0 0.0
    %416 = vmatpush1.msra.mxu0 0.0
    %417 = vmatprep.subr.mxu0 0.0
    %418 = vmatpush1.msra.mxu0 0.0
    %419 = vmatprep.subr.mxu0 0.0
    %420 = vmatpush1.msra.mxu0 0.0
    %421 = vmatprep.subr.mxu0 0.0
    %422 = vmatpush1.msra.mxu0 0.0
    %423 = vmatprep.subr.mxu0 0.0
    %424 = vmatpush1.msra.mxu0 0.0
    %425 = vmatprep.subr.mxu0 0.0
    %426 = vmatpush1.msra.mxu0 0.0
    %427 = vmatprep.subr.mxu0 0.0
    %428 = vmatpush1.msra.mxu0 0.0
    %429 = vmatprep.subr.mxu0 0.0
    %430 = vmatpush1.msra.mxu0 0.0
    %431 = vmatprep.subr.mxu0 0.0
    %432 = vmatpush1.msra.mxu0 0.0
    %433 = vmatprep.subr.mxu0 0.0
    %434 = vmatpush1.msra.mxu0 0.0
    %435 = vmatprep.subr.mxu0 0.0
    %436 = vmatpush1.msra.mxu0 %v220
    %437 = vmatprep.subr.mxu0 0.0
    %438 = vmatpush1.msra.mxu0 %v219
    %439 = vmatprep.subr.mxu0 0.0
    %440 = vmatpush1.msra.mxu0 %v218
    %441 = vmatprep.subr.mxu0 0.0
    %442 = vmatpush1.msra.mxu0 %v217
    %443 = vmatprep.subr.mxu0 0.0
    %444 = vmatpush2.msra.mxu0 0.0
    %445 = vmatprep.subr.mxu0 0.0
    %446 = vmatpush2.msra.mxu0 0.0
    %447 = vmatprep.subr.mxu0 0.0
    %448 = vmatpush2.msra.mxu0 0.0
    %449 = vmatprep.subr.mxu0 0.0
    %450 = vmatpush2.msra.mxu0 0.0
    %451 = vmatprep.subr.mxu0 0.0
    %452 = vmatpush2.msra.mxu0 0.0
    %453 = vmatprep.subr.mxu0 0.0
    %454 = vmatpush2.msra.mxu0 0.0
    %455 = vmatprep.subr.mxu0 0.0
    %456 = vmatpush2.msra.mxu0 0.0
    %457 = vmatprep.subr.mxu0 0.0
    %458 = vmatpush2.msra.mxu0 0.0
    %459 = vmatprep.subr.mxu0 0.0
    %460 = vmatpush2.msra.mxu0 0.0
    %461 = vmatprep.subr.mxu0 0.0
    %462 = vmatpush2.msra.mxu0 0.0
    %463 = vmatprep.subr.mxu0 0.0
    %464 = vmatpush2.msra.mxu0 0.0
    %465 = vmatprep.subr.mxu0 0.0
    %466 = vmatpush2.msra.mxu0 0.0
    %467 = vmatprep.subr.mxu0 0.0
    %468 = vmatpush2.msra.mxu0 0.0
    %469 = vmatprep.subr.mxu0 0.0
    %470 = vmatpush2.msra.mxu0 0.0
    %471 = vmatprep.subr.mxu0 0.0
    %472 = vmatpush2.msra.mxu0 0.0
    %473 = vmatprep.subr.mxu0 0.0
    %474 = vmatpush2.msra.mxu0 0.0
    %475 = vmatprep.mubr.f32.mxu0 0.0
    %476 = vmatmul.mubr.f32.gmra.mxu0 %v409
    %v477 = vpop.f32.mrf.mxu0
    %v478 = vadd.f32 %v232, %v477
    %v479 = vpop.f32.mrf.mxu0
    %480 = vdwg.mxu0
    %v481 = vadd.f32 %v396, %v478
    %v482 = vxor.u32 %v481, 2147483648
    %v483 = vmul.f32 %v482, 1.442695
    %v484 = vpow.pop %v483
    %v485 = vadd.f32 %v484, 1.0
    %v486 = vrcp.pop %v485
    %v487 = vmul.f32 1.0, %v486
    %489 = vrot.lane.b32.xlu0 %v478, 96
    %v490 = vpop.permute.xlu0 %489
    %v492 = vmul.f32 %v487, %v490
    %494 = vrot.lane.b32.xlu0 %v492, 32
    %v495 = vpop.permute.xlu0 %494
    %v497 = vadd.f32 %v396, %v495
    %v498 = vtanh.pop %v497
    %v499 = vadd.f32 %v398, %v478
    %v500 = vxor.u32 %v499, 2147483648
    %v501 = vmul.f32 %v500, 1.442695
    %v502 = vpow.pop %v501
    %v503 = vadd.f32 %v502, 1.0
    %v504 = vrcp.pop %v503
    %v505 = vmul.f32 1.0, %v504
    %v506 = vmul.f32 %v505, %v490
    %508 = vrot.lane.b32.xlu0 %v506, 32
    %v509 = vpop.permute.xlu0 %508
    %v511 = vadd.f32 %v398, %v509
    %v512 = vtanh.pop %v511
    %v513 = vsub.f32 %v367, %v498
    %515 = vrot.lane.b32.xlu0 %v513, 112
    %v516 = vpop.permute.xlu0 %515
    %v518 = vmul.f32 %v487, %v516
    %520 = vrot.lane.b32.xlu0 %v518, 16
    %v521 = vpop.permute.xlu0 %520
    %v523 = vadd.f32 %v498, %v521
    %v524 = vsub.f32 %v374, %v512
    %526 = vrot.lane.b32.xlu0 %v524, 112
    %v527 = vpop.permute.xlu0 %526
    %v529 = vmul.f32 %v505, %v527
    %531 = vrot.lane.b32.xlu0 %v529, 16
    %v532 = vpop.permute.xlu0 %531
    %v534 = vadd.f32 %v512, %v532
    %v535 = vsub.f32 %v523, %v367
    %537 = vset.pattern.permute.xlu0 0
    %538 = vperm.xlu0 %537, %v392
    %v539 = vpop.permute.xlu0 %538
    %v541 = vmul.f32 %v539, %v535
    %v542 = vadd.f32 %v367, %v541
    %v543 = vsub.f32 %v534, %v374
    %545 = vset.pattern.permute.xlu0 0
    %546 = vperm.xlu0 %545, %v394
    %v547 = vpop.permute.xlu0 %546
    %v549 = vmul.f32 %v547, %v543
    %v550 = vadd.f32 %v374, %v549
    %v551 = vmul.f32 %v539, %v542
    %v552 = vmul.f32 %v547, %v550
    %554 = vrot.lane.b32.xlu0 %v551, 96
    %v555 = vpop.permute.xlu0 %554
    %s557 = scalar_lea.vmem [#allocation3], 24
    %558 = vst.msk [vmem:[%s557] sm:$0xff] %vm382, %v555
    %560 = vrot.lane.b32.xlu0 %v552, 64
    %v561 = vpop.permute.xlu0 %560
    %s563 = scalar_lea.vmem [#allocation3], 64
    %564 = vst.msk [vmem:[%s563] sm:$0xff] %vm389, %v561
    %s565 = scalar_lea.vmem %s1, 16
    %v566 = vld [vmem:[%s565] sm:$0xff]
    %s567 = scalar_lea.vmem %s1, 40
    %v568 = vld [vmem:[%s567] sm:$0xff]
    %s569 = scalar_lea.vmem [#allocation2], 16
    %v570 = vld [vmem:[%s569] sm:$0xff]
    %s571 = scalar_lea.vmem [#allocation2], 40
    %v572 = vld [vmem:[%s571] sm:$0xff]
    %574 = vrot.lane.b32.xlu0 %v542, 96
    %v575 = vpop.permute.xlu0 %574
    %578 = vrot.lane.b32.xlu0 %v550, 64
    %v579 = vpop.permute.xlu0 %578
    %v581 = vsel %vm382, %v575, %v579
    %v583 = vsel %vm73, %v581, 0
    %585 = vmatprep.subr.mxu0 0.0
    %586 = vmatpush1.msra.mxu0 0.0
    %587 = vmatprep.subr.mxu0 0.0
    %588 = vmatpush1.msra.mxu0 0.0
    %589 = vmatprep.subr.mxu0 0.0
    %590 = vmatpush1.msra.mxu0 0.0
    %591 = vmatprep.subr.mxu0 0.0
    %592 = vmatpush1.msra.mxu0 0.0
    %593 = vmatprep.subr.mxu0 0.0
    %594 = vmatpush1.msra.mxu0 0.0
    %595 = vmatprep.subr.mxu0 0.0
    %596 = vmatpush1.msra.mxu0 0.0
    %597 = vmatprep.subr.mxu0 0.0
    %598 = vmatpush1.msra.mxu0 0.0
    %599 = vmatprep.subr.mxu0 0.0
    %600 = vmatpush1.msra.mxu0 0.0
    %601 = vmatprep.subr.mxu0 0.0
    %602 = vmatpush1.msra.mxu0 0.0
    %603 = vmatprep.subr.mxu0 0.0
    %604 = vmatpush1.msra.mxu0 0.0
    %605 = vmatprep.subr.mxu0 0.0
    %606 = vmatpush1.msra.mxu0 0.0
    %607 = vmatprep.subr.mxu0 0.0
    %608 = vmatpush1.msra.mxu0 0.0
    %609 = vmatprep.subr.mxu0 0.0
    %610 = vmatpush1.msra.mxu0 %v220
    %611 = vmatprep.subr.mxu0 0.0
    %612 = vmatpush1.msra.mxu0 %v219
    %613 = vmatprep.subr.mxu0 0.0
    %614 = vmatpush1.msra.mxu0 %v218
    %615 = vmatprep.subr.mxu0 0.0
    %616 = vmatpush1.msra.mxu0 %v217
    %617 = vmatprep.subr.mxu0 0.0
    %618 = vmatpush2.msra.mxu0 0.0
    %619 = vmatprep.subr.mxu0 0.0
    %620 = vmatpush2.msra.mxu0 0.0
    %621 = vmatprep.subr.mxu0 0.0
    %622 = vmatpush2.msra.mxu0 0.0
    %623 = vmatprep.subr.mxu0 0.0
    %624 = vmatpush2.msra.mxu0 0.0
    %625 = vmatprep.subr.mxu0 0.0
    %626 = vmatpush2.msra.mxu0 0.0
    %627 = vmatprep.subr.mxu0 0.0
    %628 = vmatpush2.msra.mxu0 0.0
    %629 = vmatprep.subr.mxu0 0.0
    %630 = vmatpush2.msra.mxu0 0.0
    %631 = vmatprep.subr.mxu0 0.0
    %632 = vmatpush2.msra.mxu0 0.0
    %633 = vmatprep.subr.mxu0 0.0
    %634 = vmatpush2.msra.mxu0 0.0
    %635 = vmatprep.subr.mxu0 0.0
    %636 = vmatpush2.msra.mxu0 0.0
    %637 = vmatprep.subr.mxu0 0.0
    %638 = vmatpush2.msra.mxu0 0.0
    %639 = vmatprep.subr.mxu0 0.0
    %640 = vmatpush2.msra.mxu0 0.0
    %641 = vmatprep.subr.mxu0 0.0
    %642 = vmatpush2.msra.mxu0 0.0
    %643 = vmatprep.subr.mxu0 0.0
    %644 = vmatpush2.msra.mxu0 0.0
    %645 = vmatprep.subr.mxu0 0.0
    %646 = vmatpush2.msra.mxu0 0.0
    %647 = vmatprep.subr.mxu0 0.0
    %648 = vmatpush2.msra.mxu0 0.0
    %649 = vmatprep.mubr.f32.mxu0 0.0
    %650 = vmatmul.mubr.f32.gmra.mxu0 %v583
    %v651 = vpop.f32.mrf.mxu0
    %v652 = vadd.f32 %v232, %v651
    %v653 = vpop.f32.mrf.mxu0
    %654 = vdwg.mxu0
    %v655 = vadd.f32 %v570, %v652
    %v656 = vxor.u32 %v655, 2147483648
    %v657 = vmul.f32 %v656, 1.442695
    %v658 = vpow.pop %v657
    %v659 = vadd.f32 %v658, 1.0
    %v660 = vrcp.pop %v659
    %v661 = vmul.f32 1.0, %v660
    %663 = vrot.lane.b32.xlu0 %v652, 96
    %v664 = vpop.permute.xlu0 %663
    %v666 = vmul.f32 %v661, %v664
    %668 = vrot.lane.b32.xlu0 %v666, 32
    %v669 = vpop.permute.xlu0 %668
    %v671 = vadd.f32 %v570, %v669
    %v672 = vtanh.pop %v671
    %v673 = vadd.f32 %v572, %v652
    %v674 = vxor.u32 %v673, 2147483648
    %v675 = vmul.f32 %v674, 1.442695
    %v676 = vpow.pop %v675
    %v677 = vadd.f32 %v676, 1.0
    %v678 = vrcp.pop %v677
    %v679 = vmul.f32 1.0, %v678
    %v680 = vmul.f32 %v679, %v664
    %682 = vrot.lane.b32.xlu0 %v680, 32
    %v683 = vpop.permute.xlu0 %682
    %v685 = vadd.f32 %v572, %v683
    %v686 = vtanh.pop %v685
    %v687 = vsub.f32 %v542, %v672
    %689 = vrot.lane.b32.xlu0 %v687, 112
    %v690 = vpop.permute.xlu0 %689
    %v692 = vmul.f32 %v661, %v690
    %694 = vrot.lane.b32.xlu0 %v692, 16
    %v695 = vpop.permute.xlu0 %694
    %v697 = vadd.f32 %v672, %v695
    %v698 = vsub.f32 %v550, %v686
    %700 = vrot.lane.b32.xlu0 %v698, 112
    %v701 = vpop.permute.xlu0 %700
    %v703 = vmul.f32 %v679, %v701
    %705 = vrot.lane.b32.xlu0 %v703, 16
    %v706 = vpop.permute.xlu0 %705
    %v708 = vadd.f32 %v686, %v706
    %v709 = vsub.f32 %v697, %v542
    %711 = vset.pattern.permute.xlu0 0
    %712 = vperm.xlu0 %711, %v566
    %v713 = vpop.permute.xlu0 %712
    %v715 = vmul.f32 %v713, %v709
    %v716 = vadd.f32 %v542, %v715
    %v717 = vsub.f32 %v708, %v550
    %719 = vset.pattern.permute.xlu0 0
    %720 = vperm.xlu0 %719, %v568
    %v721 = vpop.permute.xlu0 %720
    %v723 = vmul.f32 %v721, %v717
    %v724 = vadd.f32 %v550, %v723
    %v725 = vmul.f32 %v713, %v716
    %v726 = vmul.f32 %v721, %v724
    %728 = vrot.lane.b32.xlu0 %v725, 96
    %v729 = vpop.permute.xlu0 %728
    %s731 = scalar_lea.vmem [#allocation3], 32
    %732 = vst.msk [vmem:[%s731] sm:$0xff] %vm382, %v729
    %734 = vrot.lane.b32.xlu0 %v726, 64
    %v735 = vpop.permute.xlu0 %734
    %s737 = scalar_lea.vmem [#allocation3], 56
    %738 = vst.msk [vmem:[%s737] sm:$0xff] %vm389, %v735
    %s739 = scalar_lea.vmem %s1, 24
    %v740 = vld [vmem:[%s739] sm:$0xff]
    %s741 = scalar_lea.vmem %s1, 32
    %v742 = vld [vmem:[%s741] sm:$0xff]
    %s743 = scalar_lea.vmem [#allocation2], 24
    %v744 = vld [vmem:[%s743] sm:$0xff]
    %s745 = scalar_lea.vmem [#allocation2], 32
    %v746 = vld [vmem:[%s745] sm:$0xff]
    %748 = vrot.lane.b32.xlu0 %v716, 96
    %v749 = vpop.permute.xlu0 %748
    %752 = vrot.lane.b32.xlu0 %v724, 64
    %v753 = vpop.permute.xlu0 %752
    %v755 = vsel %vm382, %v749, %v753
    %v757 = vsel %vm73, %v755, 0
    %759 = vmatprep.subr.mxu0 0.0
    %760 = vmatpush1.msra.mxu0 0.0
    %761 = vmatprep.subr.mxu0 0.0
    %762 = vmatpush1.msra.mxu0 0.0
    %763 = vmatprep.subr.mxu0 0.0
    %764 = vmatpush1.msra.mxu0 0.0
    %765 = vmatprep.subr.mxu0 0.0
    %766 = vmatpush1.msra.mxu0 0.0
    %767 = vmatprep.subr.mxu0 0.0
    %768 = vmatpush1.msra.mxu0 0.0
    %769 = vmatprep.subr.mxu0 0.0
    %770 = vmatpush1.msra.mxu0 0.0
    %771 = vmatprep.subr.mxu0 0.0
    %772 = vmatpush1.msra.mxu0 0.0
    %773 = vmatprep.subr.mxu0 0.0
    %774 = vmatpush1.msra.mxu0 0.0
    %775 = vmatprep.subr.mxu0 0.0
    %776 = vmatpush1.msra.mxu0 0.0
    %777 = vmatprep.subr.mxu0 0.0
    %778 = vmatpush1.msra.mxu0 0.0
    %779 = vmatprep.subr.mxu0 0.0
    %780 = vmatpush1.msra.mxu0 0.0
    %781 = vmatprep.subr.mxu0 0.0
    %782 = vmatpush1.msra.mxu0 0.0
    %783 = vmatprep.subr.mxu0 0.0
    %784 = vmatpush1.msra.mxu0 %v220
    %785 = vmatprep.subr.mxu0 0.0
    %786 = vmatpush1.msra.mxu0 %v219
    %787 = vmatprep.subr.mxu0 0.0
    %788 = vmatpush1.msra.mxu0 %v218
    %789 = vmatprep.subr.mxu0 0.0
    %790 = vmatpush1.msra.mxu0 %v217
    %791 = vmatprep.subr.mxu0 0.0
    %792 = vmatpush2.msra.mxu0 0.0
    %793 = vmatprep.subr.mxu0 0.0
    %794 = vmatpush2.msra.mxu0 0.0
    %795 = vmatprep.subr.mxu0 0.0
    %796 = vmatpush2.msra.mxu0 0.0
    %797 = vmatprep.subr.mxu0 0.0
    %798 = vmatpush2.msra.mxu0 0.0
    %799 = vmatprep.subr.mxu0 0.0
    %800 = vmatpush2.msra.mxu0 0.0
    %801 = vmatprep.subr.mxu0 0.0
    %802 = vmatpush2.msra.mxu0 0.0
    %803 = vmatprep.subr.mxu0 0.0
    %804 = vmatpush2.msra.mxu0 0.0
    %805 = vmatprep.subr.mxu0 0.0
    %806 = vmatpush2.msra.mxu0 0.0
    %807 = vmatprep.subr.mxu0 0.0
    %808 = vmatpush2.msra.mxu0 0.0
    %809 = vmatprep.subr.mxu0 0.0
    %810 = vmatpush2.msra.mxu0 0.0
    %811 = vmatprep.subr.mxu0 0.0
    %812 = vmatpush2.msra.mxu0 0.0
    %813 = vmatprep.subr.mxu0 0.0
    %814 = vmatpush2.msra.mxu0 0.0
    %815 = vmatprep.subr.mxu0 0.0
    %816 = vmatpush2.msra.mxu0 0.0
    %817 = vmatprep.subr.mxu0 0.0
    %818 = vmatpush2.msra.mxu0 0.0
    %819 = vmatprep.subr.mxu0 0.0
    %820 = vmatpush2.msra.mxu0 0.0
    %821 = vmatprep.subr.mxu0 0.0
    %822 = vmatpush2.msra.mxu0 0.0
    %823 = vmatprep.mubr.f32.mxu0 0.0
    %824 = vmatmul.mubr.f32.gmra.mxu0 %v757
    %v825 = vpop.f32.mrf.mxu0
    %v826 = vadd.f32 %v232, %v825
    %v827 = vpop.f32.mrf.mxu0
    %828 = vdwg.mxu0
    %v829 = vadd.f32 %v744, %v826
    %v830 = vxor.u32 %v829, 2147483648
    %v831 = vmul.f32 %v830, 1.442695
    %v832 = vpow.pop %v831
    %v833 = vadd.f32 %v832, 1.0
    %v834 = vrcp.pop %v833
    %v835 = vmul.f32 1.0, %v834
    %837 = vrot.lane.b32.xlu0 %v826, 96
    %v838 = vpop.permute.xlu0 %837
    %v840 = vmul.f32 %v835, %v838
    %842 = vrot.lane.b32.xlu0 %v840, 32
    %v843 = vpop.permute.xlu0 %842
    %v845 = vadd.f32 %v744, %v843
    %v846 = vtanh.pop %v845
    %v847 = vadd.f32 %v746, %v826
    %v848 = vxor.u32 %v847, 2147483648
    %v849 = vmul.f32 %v848, 1.442695
    %v850 = vpow.pop %v849
    %v851 = vadd.f32 %v850, 1.0
    %v852 = vrcp.pop %v851
    %v853 = vmul.f32 1.0, %v852
    %v854 = vmul.f32 %v853, %v838
    %856 = vrot.lane.b32.xlu0 %v854, 32
    %v857 = vpop.permute.xlu0 %856
    %v859 = vadd.f32 %v746, %v857
    %v860 = vtanh.pop %v859
    %v861 = vsub.f32 %v716, %v846
    %863 = vrot.lane.b32.xlu0 %v861, 112
    %v864 = vpop.permute.xlu0 %863
    %v866 = vmul.f32 %v835, %v864
    %868 = vrot.lane.b32.xlu0 %v866, 16
    %v869 = vpop.permute.xlu0 %868
    %v871 = vadd.f32 %v846, %v869
    %v872 = vsub.f32 %v724, %v860
    %874 = vrot.lane.b32.xlu0 %v872, 112
    %v875 = vpop.permute.xlu0 %874
    %v877 = vmul.f32 %v853, %v875
    %879 = vrot.lane.b32.xlu0 %v877, 16
    %v880 = vpop.permute.xlu0 %879
    %v882 = vadd.f32 %v860, %v880
    %v883 = vsub.f32 %v871, %v716
    %885 = vset.pattern.permute.xlu0 0
    %886 = vperm.xlu0 %885, %v740
    %v887 = vpop.permute.xlu0 %886
    %v889 = vmul.f32 %v887, %v883
    %v890 = vadd.f32 %v716, %v889
    %v891 = vsub.f32 %v882, %v724
    %893 = vset.pattern.permute.xlu0 0
    %894 = vperm.xlu0 %893, %v742
    %v895 = vpop.permute.xlu0 %894
    %v897 = vmul.f32 %v895, %v891
    %v898 = vadd.f32 %v724, %v897
    %v899 = vmul.f32 %v887, %v890
    %v900 = vmul.f32 %v895, %v898
    %902 = vrot.lane.b32.xlu0 %v899, 96
    %v903 = vpop.permute.xlu0 %902
    %s905 = scalar_lea.vmem [#allocation3], 40
    %906 = vst.msk [vmem:[%s905] sm:$0xff] %vm382, %v903
    %908 = vrot.lane.b32.xlu0 %v900, 64
    %v909 = vpop.permute.xlu0 %908
    %s911 = scalar_lea.vmem [#allocation3], 48
    %912 = vst.msk [vmem:[%s911] sm:$0xff] %vm389, %v909
    %v913 = vld [vmem:[%s741] sm:$0xff]
    %v914 = vld [vmem:[%s739] sm:$0xff]
    %v915 = vld [vmem:[%s745] sm:$0xff]
    %v916 = vld [vmem:[%s743] sm:$0xff]
    %918 = vrot.lane.b32.xlu0 %v890, 96
    %v919 = vpop.permute.xlu0 %918
    %922 = vrot.lane.b32.xlu0 %v898, 64
    %v923 = vpop.permute.xlu0 %922
    %v925 = vsel %vm382, %v919, %v923
    %v927 = vsel %vm73, %v925, 0
    %929 = vmatprep.subr.mxu0 0.0
    %930 = vmatpush1.msra.mxu0 0.0
    %931 = vmatprep.subr.mxu0 0.0
    %932 = vmatpush1.msra.mxu0 0.0
    %933 = vmatprep.subr.mxu0 0.0
    %934 = vmatpush1.msra.mxu0 0.0
    %935 = vmatprep.subr.mxu0 0.0
    %936 = vmatpush1.msra.mxu0 0.0
    %937 = vmatprep.subr.mxu0 0.0
    %938 = vmatpush1.msra.mxu0 0.0
    %939 = vmatprep.subr.mxu0 0.0
    %940 = vmatpush1.msra.mxu0 0.0
    %941 = vmatprep.subr.mxu0 0.0
    %942 = vmatpush1.msra.mxu0 0.0
    %943 = vmatprep.subr.mxu0 0.0
    %944 = vmatpush1.msra.mxu0 0.0
    %945 = vmatprep.subr.mxu0 0.0
    %946 = vmatpush1.msra.mxu0 0.0
    %947 = vmatprep.subr.mxu0 0.0
    %948 = vmatpush1.msra.mxu0 0.0
    %949 = vmatprep.subr.mxu0 0.0
    %950 = vmatpush1.msra.mxu0 0.0
    %951 = vmatprep.subr.mxu0 0.0
    %952 = vmatpush1.msra.mxu0 0.0
    %953 = vmatprep.subr.mxu0 0.0
    %954 = vmatpush1.msra.mxu0 %v220
    %955 = vmatprep.subr.mxu0 0.0
    %956 = vmatpush1.msra.mxu0 %v219
    %957 = vmatprep.subr.mxu0 0.0
    %958 = vmatpush1.msra.mxu0 %v218
    %959 = vmatprep.subr.mxu0 0.0
    %960 = vmatpush1.msra.mxu0 %v217
    %961 = vmatprep.subr.mxu0 0.0
    %962 = vmatpush2.msra.mxu0 0.0
    %963 = vmatprep.subr.mxu0 0.0
    %964 = vmatpush2.msra.mxu0 0.0
    %965 = vmatprep.subr.mxu0 0.0
    %966 = vmatpush2.msra.mxu0 0.0
    %967 = vmatprep.subr.mxu0 0.0
    %968 = vmatpush2.msra.mxu0 0.0
    %969 = vmatprep.subr.mxu0 0.0
    %970 = vmatpush2.msra.mxu0 0.0
    %971 = vmatprep.subr.mxu0 0.0
    %972 = vmatpush2.msra.mxu0 0.0
    %973 = vmatprep.subr.mxu0 0.0
    %974 = vmatpush2.msra.mxu0 0.0
    %975 = vmatprep.subr.mxu0 0.0
    %976 = vmatpush2.msra.mxu0 0.0
    %977 = vmatprep.subr.mxu0 0.0
    %978 = vmatpush2.msra.mxu0 0.0
    %979 = vmatprep.subr.mxu0 0.0
    %980 = vmatpush2.msra.mxu0 0.0
    %981 = vmatprep.subr.mxu0 0.0
    %982 = vmatpush2.msra.mxu0 0.0
    %983 = vmatprep.subr.mxu0 0.0
    %984 = vmatpush2.msra.mxu0 0.0
    %985 = vmatprep.subr.mxu0 0.0
    %986 = vmatpush2.msra.mxu0 0.0
    %987 = vmatprep.subr.mxu0 0.0
    %988 = vmatpush2.msra.mxu0 0.0
    %989 = vmatprep.subr.mxu0 0.0
    %990 = vmatpush2.msra.mxu0 0.0
    %991 = vmatprep.subr.mxu0 0.0
    %992 = vmatpush2.msra.mxu0 0.0
    %993 = vmatprep.mubr.f32.mxu0 0.0
    %994 = vmatmul.mubr.f32.gmra.mxu0 %v927
    %v995 = vpop.f32.mrf.mxu0
    %v996 = vadd.f32 %v232, %v995
    %v997 = vpop.f32.mrf.mxu0
    %998 = vdwg.mxu0
    %v999 = vadd.f32 %v915, %v996
    %v1000 = vxor.u32 %v999, 2147483648
    %v1001 = vmul.f32 %v1000, 1.442695
    %v1002 = vpow.pop %v1001
    %v1003 = vadd.f32 %v1002, 1.0
    %v1004 = vrcp.pop %v1003
    %v1005 = vmul.f32 1.0, %v1004
    %1007 = vrot.lane.b32.xlu0 %v996, 96
    %v1008 = vpop.permute.xlu0 %1007
    %v1010 = vmul.f32 %v1005, %v1008
    %1012 = vrot.lane.b32.xlu0 %v1010, 32
    %v1013 = vpop.permute.xlu0 %1012
    %v1015 = vadd.f32 %v915, %v1013
    %v1016 = vtanh.pop %v1015
    %v1017 = vadd.f32 %v916, %v996
    %v1018 = vxor.u32 %v1017, 2147483648
    %v1019 = vmul.f32 %v1018, 1.442695
    %v1020 = vpow.pop %v1019
    %v1021 = vadd.f32 %v1020, 1.0
    %v1022 = vrcp.pop %v1021
    %v1023 = vmul.f32 1.0, %v1022
    %v1024 = vmul.f32 %v1023, %v1008
    %1026 = vrot.lane.b32.xlu0 %v1024, 32
    %v1027 = vpop.permute.xlu0 %1026
    %v1029 = vadd.f32 %v916, %v1027
    %v1030 = vtanh.pop %v1029
    %v1031 = vsub.f32 %v890, %v1016
    %1033 = vrot.lane.b32.xlu0 %v1031, 112
    %v1034 = vpop.permute.xlu0 %1033
    %v1036 = vmul.f32 %v1005, %v1034
    %1038 = vrot.lane.b32.xlu0 %v1036, 16
    %v1039 = vpop.permute.xlu0 %1038
    %v1041 = vadd.f32 %v1016, %v1039
    %v1042 = vsub.f32 %v898, %v1030
    %1044 = vrot.lane.b32.xlu0 %v1042, 112
    %v1045 = vpop.permute.xlu0 %1044
    %v1047 = vmul.f32 %v1023, %v1045
    %1049 = vrot.lane.b32.xlu0 %v1047, 16
    %v1050 = vpop.permute.xlu0 %1049
    %v1052 = vadd.f32 %v1030, %v1050
    %v1053 = vsub.f32 %v1041, %v890
    %1055 = vset.pattern.permute.xlu0 0
    %1056 = vperm.xlu0 %1055, %v913
    %v1057 = vpop.permute.xlu0 %1056
    %v1059 = vmul.f32 %v1057, %v1053
    %v1060 = vadd.f32 %v890, %v1059
    %v1061 = vsub.f32 %v1052, %v898
    %1063 = vset.pattern.permute.xlu0 0
    %1064 = vperm.xlu0 %1063, %v914
    %v1065 = vpop.permute.xlu0 %1064
    %v1067 = vmul.f32 %v1065, %v1061
    %v1068 = vadd.f32 %v898, %v1067
    %v1069 = vmul.f32 %v1057, %v1060
    %v1070 = vmul.f32 %v1065, %v1068
    %1072 = vrot.lane.b32.xlu0 %v1069, 96
    %v1073 = vpop.permute.xlu0 %1072
    %1075 = vst.msk [vmem:[%s911] sm:$0xff] %vm382, %v1073
    %1077 = vrot.lane.b32.xlu0 %v1070, 64
    %v1078 = vpop.permute.xlu0 %1077
    %1080 = vst.msk [vmem:[%s905] sm:$0xff] %vm389, %v1078
    %v1081 = vld [vmem:[%s567] sm:$0xff]
    %v1082 = vld [vmem:[%s565] sm:$0xff]
    %v1083 = vld [vmem:[%s571] sm:$0xff]
    %v1084 = vld [vmem:[%s569] sm:$0xff]
    %1086 = vrot.lane.b32.xlu0 %v1060, 96
    %v1087 = vpop.permute.xlu0 %1086
    %1090 = vrot.lane.b32.xlu0 %v1068, 64
    %v1091 = vpop.permute.xlu0 %1090
    %v1093 = vsel %vm382, %v1087, %v1091
    %v1095 = vsel %vm73, %v1093, 0
    %1097 = vmatprep.subr.mxu0 0.0
    %1098 = vmatpush1.msra.mxu0 0.0
    %1099 = vmatprep.subr.mxu0 0.0
    %1100 = vmatpush1.msra.mxu0 0.0
    %1101 = vmatprep.subr.mxu0 0.0
    %1102 = vmatpush1.msra.mxu0 0.0
    %1103 = vmatprep.subr.mxu0 0.0
    %1104 = vmatpush1.msra.mxu0 0.0
    %1105 = vmatprep.subr.mxu0 0.0
    %1106 = vmatpush1.msra.mxu0 0.0
    %1107 = vmatprep.subr.mxu0 0.0
    %1108 = vmatpush1.msra.mxu0 0.0
    %1109 = vmatprep.subr.mxu0 0.0
    %1110 = vmatpush1.msra.mxu0 0.0
    %1111 = vmatprep.subr.mxu0 0.0
    %1112 = vmatpush1.msra.mxu0 0.0
    %1113 = vmatprep.subr.mxu0 0.0
    %1114 = vmatpush1.msra.mxu0 0.0
    %1115 = vmatprep.subr.mxu0 0.0
    %1116 = vmatpush1.msra.mxu0 0.0
    %1117 = vmatprep.subr.mxu0 0.0
    %1118 = vmatpush1.msra.mxu0 0.0
    %1119 = vmatprep.subr.mxu0 0.0
    %1120 = vmatpush1.msra.mxu0 0.0
    %1121 = vmatprep.subr.mxu0 0.0
    %1122 = vmatpush1.msra.mxu0 %v220
    %1123 = vmatprep.subr.mxu0 0.0
    %1124 = vmatpush1.msra.mxu0 %v219
    %1125 = vmatprep.subr.mxu0 0.0
    %1126 = vmatpush1.msra.mxu0 %v218
    %1127 = vmatprep.subr.mxu0 0.0
    %1128 = vmatpush1.msra.mxu0 %v217
    %1129 = vmatprep.subr.mxu0 0.0
    %1130 = vmatpush2.msra.mxu0 0.0
    %1131 = vmatprep.subr.mxu0 0.0
    %1132 = vmatpush2.msra.mxu0 0.0
    %1133 = vmatprep.subr.mxu0 0.0
    %1134 = vmatpush2.msra.mxu0 0.0
    %1135 = vmatprep.subr.mxu0 0.0
    %1136 = vmatpush2.msra.mxu0 0.0
    %1137 = vmatprep.subr.mxu0 0.0
    %1138 = vmatpush2.msra.mxu0 0.0
    %1139 = vmatprep.subr.mxu0 0.0
    %1140 = vmatpush2.msra.mxu0 0.0
    %1141 = vmatprep.subr.mxu0 0.0
    %1142 = vmatpush2.msra.mxu0 0.0
    %1143 = vmatprep.subr.mxu0 0.0
    %1144 = vmatpush2.msra.mxu0 0.0
    %1145 = vmatprep.subr.mxu0 0.0
    %1146 = vmatpush2.msra.mxu0 0.0
    %1147 = vmatprep.subr.mxu0 0.0
    %1148 = vmatpush2.msra.mxu0 0.0
    %1149 = vmatprep.subr.mxu0 0.0
    %1150 = vmatpush2.msra.mxu0 0.0
    %1151 = vmatprep.subr.mxu0 0.0
    %1152 = vmatpush2.msra.mxu0 0.0
    %1153 = vmatprep.subr.mxu0 0.0
    %1154 = vmatpush2.msra.mxu0 0.0
    %1155 = vmatprep.subr.mxu0 0.0
    %1156 = vmatpush2.msra.mxu0 0.0
    %1157 = vmatprep.subr.mxu0 0.0
    %1158 = vmatpush2.msra.mxu0 0.0
    %1159 = vmatprep.subr.mxu0 0.0
    %1160 = vmatpush2.msra.mxu0 0.0
    %1161 = vmatprep.mubr.f32.mxu0 0.0
    %1162 = vmatmul.mubr.f32.gmra.mxu0 %v1095
    %v1163 = vpop.f32.mrf.mxu0
    %v1164 = vadd.f32 %v232, %v1163
    %v1165 = vpop.f32.mrf.mxu0
    %1166 = vdwg.mxu0
    %v1167 = vadd.f32 %v1083, %v1164
    %v1168 = vxor.u32 %v1167, 2147483648
    %v1169 = vmul.f32 %v1168, 1.442695
    %v1170 = vpow.pop %v1169
    %v1171 = vadd.f32 %v1170, 1.0
    %v1172 = vrcp.pop %v1171
    %v1173 = vmul.f32 1.0, %v1172
    %1175 = vrot.lane.b32.xlu0 %v1164, 96
    %v1176 = vpop.permute.xlu0 %1175
    %v1178 = vmul.f32 %v1173, %v1176
    %1180 = vrot.lane.b32.xlu0 %v1178, 32
    %v1181 = vpop.permute.xlu0 %1180
    %v1183 = vadd.f32 %v1083, %v1181
    %v1184 = vtanh.pop %v1183
    %v1185 = vadd.f32 %v1084, %v1164
    %v1186 = vxor.u32 %v1185, 2147483648
    %v1187 = vmul.f32 %v1186, 1.442695
    %v1188 = vpow.pop %v1187
    %v1189 = vadd.f32 %v1188, 1.0
    %v1190 = vrcp.pop %v1189
    %v1191 = vmul.f32 1.0, %v1190
    %v1192 = vmul.f32 %v1191, %v1176
    %1194 = vrot.lane.b32.xlu0 %v1192, 32
    %v1195 = vpop.permute.xlu0 %1194
    %v1197 = vadd.f32 %v1084, %v1195
    %v1198 = vtanh.pop %v1197
    %v1199 = vsub.f32 %v1060, %v1184
    %1201 = vrot.lane.b32.xlu0 %v1199, 112
    %v1202 = vpop.permute.xlu0 %1201
    %v1204 = vmul.f32 %v1173, %v1202
    %1206 = vrot.lane.b32.xlu0 %v1204, 16
    %v1207 = vpop.permute.xlu0 %1206
    %v1209 = vadd.f32 %v1184, %v1207
    %v1210 = vsub.f32 %v1068, %v1198
    %1212 = vrot.lane.b32.xlu0 %v1210, 112
    %v1213 = vpop.permute.xlu0 %1212
    %v1215 = vmul.f32 %v1191, %v1213
    %1217 = vrot.lane.b32.xlu0 %v1215, 16
    %v1218 = vpop.permute.xlu0 %1217
    %v1220 = vadd.f32 %v1198, %v1218
    %v1221 = vsub.f32 %v1209, %v1060
    %1223 = vset.pattern.permute.xlu0 0
    %1224 = vperm.xlu0 %1223, %v1081
    %v1225 = vpop.permute.xlu0 %1224
    %v1227 = vmul.f32 %v1225, %v1221
    %v1228 = vadd.f32 %v1060, %v1227
    %v1229 = vsub.f32 %v1220, %v1068
    %1231 = vset.pattern.permute.xlu0 0
    %1232 = vperm.xlu0 %1231, %v1082
    %v1233 = vpop.permute.xlu0 %1232
    %v1235 = vmul.f32 %v1233, %v1229
    %v1236 = vadd.f32 %v1068, %v1235
    %v1237 = vmul.f32 %v1225, %v1228
    %v1238 = vmul.f32 %v1233, %v1236
    %1240 = vrot.lane.b32.xlu0 %v1237, 96
    %v1241 = vpop.permute.xlu0 %1240
    %1243 = vst.msk [vmem:[%s737] sm:$0xff] %vm382, %v1241
    %1245 = vrot.lane.b32.xlu0 %v1238, 64
    %v1246 = vpop.permute.xlu0 %1245
    %1248 = vst.msk [vmem:[%s731] sm:$0xff] %vm389, %v1246
    %v1249 = vld [vmem:[%s393] sm:$0xff]
    %v1250 = vld [vmem:[%s391] sm:$0xff]
    %v1251 = vld [vmem:[%s397] sm:$0xff]
    %v1252 = vld [vmem:[%s395] sm:$0xff]
    %1254 = vrot.lane.b32.xlu0 %v1228, 96
    %v1255 = vpop.permute.xlu0 %1254
    %1258 = vrot.lane.b32.xlu0 %v1236, 64
    %v1259 = vpop.permute.xlu0 %1258
    %v1261 = vsel %vm382, %v1255, %v1259
    %v1263 = vsel %vm73, %v1261, 0
    %1265 = vmatprep.subr.mxu0 0.0
    %1266 = vmatpush1.msra.mxu0 0.0
    %1267 = vmatprep.subr.mxu0 0.0
    %1268 = vmatpush1.msra.mxu0 0.0
    %1269 = vmatprep.subr.mxu0 0.0
    %1270 = vmatpush1.msra.mxu0 0.0
    %1271 = vmatprep.subr.mxu0 0.0
    %1272 = vmatpush1.msra.mxu0 0.0
    %1273 = vmatprep.subr.mxu0 0.0
    %1274 = vmatpush1.msra.mxu0 0.0
    %1275 = vmatprep.subr.mxu0 0.0
    %1276 = vmatpush1.msra.mxu0 0.0
    %1277 = vmatprep.subr.mxu0 0.0
    %1278 = vmatpush1.msra.mxu0 0.0
    %1279 = vmatprep.subr.mxu0 0.0
    %1280 = vmatpush1.msra.mxu0 0.0
    %1281 = vmatprep.subr.mxu0 0.0
    %1282 = vmatpush1.msra.mxu0 0.0
    %1283 = vmatprep.subr.mxu0 0.0
    %1284 = vmatpush1.msra.mxu0 0.0
    %1285 = vmatprep.subr.mxu0 0.0
    %1286 = vmatpush1.msra.mxu0 0.0
    %1287 = vmatprep.subr.mxu0 0.0
    %1288 = vmatpush1.msra.mxu0 0.0
    %1289 = vmatprep.subr.mxu0 0.0
    %1290 = vmatpush1.msra.mxu0 %v220
    %1291 = vmatprep.subr.mxu0 0.0
    %1292 = vmatpush1.msra.mxu0 %v219
    %1293 = vmatprep.subr.mxu0 0.0
    %1294 = vmatpush1.msra.mxu0 %v218
    %1295 = vmatprep.subr.mxu0 0.0
    %1296 = vmatpush1.msra.mxu0 %v217
    %1297 = vmatprep.subr.mxu0 0.0
    %1298 = vmatpush2.msra.mxu0 0.0
    %1299 = vmatprep.subr.mxu0 0.0
    %1300 = vmatpush2.msra.mxu0 0.0
    %1301 = vmatprep.subr.mxu0 0.0
    %1302 = vmatpush2.msra.mxu0 0.0
    %1303 = vmatprep.subr.mxu0 0.0
    %1304 = vmatpush2.msra.mxu0 0.0
    %1305 = vmatprep.subr.mxu0 0.0
    %1306 = vmatpush2.msra.mxu0 0.0
    %1307 = vmatprep.subr.mxu0 0.0
    %1308 = vmatpush2.msra.mxu0 0.0
    %1309 = vmatprep.subr.mxu0 0.0
    %1310 = vmatpush2.msra.mxu0 0.0
    %1311 = vmatprep.subr.mxu0 0.0
    %1312 = vmatpush2.msra.mxu0 0.0
    %1313 = vmatprep.subr.mxu0 0.0
    %1314 = vmatpush2.msra.mxu0 0.0
    %1315 = vmatprep.subr.mxu0 0.0
    %1316 = vmatpush2.msra.mxu0 0.0
    %1317 = vmatprep.subr.mxu0 0.0
    %1318 = vmatpush2.msra.mxu0 0.0
    %1319 = vmatprep.subr.mxu0 0.0
    %1320 = vmatpush2.msra.mxu0 0.0
    %1321 = vmatprep.subr.mxu0 0.0
    %1322 = vmatpush2.msra.mxu0 0.0
    %1323 = vmatprep.subr.mxu0 0.0
    %1324 = vmatpush2.msra.mxu0 0.0
    %1325 = vmatprep.subr.mxu0 0.0
    %1326 = vmatpush2.msra.mxu0 0.0
    %1327 = vmatprep.subr.mxu0 0.0
    %1328 = vmatpush2.msra.mxu0 0.0
    %1329 = vmatprep.mubr.f32.mxu0 0.0
    %1330 = vmatmul.mubr.f32.gmra.mxu0 %v1263
    %v1331 = vpop.f32.mrf.mxu0
    %v1332 = vadd.f32 %v232, %v1331
    %v1333 = vpop.f32.mrf.mxu0
    %1334 = vdwg.mxu0
    %v1335 = vadd.f32 %v1251, %v1332
    %v1336 = vxor.u32 %v1335, 2147483648
    %v1337 = vmul.f32 %v1336, 1.442695
    %v1338 = vpow.pop %v1337
    %v1339 = vadd.f32 %v1338, 1.0
    %v1340 = vrcp.pop %v1339
    %v1341 = vmul.f32 1.0, %v1340
    %1343 = vrot.lane.b32.xlu0 %v1332, 96
    %v1344 = vpop.permute.xlu0 %1343
    %v1346 = vmul.f32 %v1341, %v1344
    %1348 = vrot.lane.b32.xlu0 %v1346, 32
    %v1349 = vpop.permute.xlu0 %1348
    %v1351 = vadd.f32 %v1251, %v1349
    %v1352 = vtanh.pop %v1351
    %v1353 = vadd.f32 %v1252, %v1332
    %v1354 = vxor.u32 %v1353, 2147483648
    %v1355 = vmul.f32 %v1354, 1.442695
    %v1356 = vpow.pop %v1355
    %v1357 = vadd.f32 %v1356, 1.0
    %v1358 = vrcp.pop %v1357
    %v1359 = vmul.f32 1.0, %v1358
    %v1360 = vmul.f32 %v1359, %v1344
    %1362 = vrot.lane.b32.xlu0 %v1360, 32
    %v1363 = vpop.permute.xlu0 %1362
    %v1365 = vadd.f32 %v1252, %v1363
    %v1366 = vtanh.pop %v1365
    %v1367 = vsub.f32 %v1228, %v1352
    %1369 = vrot.lane.b32.xlu0 %v1367, 112
    %v1370 = vpop.permute.xlu0 %1369
    %v1372 = vmul.f32 %v1341, %v1370
    %1374 = vrot.lane.b32.xlu0 %v1372, 16
    %v1375 = vpop.permute.xlu0 %1374
    %v1377 = vadd.f32 %v1352, %v1375
    %v1378 = vsub.f32 %v1236, %v1366
    %1380 = vrot.lane.b32.xlu0 %v1378, 112
    %v1381 = vpop.permute.xlu0 %1380
    %v1383 = vmul.f32 %v1359, %v1381
    %1385 = vrot.lane.b32.xlu0 %v1383, 16
    %v1386 = vpop.permute.xlu0 %1385
    %v1388 = vadd.f32 %v1366, %v1386
    %v1389 = vsub.f32 %v1377, %v1228
    %1391 = vset.pattern.permute.xlu0 0
    %1392 = vperm.xlu0 %1391, %v1249
    %v1393 = vpop.permute.xlu0 %1392
    %v1395 = vmul.f32 %v1393, %v1389
    %v1396 = vadd.f32 %v1228, %v1395
    %v1397 = vsub.f32 %v1388, %v1236
    %1399 = vset.pattern.permute.xlu0 0
    %1400 = vperm.xlu0 %1399, %v1250
    %v1401 = vpop.permute.xlu0 %1400
    %v1403 = vmul.f32 %v1401, %v1397
    %v1404 = vadd.f32 %v1236, %v1403
    %v1405 = vmul.f32 %v1393, %v1396
    %v1406 = vmul.f32 %v1401, %v1404
    %1408 = vrot.lane.b32.xlu0 %v1405, 96
    %v1409 = vpop.permute.xlu0 %1408
    %1411 = vst.msk [vmem:[%s563] sm:$0xff] %vm382, %v1409
    %1413 = vrot.lane.b32.xlu0 %v1406, 64
    %v1414 = vpop.permute.xlu0 %1413
    %1416 = vst.msk [vmem:[%s557] sm:$0xff] %vm389, %v1414
    %v1417 = vld [vmem:[%s223] sm:$0xff]
    %v1418 = vld [vmem:[%s1] sm:$0xff]
    %v1419 = vld [vmem:[%s226] sm:$0xff]
    %v1420 = vld [vmem:[#allocation2] sm:$0xff]
    %1422 = vrot.lane.b32.xlu0 %v1396, 96
    %v1423 = vpop.permute.xlu0 %1422
    %1426 = vrot.lane.b32.xlu0 %v1404, 64
    %v1427 = vpop.permute.xlu0 %1426
    %v1429 = vsel %vm382, %v1423, %v1427
    %v1431 = vsel %vm73, %v1429, 0
    %1433 = vmatprep.subr.mxu0 0.0
    %1434 = vmatpush1.msra.mxu0 0.0
    %1435 = vmatprep.subr.mxu0 0.0
    %1436 = vmatpush1.msra.mxu0 0.0
    %1437 = vmatprep.subr.mxu0 0.0
    %1438 = vmatpush1.msra.mxu0 0.0
    %1439 = vmatprep.subr.mxu0 0.0
    %1440 = vmatpush1.msra.mxu0 0.0
    %1441 = vmatprep.subr.mxu0 0.0
    %1442 = vmatpush1.msra.mxu0 0.0
    %1443 = vmatprep.subr.mxu0 0.0
    %1444 = vmatpush1.msra.mxu0 0.0
    %1445 = vmatprep.subr.mxu0 0.0
    %1446 = vmatpush1.msra.mxu0 0.0
    %1447 = vmatprep.subr.mxu0 0.0
    %1448 = vmatpush1.msra.mxu0 0.0
    %1449 = vmatprep.subr.mxu0 0.0
    %1450 = vmatpush1.msra.mxu0 0.0
    %1451 = vmatprep.subr.mxu0 0.0
    %1452 = vmatpush1.msra.mxu0 0.0
    %1453 = vmatprep.subr.mxu0 0.0
    %1454 = vmatpush1.msra.mxu0 0.0
    %1455 = vmatprep.subr.mxu0 0.0
    %1456 = vmatpush1.msra.mxu0 0.0
    %1457 = vmatprep.subr.mxu0 0.0
    %1458 = vmatpush1.msra.mxu0 %v220
    %1459 = vmatprep.subr.mxu0 0.0
    %1460 = vmatpush1.msra.mxu0 %v219
    %1461 = vmatprep.subr.mxu0 0.0
    %1462 = vmatpush1.msra.mxu0 %v218
    %1463 = vmatprep.subr.mxu0 0.0
    %1464 = vmatpush1.msra.mxu0 %v217
    %1465 = vmatprep.subr.mxu0 0.0
    %1466 = vmatpush2.msra.mxu0 0.0
    %1467 = vmatprep.subr.mxu0 0.0
    %1468 = vmatpush2.msra.mxu0 0.0
    %1469 = vmatprep.subr.mxu0 0.0
    %1470 = vmatpush2.msra.mxu0 0.0
    %1471 = vmatprep.subr.mxu0 0.0
    %1472 = vmatpush2.msra.mxu0 0.0
    %1473 = vmatprep.subr.mxu0 0.0
    %1474 = vmatpush2.msra.mxu0 0.0
    %1475 = vmatprep.subr.mxu0 0.0
    %1476 = vmatpush2.msra.mxu0 0.0
    %1477 = vmatprep.subr.mxu0 0.0
    %1478 = vmatpush2.msra.mxu0 0.0
    %1479 = vmatprep.subr.mxu0 0.0
    %1480 = vmatpush2.msra.mxu0 0.0
    %1481 = vmatprep.subr.mxu0 0.0
    %1482 = vmatpush2.msra.mxu0 0.0
    %1483 = vmatprep.subr.mxu0 0.0
    %1484 = vmatpush2.msra.mxu0 0.0
    %1485 = vmatprep.subr.mxu0 0.0
    %1486 = vmatpush2.msra.mxu0 0.0
    %1487 = vmatprep.subr.mxu0 0.0
    %1488 = vmatpush2.msra.mxu0 0.0
    %1489 = vmatprep.subr.mxu0 0.0
    %1490 = vmatpush2.msra.mxu0 0.0
    %1491 = vmatprep.subr.mxu0 0.0
    %1492 = vmatpush2.msra.mxu0 0.0
    %1493 = vmatprep.subr.mxu0 0.0
    %1494 = vmatpush2.msra.mxu0 0.0
    %1495 = vmatprep.subr.mxu0 0.0
    %1496 = vmatpush2.msra.mxu0 0.0
    %1497 = vmatprep.mubr.f32.mxu0 0.0
    %1498 = vmatmul.mubr.f32.gmra.mxu0 %v1431
    %v1499 = vpop.f32.mrf.mxu0
    %v1500 = vadd.f32 %v232, %v1499
    %v1501 = vpop.f32.mrf.mxu0
    %1502 = vdwg.mxu0
    %v1503 = vadd.f32 %v1419, %v1500
    %v1504 = vxor.u32 %v1503, 2147483648
    %v1505 = vmul.f32 %v1504, 1.442695
    %v1506 = vpow.pop %v1505
    %v1507 = vadd.f32 %v1506, 1.0
    %v1508 = vrcp.pop %v1507
    %v1509 = vmul.f32 1.0, %v1508
    %1511 = vrot.lane.b32.xlu0 %v1500, 96
    %v1512 = vpop.permute.xlu0 %1511
    %v1514 = vmul.f32 %v1509, %v1512
    %1516 = vrot.lane.b32.xlu0 %v1514, 32
    %v1517 = vpop.permute.xlu0 %1516
    %v1519 = vadd.f32 %v1419, %v1517
    %v1520 = vtanh.pop %v1519
    %v1521 = vadd.f32 %v1420, %v1500
    %v1522 = vxor.u32 %v1521, 2147483648
    %v1523 = vmul.f32 %v1522, 1.442695
    %v1524 = vpow.pop %v1523
    %v1525 = vadd.f32 %v1524, 1.0
    %v1526 = vrcp.pop %v1525
    %v1527 = vmul.f32 1.0, %v1526
    %v1528 = vmul.f32 %v1527, %v1512
    %1530 = vrot.lane.b32.xlu0 %v1528, 32
    %v1531 = vpop.permute.xlu0 %1530
    %v1533 = vadd.f32 %v1420, %v1531
    %v1534 = vtanh.pop %v1533
    %v1535 = vsub.f32 %v1396, %v1520
    %1537 = vrot.lane.b32.xlu0 %v1535, 112
    %v1538 = vpop.permute.xlu0 %1537
    %v1540 = vmul.f32 %v1509, %v1538
    %1542 = vrot.lane.b32.xlu0 %v1540, 16
    %v1543 = vpop.permute.xlu0 %1542
    %v1545 = vadd.f32 %v1520, %v1543
    %v1546 = vsub.f32 %v1404, %v1534
    %1548 = vrot.lane.b32.xlu0 %v1546, 112
    %v1549 = vpop.permute.xlu0 %1548
    %v1551 = vmul.f32 %v1527, %v1549
    %1553 = vrot.lane.b32.xlu0 %v1551, 16
    %v1554 = vpop.permute.xlu0 %1553
    %v1556 = vadd.f32 %v1534, %v1554
    %v1557 = vsub.f32 %v1545, %v1396
    %1559 = vset.pattern.permute.xlu0 0
    %1560 = vperm.xlu0 %1559, %v1417
    %v1561 = vpop.permute.xlu0 %1560
    %v1563 = vmul.f32 %v1561, %v1557
    %v1564 = vadd.f32 %v1396, %v1563
    %v1565 = vsub.f32 %v1556, %v1404
    %1567 = vset.pattern.permute.xlu0 0
    %1568 = vperm.xlu0 %1567, %v1418
    %v1569 = vpop.permute.xlu0 %1568
    %v1571 = vmul.f32 %v1569, %v1565
    %v1572 = vadd.f32 %v1404, %v1571
    %v1573 = vmul.f32 %v1561, %v1564
    %v1574 = vmul.f32 %v1569, %v1572
    %1576 = vrot.lane.b32.xlu0 %v1573, 96
    %v1577 = vpop.permute.xlu0 %1576
    %1579 = vst.msk [vmem:[%s388] sm:$0xff] %vm382, %v1577
    %1581 = vrot.lane.b32.xlu0 %v1574, 64
    %v1582 = vpop.permute.xlu0 %1581
    %1584 = vst.msk [vmem:[%s381] sm:$0xff] %vm389, %v1582
    %v1585 = vld [vmem:[#allocation3] sm:$0xff]
    %v1586 = vld [vmem:[#allocation3 + $0x8] sm:$0xff]
    %v1587 = vld [vmem:[#allocation3 + $0x10] sm:$0xff]
    %v1588 = vld [vmem:[#allocation3 + $0x18] sm:$0xff]
    %v1589 = vld [vmem:[#allocation3 + $0x20] sm:$0xff]
    %v1590 = vld [vmem:[#allocation3 + $0x28] sm:$0xff]
    %v1591 = vld [vmem:[#allocation3 + $0x30] sm:$0xff]
    %v1592 = vld [vmem:[#allocation3 + $0x38] sm:$0xff]
    %v1593 = vld [vmem:[#allocation3 + $0x40] sm:$0xff]
    %v1594 = vld [vmem:[#allocation3 + $0x48] sm:$0xff]
    %v1595 = vld [vmem:[#allocation3 + $0x50] sm:$0xff]
    %v1596 = vld [vmem:[#allocation3 + $0x58] sm:$0xff]
    %v1597 = vsel %vm73, %v1587, 0.0
    %v1598 = vsel %vm73, %v1588, 0.0
    %v1599 = vadd.f32 %v1597, %v1598
    %v1600 = vsel %vm73, %v1589, 0.0
    %v1601 = vadd.f32 %v1599, %v1600
    %v1602 = vsel %vm73, %v1590, 0.0
    %v1603 = vadd.f32 %v1601, %v1602
    %v1604 = vsel %vm73, %v1591, 0.0
    %v1605 = vadd.f32 %v1603, %v1604
    %v1606 = vsel %vm73, %v1592, 0.0
    %v1607 = vadd.f32 %v1605, %v1606
    %v1608 = vsel %vm73, %v1593, 0.0
    %v1609 = vadd.f32 %v1607, %v1608
    %v1610 = vsel %vm73, %v1594, 0.0
    %v1611 = vadd.f32 %v1609, %v1610
    %v1612 = vld [vmem:[%s2] sm:$0xff]
    %1614 = vset.pattern.permute.xlu0 0
    %1615 = vperm.xlu0 %1614, %v1612
    %v1616 = vpop.permute.xlu0 %1615
    %v1618 = vmul.f32 %v1611, %v1616
    %v1619 = vld [vmem:[%s3] sm:$0xff]
    %v1620 = vld [vmem:[%s12] sm:$0xff]
    %v1621 = vld [vmem:[%s12 + $0x8] sm:$0xff]
    %v1622 = vld [vmem:[%s12 + $0x10] sm:$0xff]
    %v1623 = vld [vmem:[%s12 + $0x18] sm:$0xff]
    %v1625 = vsel %vm73, %v1618, 0
    %1627 = vmatprep.subr.mxu0 0.0
    %1628 = vmatpush1.msra.mxu0 0.0
    %1629 = vmatprep.subr.mxu0 0.0
    %1630 = vmatpush1.msra.mxu0 0.0
    %1631 = vmatprep.subr.mxu0 0.0
    %1632 = vmatpush1.msra.mxu0 0.0
    %1633 = vmatprep.subr.mxu0 0.0
    %1634 = vmatpush1.msra.mxu0 0.0
    %1635 = vmatprep.subr.mxu0 0.0
    %1636 = vmatpush1.msra.mxu0 0.0
    %1637 = vmatprep.subr.mxu0 0.0
    %1638 = vmatpush1.msra.mxu0 0.0
    %1639 = vmatprep.subr.mxu0 0.0
    %1640 = vmatpush1.msra.mxu0 0.0
    %1641 = vmatprep.subr.mxu0 0.0
    %1642 = vmatpush1.msra.mxu0 0.0
    %1643 = vmatprep.subr.mxu0 0.0
    %1644 = vmatpush1.msra.mxu0 0.0
    %1645 = vmatprep.subr.mxu0 0.0
    %1646 = vmatpush1.msra.mxu0 0.0
    %1647 = vmatprep.subr.mxu0 0.0
    %1648 = vmatpush1.msra.mxu0 0.0
    %1649 = vmatprep.subr.mxu0 0.0
    %1650 = vmatpush1.msra.mxu0 0.0
    %1651 = vmatprep.subr.mxu0 0.0
    %1652 = vmatpush1.msra.mxu0 %v1623
    %1653 = vmatprep.subr.mxu0 0.0
    %1654 = vmatpush1.msra.mxu0 %v1622
    %1655 = vmatprep.subr.mxu0 0.0
    %1656 = vmatpush1.msra.mxu0 %v1621
    %1657 = vmatprep.subr.mxu0 0.0
    %1658 = vmatpush1.msra.mxu0 %v1620
    %1659 = vmatprep.subr.mxu0 0.0
    %1660 = vmatpush2.msra.mxu0 0.0
    %1661 = vmatprep.subr.mxu0 0.0
    %1662 = vmatpush2.msra.mxu0 0.0
    %1663 = vmatprep.subr.mxu0 0.0
    %1664 = vmatpush2.msra.mxu0 0.0
    %1665 = vmatprep.subr.mxu0 0.0
    %1666 = vmatpush2.msra.mxu0 0.0
    %1667 = vmatprep.subr.mxu0 0.0
    %1668 = vmatpush2.msra.mxu0 0.0
    %1669 = vmatprep.subr.mxu0 0.0
    %1670 = vmatpush2.msra.mxu0 0.0
    %1671 = vmatprep.subr.mxu0 0.0
    %1672 = vmatpush2.msra.mxu0 0.0
    %1673 = vmatprep.subr.mxu0 0.0
    %1674 = vmatpush2.msra.mxu0 0.0
    %1675 = vmatprep.subr.mxu0 0.0
    %1676 = vmatpush2.msra.mxu0 0.0
    %1677 = vmatprep.subr.mxu0 0.0
    %1678 = vmatpush2.msra.mxu0 0.0
    %1679 = vmatprep.subr.mxu0 0.0
    %1680 = vmatpush2.msra.mxu0 0.0
    %1681 = vmatprep.subr.mxu0 0.0
    %1682 = vmatpush2.msra.mxu0 0.0
    %1683 = vmatprep.subr.mxu0 0.0
    %1684 = vmatpush2.msra.mxu0 0.0
    %1685 = vmatprep.subr.mxu0 0.0
    %1686 = vmatpush2.msra.mxu0 0.0
    %1687 = vmatprep.subr.mxu0 0.0
    %1688 = vmatpush2.msra.mxu0 0.0
    %1689 = vmatprep.subr.mxu0 0.0
    %1690 = vmatpush2.msra.mxu0 0.0
    %1691 = vmatprep.mubr.f32.mxu0 0.0
    %1692 = vmatmul.mubr.f32.gmra.mxu0 %v1625
    %v1693 = vpop.f32.mrf.mxu0
    %v1694 = vadd.f32 0.0, %v1693
    %v1695 = vpop.f32.mrf.mxu0
    %1696 = vdwg.mxu0
    %v1697 = vadd.f32 %v1619, %v1694
    %v1698 = vld [vmem:[%s8] sm:$0xff]
    %v1699 = vld [vmem:[%s8 + $0x8] sm:$0xff]
    %v1700 = vld [vmem:[%s8 + $0x10] sm:$0xff]
    %v1701 = vld [vmem:[%s8 + $0x18] sm:$0xff]
    %v1702 = vld [vmem:[%s8 + $0x20] sm:$0xff]
    %v1703 = vld [vmem:[%s8 + $0x28] sm:$0xff]
    %v1704 = vld [vmem:[%s8 + $0x30] sm:$0xff]
    %v1705 = vld [vmem:[%s8 + $0x38] sm:$0xff]
    %v1706 = vld [vmem:[%s9] sm:$0x1]
    %v1708 = vsel %vm73, %v1587, 0
    %v1711 = vsel %vm73, %v1588, 0
    %v1714 = vsel %vm73, %v1589, 0
    %v1717 = vsel %vm73, %v1590, 0
    %v1720 = vsel %vm73, %v1591, 0
    %v1723 = vsel %vm73, %v1592, 0
    %v1726 = vsel %vm73, %v1593, 0
    %v1729 = vsel %vm73, %v1594, 0
    %v1732 = vsel %vm73, %v1595, 0
    %1734 = vmatprep.subr.mxu0 0.0
    %1735 = vmatpush1.msra.mxu0 0.0
    %1736 = vmatprep.subr.mxu0 0.0
    %1737 = vmatpush1.msra.mxu0 0.0
    %1738 = vmatprep.subr.mxu0 0.0
    %1739 = vmatpush1.msra.mxu0 0.0
    %1740 = vmatprep.subr.mxu0 0.0
    %1741 = vmatpush1.msra.mxu0 0.0
    %1742 = vmatprep.subr.mxu0 0.0
    %1743 = vmatpush1.msra.mxu0 0.0
    %1744 = vmatprep.subr.mxu0 0.0
    %1745 = vmatpush1.msra.mxu0 0.0
    %1746 = vmatprep.subr.mxu0 0.0
    %1747 = vmatpush1.msra.mxu0 0.0
    %1748 = vmatprep.subr.mxu0 0.0
    %1749 = vmatpush1.msra.mxu0 0.0
    %1750 = vmatprep.subr.mxu0 0.0
    %1751 = vmatpush1.msra.mxu0 0.0
    %1752 = vmatprep.subr.mxu0 0.0
    %1753 = vmatpush1.msra.mxu0 0.0
    %1754 = vmatprep.subr.mxu0 0.0
    %1755 = vmatpush1.msra.mxu0 0.0
    %1756 = vmatprep.subr.mxu0 0.0
    %1757 = vmatpush1.msra.mxu0 0.0
    %1758 = vmatprep.subr.mxu0 0.0
    %1759 = vmatpush1.msra.mxu0 %v1705
    %1760 = vmatprep.subr.mxu0 0.0
    %1761 = vmatpush1.msra.mxu0 %v1704
    %1762 = vmatprep.subr.mxu0 0.0
    %1763 = vmatpush1.msra.mxu0 %v1703
    %1764 = vmatprep.subr.mxu0 0.0
    %1765 = vmatpush1.msra.mxu0 %v1702
    %1766 = vmatprep.subr.mxu0 0.0
    %1767 = vmatpush2.msra.mxu0 0.0
    %1768 = vmatprep.subr.mxu0 0.0
    %1769 = vmatpush2.msra.mxu0 0.0
    %1770 = vmatprep.subr.mxu0 0.0
    %1771 = vmatpush2.msra.mxu0 0.0
    %1772 = vmatprep.subr.mxu0 0.0
    %1773 = vmatpush2.msra.mxu0 0.0
    %1774 = vmatprep.subr.mxu0 0.0
    %1775 = vmatpush2.msra.mxu0 0.0
    %1776 = vmatprep.subr.mxu0 0.0
    %1777 = vmatpush2.msra.mxu0 0.0
    %1778 = vmatprep.subr.mxu0 0.0
    %1779 = vmatpush2.msra.mxu0 0.0
    %1780 = vmatprep.subr.mxu0 0.0
    %1781 = vmatpush2.msra.mxu0 0.0
    %1782 = vmatprep.subr.mxu0 0.0
    %1783 = vmatpush2.msra.mxu0 0.0
    %1784 = vmatprep.subr.mxu0 0.0
    %1785 = vmatpush2.msra.mxu0 0.0
    %1786 = vmatprep.subr.mxu0 0.0
    %1787 = vmatpush2.msra.mxu0 0.0
    %1788 = vmatprep.subr.mxu0 0.0
    %1789 = vmatpush2.msra.mxu0 0.0
    %1790 = vmatprep.subr.mxu0 0.0
    %1791 = vmatpush2.msra.mxu0 0.0
    %1792 = vmatprep.subr.mxu0 0.0
    %1793 = vmatpush2.msra.mxu0 0.0
    %1794 = vmatprep.subr.mxu0 0.0
    %1795 = vmatpush2.msra.mxu0 0.0
    %1796 = vmatprep.subr.mxu0 0.0
    %1797 = vmatpush2.msra.mxu0 0.0
    %1798 = vmatprep.mubr.f32.mxu0 0.0
    %1799 = vmatmul.mubr.f32.gmra.mxu0 %v1708
    %v1800 = vpop.f32.mrf.mxu0
    %v1801 = vadd.f32 0.0, %v1800
    %v1802 = vpop.f32.mrf.mxu0
    %1803 = vmatprep.mubr.f32.mxu0 0.0
    %1804 = vmatmul.mubr.f32.gmra.mxu0 %v1711
    %v1805 = vpop.f32.mrf.mxu0
    %v1806 = vadd.f32 0.0, %v1805
    %v1807 = vpop.f32.mrf.mxu0
    %1808 = vmatprep.mubr.f32.mxu0 0.0
    %1809 = vmatmul.mubr.f32.gmra.mxu0 %v1714
    %v1810 = vpop.f32.mrf.mxu0
    %v1811 = vadd.f32 0.0, %v1810
    %v1812 = vpop.f32.mrf.mxu0
    %1813 = vmatprep.mubr.f32.mxu0 0.0
    %1814 = vmatmul.mubr.f32.gmra.mxu0 %v1717
    %v1815 = vpop.f32.mrf.mxu0
    %v1816 = vadd.f32 0.0, %v1815
    %v1817 = vpop.f32.mrf.mxu0
    %1818 = vmatprep.mubr.f32.mxu0 0.0
    %1819 = vmatmul.mubr.f32.gmra.mxu0 %v1720
    %v1820 = vpop.f32.mrf.mxu0
    %v1821 = vadd.f32 0.0, %v1820
    %v1822 = vpop.f32.mrf.mxu0
    %1823 = vmatprep.mubr.f32.mxu0 0.0
    %1824 = vmatmul.mubr.f32.gmra.mxu0 %v1723
    %v1825 = vpop.f32.mrf.mxu0
    %v1826 = vadd.f32 0.0, %v1825
    %v1827 = vpop.f32.mrf.mxu0
    %1828 = vmatprep.mubr.f32.mxu0 0.0
    %1829 = vmatmul.mubr.f32.gmra.mxu0 %v1726
    %v1830 = vpop.f32.mrf.mxu0
    %v1831 = vadd.f32 0.0, %v1830
    %v1832 = vpop.f32.mrf.mxu0
    %1833 = vmatprep.mubr.f32.mxu0 0.0
    %1834 = vmatmul.mubr.f32.gmra.mxu0 %v1729
    %v1835 = vpop.f32.mrf.mxu0
    %v1836 = vadd.f32 0.0, %v1835
    %v1837 = vpop.f32.mrf.mxu0
    %1838 = vmatprep.mubr.f32.mxu0 0.0
    %1839 = vmatmul.mubr.f32.gmra.mxu0 %v1732
    %v1840 = vpop.f32.mrf.mxu0
    %v1841 = vadd.f32 0.0, %v1840
    %v1842 = vpop.f32.mrf.mxu0
    %1843 = vdwg.mxu0
    %v1845 = vsel %vm73, %v1586, 0
    %1847 = vmatprep.subr.mxu0 0.0
    %1848 = vmatpush1.msra.mxu0 0.0
    %1849 = vmatprep.subr.mxu0 0.0
    %1850 = vmatpush1.msra.mxu0 0.0
    %1851 = vmatprep.subr.mxu0 0.0
    %1852 = vmatpush1.msra.mxu0 0.0
    %1853 = vmatprep.subr.mxu0 0.0
    %1854 = vmatpush1.msra.mxu0 0.0
    %1855 = vmatprep.subr.mxu0 0.0
    %1856 = vmatpush1.msra.mxu0 0.0
    %1857 = vmatprep.subr.mxu0 0.0
    %1858 = vmatpush1.msra.mxu0 0.0
    %1859 = vmatprep.subr.mxu0 0.0
    %1860 = vmatpush1.msra.mxu0 0.0
    %1861 = vmatprep.subr.mxu0 0.0
    %1862 = vmatpush1.msra.mxu0 0.0
    %1863 = vmatprep.subr.mxu0 0.0
    %1864 = vmatpush1.msra.mxu0 0.0
    %1865 = vmatprep.subr.mxu0 0.0
    %1866 = vmatpush1.msra.mxu0 0.0
    %1867 = vmatprep.subr.mxu0 0.0
    %1868 = vmatpush1.msra.mxu0 0.0
    %1869 = vmatprep.subr.mxu0 0.0
    %1870 = vmatpush1.msra.mxu0 0.0
    %1871 = vmatprep.subr.mxu0 0.0
    %1872 = vmatpush1.msra.mxu0 %v1701
    %1873 = vmatprep.subr.mxu0 0.0
    %1874 = vmatpush1.msra.mxu0 %v1700
    %1875 = vmatprep.subr.mxu0 0.0
    %1876 = vmatpush1.msra.mxu0 %v1699
    %1877 = vmatprep.subr.mxu0 0.0
    %1878 = vmatpush1.msra.mxu0 %v1698
    %1879 = vmatprep.subr.mxu0 0.0
    %1880 = vmatpush2.msra.mxu0 0.0
    %1881 = vmatprep.subr.mxu0 0.0
    %1882 = vmatpush2.msra.mxu0 0.0
    %1883 = vmatprep.subr.mxu0 0.0
    %1884 = vmatpush2.msra.mxu0 0.0
    %1885 = vmatprep.subr.mxu0 0.0
    %1886 = vmatpush2.msra.mxu0 0.0
    %1887 = vmatprep.subr.mxu0 0.0
    %1888 = vmatpush2.msra.mxu0 0.0
    %1889 = vmatprep.subr.mxu0 0.0
    %1890 = vmatpush2.msra.mxu0 0.0
    %1891 = vmatprep.subr.mxu0 0.0
    %1892 = vmatpush2.msra.mxu0 0.0
    %1893 = vmatprep.subr.mxu0 0.0
    %1894 = vmatpush2.msra.mxu0 0.0
    %1895 = vmatprep.subr.mxu0 0.0
    %1896 = vmatpush2.msra.mxu0 0.0
    %1897 = vmatprep.subr.mxu0 0.0
    %1898 = vmatpush2.msra.mxu0 0.0
    %1899 = vmatprep.subr.mxu0 0.0
    %1900 = vmatpush2.msra.mxu0 0.0
    %1901 = vmatprep.subr.mxu0 0.0
    %1902 = vmatpush2.msra.mxu0 0.0
    %1903 = vmatprep.subr.mxu0 0.0
    %1904 = vmatpush2.msra.mxu0 0.0
    %1905 = vmatprep.subr.mxu0 0.0
    %1906 = vmatpush2.msra.mxu0 0.0
    %1907 = vmatprep.subr.mxu0 0.0
    %1908 = vmatpush2.msra.mxu0 0.0
    %1909 = vmatprep.subr.mxu0 0.0
    %1910 = vmatpush2.msra.mxu0 0.0
    %1911 = vmatprep.mubr.f32.mxu0 0.0
    %1912 = vmatmul.mubr.f32.gmra.mxu0 %v1845
    %v1913 = vpop.f32.mrf.mxu0
    %v1914 = vadd.f32 %v1801, %v1913
    %v1915 = vpop.f32.mrf.mxu0
    %1916 = vmatprep.mubr.f32.mxu0 0.0
    %1917 = vmatmul.mubr.f32.gmra.mxu0 %v1708
    %v1918 = vpop.f32.mrf.mxu0
    %v1919 = vadd.f32 %v1806, %v1918
    %v1920 = vpop.f32.mrf.mxu0
    %1921 = vmatprep.mubr.f32.mxu0 0.0
    %1922 = vmatmul.mubr.f32.gmra.mxu0 %v1711
    %v1923 = vpop.f32.mrf.mxu0
    %v1924 = vadd.f32 %v1811, %v1923
    %v1925 = vpop.f32.mrf.mxu0
    %1926 = vmatprep.mubr.f32.mxu0 0.0
    %1927 = vmatmul.mubr.f32.gmra.mxu0 %v1714
    %v1928 = vpop.f32.mrf.mxu0
    %v1929 = vadd.f32 %v1816, %v1928
    %v1930 = vpop.f32.mrf.mxu0
    %1931 = vmatprep.mubr.f32.mxu0 0.0
    %1932 = vmatmul.mubr.f32.gmra.mxu0 %v1717
    %v1933 = vpop.f32.mrf.mxu0
    %v1934 = vadd.f32 %v1821, %v1933
    %v1935 = vpop.f32.mrf.mxu0
    %1936 = vmatprep.mubr.f32.mxu0 0.0
    %1937 = vmatmul.mubr.f32.gmra.mxu0 %v1720
    %v1938 = vpop.f32.mrf.mxu0
    %v1939 = vadd.f32 %v1826, %v1938
    %v1940 = vpop.f32.mrf.mxu0
    %1941 = vmatprep.mubr.f32.mxu0 0.0
    %1942 = vmatmul.mubr.f32.gmra.mxu0 %v1723
    %v1943 = vpop.f32.mrf.mxu0
    %v1944 = vadd.f32 %v1831, %v1943
    %v1945 = vpop.f32.mrf.mxu0
    %1946 = vmatprep.mubr.f32.mxu0 0.0
    %1947 = vmatmul.mubr.f32.gmra.mxu0 %v1726
    %v1948 = vpop.f32.mrf.mxu0
    %v1949 = vadd.f32 %v1836, %v1948
    %v1950 = vpop.f32.mrf.mxu0
    %1951 = vmatprep.mubr.f32.mxu0 0.0
    %1952 = vmatmul.mubr.f32.gmra.mxu0 %v1729
    %v1953 = vpop.f32.mrf.mxu0
    %v1954 = vadd.f32 %v1841, %v1953
    %v1955 = vpop.f32.mrf.mxu0
    %1956 = vdwg.mxu0
    %v1958 = vlaneseq
    %v1959 = vshrl.u32 %v1958, 7
    %v1960 = vsub.s32 0, %v1959
    %v1961 = vrot.slane %v1706, %v1960
    %v1963 = vadd.f32 %v1914, %v1961
    %v1964 = vadd.f32 %v1919, %v1961
    %v1965 = vadd.f32 %v1924, %v1961
    %v1966 = vadd.f32 %v1929, %v1961
    %v1967 = vadd.f32 %v1934, %v1961
    %v1968 = vadd.f32 %v1939, %v1961
    %v1969 = vadd.f32 %v1944, %v1961
    %v1970 = vadd.f32 %v1949, %v1961
    %v1971 = vadd.f32 %v1954, %v1961
    %v1972 = vmax.f32 %v1963, 0.0
    %v1973 = vmax.f32 %v1964, 0.0
    %v1974 = vmax.f32 %v1965, 0.0
    %v1975 = vmax.f32 %v1966, 0.0
    %v1976 = vmax.f32 %v1967, 0.0
    %v1977 = vmax.f32 %v1968, 0.0
    %v1978 = vmax.f32 %v1969, 0.0
    %v1979 = vmax.f32 %v1970, 0.0
    %v1980 = vmax.f32 %v1971, 0.0
    %vm1981 = vcmask 64512
    %v1982 = vsel %vm1981, %v1972, -inf
    %v1983 = vsel %vm1981, %v1973, -inf
    %v1984 = vsel %vm1981, %v1974, -inf
    %v1985 = vsel %vm1981, %v1975, -inf
    %v1986 = vsel %vm1981, %v1976, -inf
    %v1987 = vmax.f32 %v1982, %v1986
    %v1988 = vsel %vm1981, %v1977, -inf
    %v1989 = vmax.f32 %v1983, %v1988
    %v1990 = vsel %vm1981, %v1978, -inf
    %v1991 = vmax.f32 %v1984, %v1990
    %v1992 = vsel %vm1981, %v1979, -inf
    %v1993 = vmax.f32 %v1985, %v1992
    %v1994 = vsel %vm1981, %v1980, -inf
    %v1995 = vmax.f32 %v1987, %v1994
    %v1996 = vmax.f32 %v1995, %v1989
    %v1997 = vmax.f32 %v1991, %v1993
    %v1998 = vmax.f32 %v1996, %v1997
    %v1999 = vld [vmem:[%s13] sm:$0xff]
    %v2001 = vsel %vm1981, %v1998, 0
    %2003 = vmatprep.subr.mxu0 0.0
    %2004 = vmatpush1.msra.mxu0 0.0
    %2005 = vmatprep.subr.mxu0 0.0
    %2006 = vmatpush1.msra.mxu0 0.0
    %2007 = vmatprep.subr.mxu0 0.0
    %2008 = vmatpush1.msra.mxu0 0.0
    %2009 = vmatprep.subr.mxu0 0.0
    %2010 = vmatpush1.msra.mxu0 0.0
    %2011 = vmatprep.subr.mxu0 0.0
    %2012 = vmatpush1.msra.mxu0 0.0
    %2013 = vmatprep.subr.mxu0 0.0
    %2014 = vmatpush1.msra.mxu0 0.0
    %2015 = vmatprep.subr.mxu0 0.0
    %2016 = vmatpush1.msra.mxu0 0.0
    %2017 = vmatprep.subr.mxu0 0.0
    %2018 = vmatpush1.msra.mxu0 0.0
    %2019 = vmatprep.subr.mxu0 0.0
    %2020 = vmatpush1.msra.mxu0 0.0
    %2021 = vmatprep.subr.mxu0 0.0
    %2022 = vmatpush1.msra.mxu0 0.0
    %2023 = vmatprep.subr.mxu0 0.0
    %2024 = vmatpush1.msra.mxu0 0.0
    %2025 = vmatprep.subr.mxu0 0.0
    %2026 = vmatpush1.msra.mxu0 0.0
    %2027 = vmatprep.subr.mxu0 0.0
    %2028 = vmatpush1.msra.mxu0 0.0
    %2029 = vmatprep.subr.mxu0 0.0
    %2030 = vmatpush1.msra.mxu0 0.0
    %2031 = vmatprep.subr.mxu0 0.0
    %2032 = vmatpush1.msra.mxu0 0.0
    %2033 = vmatprep.subr.mxu0 0.0
    %2034 = vmatpush1.msra.mxu0 %v1999
    %2035 = vmatprep.subr.mxu0 0.0
    %2036 = vmatpush2.msra.mxu0 0.0
    %2037 = vmatprep.subr.mxu0 0.0
    %2038 = vmatpush2.msra.mxu0 0.0
    %2039 = vmatprep.subr.mxu0 0.0
    %2040 = vmatpush2.msra.mxu0 0.0
    %2041 = vmatprep.subr.mxu0 0.0
    %2042 = vmatpush2.msra.mxu0 0.0
    %2043 = vmatprep.subr.mxu0 0.0
    %2044 = vmatpush2.msra.mxu0 0.0
    %2045 = vmatprep.subr.mxu0 0.0
    %2046 = vmatpush2.msra.mxu0 0.0
    %2047 = vmatprep.subr.mxu0 0.0
    %2048 = vmatpush2.msra.mxu0 0.0
    %2049 = vmatprep.subr.mxu0 0.0
    %2050 = vmatpush2.msra.mxu0 0.0
    %2051 = vmatprep.subr.mxu0 0.0
    %2052 = vmatpush2.msra.mxu0 0.0
    %2053 = vmatprep.subr.mxu0 0.0
    %2054 = vmatpush2.msra.mxu0 0.0
    %2055 = vmatprep.subr.mxu0 0.0
    %2056 = vmatpush2.msra.mxu0 0.0
    %2057 = vmatprep.subr.mxu0 0.0
    %2058 = vmatpush2.msra.mxu0 0.0
    %2059 = vmatprep.subr.mxu0 0.0
    %2060 = vmatpush2.msra.mxu0 0.0
    %2061 = vmatprep.subr.mxu0 0.0
    %2062 = vmatpush2.msra.mxu0 0.0
    %2063 = vmatprep.subr.mxu0 0.0
    %2064 = vmatpush2.msra.mxu0 0.0
    %2065 = vmatprep.subr.mxu0 0.0
    %2066 = vmatpush2.msra.mxu0 0.0
    %2067 = vmatprep.mubr.f32.mxu0 0.0
    %2068 = vmatmul.mubr.f32.gmra.mxu0 %v2001
    %v2069 = vpop.f32.mrf.mxu0
    %v2070 = vadd.f32 0.0, %v2069
    %v2071 = vpop.f32.mrf.mxu0
    %2072 = vdwg.mxu0
    %v2073 = vadd.f32 %v1697, %v2070
    %v2074 = vld [vmem:[%s10] sm:$0xff]
    %v2075 = vld [vmem:[%s10 + $0x8] sm:$0xff]
    %v2076 = vld [vmem:[%s10 + $0x10] sm:$0xff]
    %v2077 = vld [vmem:[%s10 + $0x18] sm:$0xff]
    %v2078 = vld [vmem:[%s10 + $0x20] sm:$0xff]
    %v2079 = vld [vmem:[%s10 + $0x28] sm:$0xff]
    %v2080 = vld [vmem:[%s10 + $0x30] sm:$0xff]
    %v2081 = vld [vmem:[%s10 + $0x38] sm:$0xff]
    %v2082 = vld [vmem:[%s10 + $0x40] sm:$0xff]
    %v2083 = vld [vmem:[%s10 + $0x48] sm:$0xff]
    %v2084 = vld [vmem:[%s10 + $0x50] sm:$0xff]
    %v2085 = vld [vmem:[%s10 + $0x58] sm:$0xff]
    %v2086 = vld [vmem:[%s11] sm:$0x1]
    %2087 = vmatprep.subr.mxu0 0.0
    %2088 = vmatpush1.msra.mxu0 0.0
    %2089 = vmatprep.subr.mxu0 0.0
    %2090 = vmatpush1.msra.mxu0 0.0
    %2091 = vmatprep.subr.mxu0 0.0
    %2092 = vmatpush1.msra.mxu0 0.0
    %2093 = vmatprep.subr.mxu0 0.0
    %2094 = vmatpush1.msra.mxu0 0.0
    %2095 = vmatprep.subr.mxu0 0.0
    %2096 = vmatpush1.msra.mxu0 0.0
    %2097 = vmatprep.subr.mxu0 0.0
    %2098 = vmatpush1.msra.mxu0 0.0
    %2099 = vmatprep.subr.mxu0 0.0
    %2100 = vmatpush1.msra.mxu0 0.0
    %2101 = vmatprep.subr.mxu0 0.0
    %2102 = vmatpush1.msra.mxu0 0.0
    %2103 = vmatprep.subr.mxu0 0.0
    %2104 = vmatpush1.msra.mxu0 0.0
    %2105 = vmatprep.subr.mxu0 0.0
    %2106 = vmatpush1.msra.mxu0 0.0
    %2107 = vmatprep.subr.mxu0 0.0
    %2108 = vmatpush1.msra.mxu0 0.0
    %2109 = vmatprep.subr.mxu0 0.0
    %2110 = vmatpush1.msra.mxu0 0.0
    %2111 = vmatprep.subr.mxu0 0.0
    %2112 = vmatpush1.msra.mxu0 %v2081
    %2113 = vmatprep.subr.mxu0 0.0
    %2114 = vmatpush1.msra.mxu0 %v2080
    %2115 = vmatprep.subr.mxu0 0.0
    %2116 = vmatpush1.msra.mxu0 %v2079
    %2117 = vmatprep.subr.mxu0 0.0
    %2118 = vmatpush1.msra.mxu0 %v2078
    %2119 = vmatprep.subr.mxu0 0.0
    %2120 = vmatpush2.msra.mxu0 0.0
    %2121 = vmatprep.subr.mxu0 0.0
    %2122 = vmatpush2.msra.mxu0 0.0
    %2123 = vmatprep.subr.mxu0 0.0
    %2124 = vmatpush2.msra.mxu0 0.0
    %2125 = vmatprep.subr.mxu0 0.0
    %2126 = vmatpush2.msra.mxu0 0.0
    %2127 = vmatprep.subr.mxu0 0.0
    %2128 = vmatpush2.msra.mxu0 0.0
    %2129 = vmatprep.subr.mxu0 0.0
    %2130 = vmatpush2.msra.mxu0 0.0
    %2131 = vmatprep.subr.mxu0 0.0
    %2132 = vmatpush2.msra.mxu0 0.0
    %2133 = vmatprep.subr.mxu0 0.0
    %2134 = vmatpush2.msra.mxu0 0.0
    %2135 = vmatprep.subr.mxu0 0.0
    %2136 = vmatpush2.msra.mxu0 0.0
    %2137 = vmatprep.subr.mxu0 0.0
    %2138 = vmatpush2.msra.mxu0 0.0
    %2139 = vmatprep.subr.mxu0 0.0
    %2140 = vmatpush2.msra.mxu0 0.0
    %2141 = vmatprep.subr.mxu0 0.0
    %2142 = vmatpush2.msra.mxu0 0.0
    %2143 = vmatprep.subr.mxu0 0.0
    %2144 = vmatpush2.msra.mxu0 0.0
    %2145 = vmatprep.subr.mxu0 0.0
    %2146 = vmatpush2.msra.mxu0 0.0
    %2147 = vmatprep.subr.mxu0 0.0
    %2148 = vmatpush2.msra.mxu0 0.0
    %2149 = vmatprep.subr.mxu0 0.0
    %2150 = vmatpush2.msra.mxu0 0.0
    %2151 = vmatprep.mubr.f32.mxu0 0.0
    %2152 = vmatmul.mubr.f32.gmra.mxu0 %v1845
    %v2153 = vpop.f32.mrf.mxu0
    %v2154 = vadd.f32 0.0, %v2153
    %v2155 = vpop.f32.mrf.mxu0
    %2156 = vmatprep.mubr.f32.mxu0 0.0
    %2157 = vmatmul.mubr.f32.gmra.mxu0 %v1708
    %v2158 = vpop.f32.mrf.mxu0
    %v2159 = vadd.f32 0.0, %v2158
    %v2160 = vpop.f32.mrf.mxu0
    %2161 = vmatprep.mubr.f32.mxu0 0.0
    %2162 = vmatmul.mubr.f32.gmra.mxu0 %v1711
    %v2163 = vpop.f32.mrf.mxu0
    %v2164 = vadd.f32 0.0, %v2163
    %v2165 = vpop.f32.mrf.mxu0
    %2166 = vmatprep.mubr.f32.mxu0 0.0
    %2167 = vmatmul.mubr.f32.gmra.mxu0 %v1714
    %v2168 = vpop.f32.mrf.mxu0
    %v2169 = vadd.f32 0.0, %v2168
    %v2170 = vpop.f32.mrf.mxu0
    %2171 = vmatprep.mubr.f32.mxu0 0.0
    %2172 = vmatmul.mubr.f32.gmra.mxu0 %v1717
    %v2173 = vpop.f32.mrf.mxu0
    %v2174 = vadd.f32 0.0, %v2173
    %v2175 = vpop.f32.mrf.mxu0
    %2176 = vmatprep.mubr.f32.mxu0 0.0
    %2177 = vmatmul.mubr.f32.gmra.mxu0 %v1720
    %v2178 = vpop.f32.mrf.mxu0
    %v2179 = vadd.f32 0.0, %v2178
    %v2180 = vpop.f32.mrf.mxu0
    %2181 = vmatprep.mubr.f32.mxu0 0.0
    %2182 = vmatmul.mubr.f32.gmra.mxu0 %v1723
    %v2183 = vpop.f32.mrf.mxu0
    %v2184 = vadd.f32 0.0, %v2183
    %v2185 = vpop.f32.mrf.mxu0
    %2186 = vmatprep.mubr.f32.mxu0 0.0
    %2187 = vmatmul.mubr.f32.gmra.mxu0 %v1726
    %v2188 = vpop.f32.mrf.mxu0
    %v2189 = vadd.f32 0.0, %v2188
    %v2190 = vpop.f32.mrf.mxu0
    %2191 = vmatprep.mubr.f32.mxu0 0.0
    %2192 = vmatmul.mubr.f32.gmra.mxu0 %v1729
    %v2193 = vpop.f32.mrf.mxu0
    %v2194 = vadd.f32 0.0, %v2193
    %v2195 = vpop.f32.mrf.mxu0
    %2196 = vmatprep.mubr.f32.mxu0 0.0
    %2197 = vmatmul.mubr.f32.gmra.mxu0 %v1732
    %v2198 = vpop.f32.mrf.mxu0
    %v2199 = vadd.f32 0.0, %v2198
    %v2200 = vpop.f32.mrf.mxu0
    %2201 = vdwg.mxu0
    %v2203 = vsel %vm73, %v1585, 0
    %2205 = vmatprep.subr.mxu0 0.0
    %2206 = vmatpush1.msra.mxu0 0.0
    %2207 = vmatprep.subr.mxu0 0.0
    %2208 = vmatpush1.msra.mxu0 0.0
    %2209 = vmatprep.subr.mxu0 0.0
    %2210 = vmatpush1.msra.mxu0 0.0
    %2211 = vmatprep.subr.mxu0 0.0
    %2212 = vmatpush1.msra.mxu0 0.0
    %2213 = vmatprep.subr.mxu0 0.0
    %2214 = vmatpush1.msra.mxu0 0.0
    %2215 = vmatprep.subr.mxu0 0.0
    %2216 = vmatpush1.msra.mxu0 0.0
    %2217 = vmatprep.subr.mxu0 0.0
    %2218 = vmatpush1.msra.mxu0 0.0
    %2219 = vmatprep.subr.mxu0 0.0
    %2220 = vmatpush1.msra.mxu0 0.0
    %2221 = vmatprep.subr.mxu0 0.0
    %2222 = vmatpush1.msra.mxu0 0.0
    %2223 = vmatprep.subr.mxu0 0.0
    %2224 = vmatpush1.msra.mxu0 0.0
    %2225 = vmatprep.subr.mxu0 0.0
    %2226 = vmatpush1.msra.mxu0 0.0
    %2227 = vmatprep.subr.mxu0 0.0
    %2228 = vmatpush1.msra.mxu0 0.0
    %2229 = vmatprep.subr.mxu0 0.0
    %2230 = vmatpush1.msra.mxu0 %v2077
    %2231 = vmatprep.subr.mxu0 0.0
    %2232 = vmatpush1.msra.mxu0 %v2076
    %2233 = vmatprep.subr.mxu0 0.0
    %2234 = vmatpush1.msra.mxu0 %v2075
    %2235 = vmatprep.subr.mxu0 0.0
    %2236 = vmatpush1.msra.mxu0 %v2074
    %2237 = vmatprep.subr.mxu0 0.0
    %2238 = vmatpush2.msra.mxu0 0.0
    %2239 = vmatprep.subr.mxu0 0.0
    %2240 = vmatpush2.msra.mxu0 0.0
    %2241 = vmatprep.subr.mxu0 0.0
    %2242 = vmatpush2.msra.mxu0 0.0
    %2243 = vmatprep.subr.mxu0 0.0
    %2244 = vmatpush2.msra.mxu0 0.0
    %2245 = vmatprep.subr.mxu0 0.0
    %2246 = vmatpush2.msra.mxu0 0.0
    %2247 = vmatprep.subr.mxu0 0.0
    %2248 = vmatpush2.msra.mxu0 0.0
    %2249 = vmatprep.subr.mxu0 0.0
    %2250 = vmatpush2.msra.mxu0 0.0
    %2251 = vmatprep.subr.mxu0 0.0
    %2252 = vmatpush2.msra.mxu0 0.0
    %2253 = vmatprep.subr.mxu0 0.0
    %2254 = vmatpush2.msra.mxu0 0.0
    %2255 = vmatprep.subr.mxu0 0.0
    %2256 = vmatpush2.msra.mxu0 0.0
    %2257 = vmatprep.subr.mxu0 0.0
    %2258 = vmatpush2.msra.mxu0 0.0
    %2259 = vmatprep.subr.mxu0 0.0
    %2260 = vmatpush2.msra.mxu0 0.0
    %2261 = vmatprep.subr.mxu0 0.0
    %2262 = vmatpush2.msra.mxu0 0.0
    %2263 = vmatprep.subr.mxu0 0.0
    %2264 = vmatpush2.msra.mxu0 0.0
    %2265 = vmatprep.subr.mxu0 0.0
    %2266 = vmatpush2.msra.mxu0 0.0
    %2267 = vmatprep.subr.mxu0 0.0
    %2268 = vmatpush2.msra.mxu0 0.0
    %2269 = vmatprep.mubr.f32.mxu0 0.0
    %2270 = vmatmul.mubr.f32.gmra.mxu0 %v2203
    %v2271 = vpop.f32.mrf.mxu0
    %v2272 = vadd.f32 %v2154, %v2271
    %v2273 = vpop.f32.mrf.mxu0
    %2274 = vmatprep.mubr.f32.mxu0 0.0
    %2275 = vmatmul.mubr.f32.gmra.mxu0 %v1845
    %v2276 = vpop.f32.mrf.mxu0
    %v2277 = vadd.f32 %v2159, %v2276
    %v2278 = vpop.f32.mrf.mxu0
    %2279 = vmatprep.mubr.f32.mxu0 0.0
    %2280 = vmatmul.mubr.f32.gmra.mxu0 %v1708
    %v2281 = vpop.f32.mrf.mxu0
    %v2282 = vadd.f32 %v2164, %v2281
    %v2283 = vpop.f32.mrf.mxu0
    %2284 = vmatprep.mubr.f32.mxu0 0.0
    %2285 = vmatmul.mubr.f32.gmra.mxu0 %v1711
    %v2286 = vpop.f32.mrf.mxu0
    %v2287 = vadd.f32 %v2169, %v2286
    %v2288 = vpop.f32.mrf.mxu0
    %2289 = vmatprep.mubr.f32.mxu0 0.0
    %2290 = vmatmul.mubr.f32.gmra.mxu0 %v1714
    %v2291 = vpop.f32.mrf.mxu0
    %v2292 = vadd.f32 %v2174, %v2291
    %v2293 = vpop.f32.mrf.mxu0
    %2294 = vmatprep.mubr.f32.mxu0 0.0
    %2295 = vmatmul.mubr.f32.gmra.mxu0 %v1717
    %v2296 = vpop.f32.mrf.mxu0
    %v2297 = vadd.f32 %v2179, %v2296
    %v2298 = vpop.f32.mrf.mxu0
    %2299 = vmatprep.mubr.f32.mxu0 0.0
    %2300 = vmatmul.mubr.f32.gmra.mxu0 %v1720
    %v2301 = vpop.f32.mrf.mxu0
    %v2302 = vadd.f32 %v2184, %v2301
    %v2303 = vpop.f32.mrf.mxu0
    %2304 = vmatprep.mubr.f32.mxu0 0.0
    %2305 = vmatmul.mubr.f32.gmra.mxu0 %v1723
    %v2306 = vpop.f32.mrf.mxu0
    %v2307 = vadd.f32 %v2189, %v2306
    %v2308 = vpop.f32.mrf.mxu0
    %2309 = vmatprep.mubr.f32.mxu0 0.0
    %2310 = vmatmul.mubr.f32.gmra.mxu0 %v1726
    %v2311 = vpop.f32.mrf.mxu0
    %v2312 = vadd.f32 %v2194, %v2311
    %v2313 = vpop.f32.mrf.mxu0
    %2314 = vmatprep.mubr.f32.mxu0 0.0
    %2315 = vmatmul.mubr.f32.gmra.mxu0 %v1729
    %v2316 = vpop.f32.mrf.mxu0
    %v2317 = vadd.f32 %v2199, %v2316
    %v2318 = vpop.f32.mrf.mxu0
    %2319 = vdwg.mxu0
    %v2321 = vsel %vm73, %v1596, 0
    %2323 = vmatprep.subr.mxu0 0.0
    %2324 = vmatpush1.msra.mxu0 0.0
    %2325 = vmatprep.subr.mxu0 0.0
    %2326 = vmatpush1.msra.mxu0 0.0
    %2327 = vmatprep.subr.mxu0 0.0
    %2328 = vmatpush1.msra.mxu0 0.0
    %2329 = vmatprep.subr.mxu0 0.0
    %2330 = vmatpush1.msra.mxu0 0.0
    %2331 = vmatprep.subr.mxu0 0.0
    %2332 = vmatpush1.msra.mxu0 0.0
    %2333 = vmatprep.subr.mxu0 0.0
    %2334 = vmatpush1.msra.mxu0 0.0
    %2335 = vmatprep.subr.mxu0 0.0
    %2336 = vmatpush1.msra.mxu0 0.0
    %2337 = vmatprep.subr.mxu0 0.0
    %2338 = vmatpush1.msra.mxu0 0.0
    %2339 = vmatprep.subr.mxu0 0.0
    %2340 = vmatpush1.msra.mxu0 0.0
    %2341 = vmatprep.subr.mxu0 0.0
    %2342 = vmatpush1.msra.mxu0 0.0
    %2343 = vmatprep.subr.mxu0 0.0
    %2344 = vmatpush1.msra.mxu0 0.0
    %2345 = vmatprep.subr.mxu0 0.0
    %2346 = vmatpush1.msra.mxu0 0.0
    %2347 = vmatprep.subr.mxu0 0.0
    %2348 = vmatpush1.msra.mxu0 %v2085
    %2349 = vmatprep.subr.mxu0 0.0
    %2350 = vmatpush1.msra.mxu0 %v2084
    %2351 = vmatprep.subr.mxu0 0.0
    %2352 = vmatpush1.msra.mxu0 %v2083
    %2353 = vmatprep.subr.mxu0 0.0
    %2354 = vmatpush1.msra.mxu0 %v2082
    %2355 = vmatprep.subr.mxu0 0.0
    %2356 = vmatpush2.msra.mxu0 0.0
    %2357 = vmatprep.subr.mxu0 0.0
    %2358 = vmatpush2.msra.mxu0 0.0
    %2359 = vmatprep.subr.mxu0 0.0
    %2360 = vmatpush2.msra.mxu0 0.0
    %2361 = vmatprep.subr.mxu0 0.0
    %2362 = vmatpush2.msra.mxu0 0.0
    %2363 = vmatprep.subr.mxu0 0.0
    %2364 = vmatpush2.msra.mxu0 0.0
    %2365 = vmatprep.subr.mxu0 0.0
    %2366 = vmatpush2.msra.mxu0 0.0
    %2367 = vmatprep.subr.mxu0 0.0
    %2368 = vmatpush2.msra.mxu0 0.0
    %2369 = vmatprep.subr.mxu0 0.0
    %2370 = vmatpush2.msra.mxu0 0.0
    %2371 = vmatprep.subr.mxu0 0.0
    %2372 = vmatpush2.msra.mxu0 0.0
    %2373 = vmatprep.subr.mxu0 0.0
    %2374 = vmatpush2.msra.mxu0 0.0
    %2375 = vmatprep.subr.mxu0 0.0
    %2376 = vmatpush2.msra.mxu0 0.0
    %2377 = vmatprep.subr.mxu0 0.0
    %2378 = vmatpush2.msra.mxu0 0.0
    %2379 = vmatprep.subr.mxu0 0.0
    %2380 = vmatpush2.msra.mxu0 0.0
    %2381 = vmatprep.subr.mxu0 0.0
    %2382 = vmatpush2.msra.mxu0 0.0
    %2383 = vmatprep.subr.mxu0 0.0
    %2384 = vmatpush2.msra.mxu0 0.0
    %2385 = vmatprep.subr.mxu0 0.0
    %2386 = vmatpush2.msra.mxu0 0.0
    %2387 = vmatprep.mubr.f32.mxu0 0.0
    %2388 = vmatmul.mubr.f32.gmra.mxu0 %v1708
    %v2389 = vpop.f32.mrf.mxu0
    %v2390 = vadd.f32 0.0, %v2389
    %v2391 = vpop.f32.mrf.mxu0
    %2392 = vmatprep.mubr.f32.mxu0 0.0
    %2393 = vmatmul.mubr.f32.gmra.mxu0 %v1711
    %v2394 = vpop.f32.mrf.mxu0
    %v2395 = vadd.f32 0.0, %v2394
    %v2396 = vpop.f32.mrf.mxu0
    %2397 = vmatprep.mubr.f32.mxu0 0.0
    %2398 = vmatmul.mubr.f32.gmra.mxu0 %v1714
    %v2399 = vpop.f32.mrf.mxu0
    %v2400 = vadd.f32 0.0, %v2399
    %v2401 = vpop.f32.mrf.mxu0
    %2402 = vmatprep.mubr.f32.mxu0 0.0
    %2403 = vmatmul.mubr.f32.gmra.mxu0 %v1717
    %v2404 = vpop.f32.mrf.mxu0
    %v2405 = vadd.f32 0.0, %v2404
    %v2406 = vpop.f32.mrf.mxu0
    %2407 = vmatprep.mubr.f32.mxu0 0.0
    %2408 = vmatmul.mubr.f32.gmra.mxu0 %v1720
    %v2409 = vpop.f32.mrf.mxu0
    %v2410 = vadd.f32 0.0, %v2409
    %v2411 = vpop.f32.mrf.mxu0
    %2412 = vmatprep.mubr.f32.mxu0 0.0
    %2413 = vmatmul.mubr.f32.gmra.mxu0 %v1723
    %v2414 = vpop.f32.mrf.mxu0
    %v2415 = vadd.f32 0.0, %v2414
    %v2416 = vpop.f32.mrf.mxu0
    %2417 = vmatprep.mubr.f32.mxu0 0.0
    %2418 = vmatmul.mubr.f32.gmra.mxu0 %v1726
    %v2419 = vpop.f32.mrf.mxu0
    %v2420 = vadd.f32 0.0, %v2419
    %v2421 = vpop.f32.mrf.mxu0
    %2422 = vmatprep.mubr.f32.mxu0 0.0
    %2423 = vmatmul.mubr.f32.gmra.mxu0 %v1729
    %v2424 = vpop.f32.mrf.mxu0
    %v2425 = vadd.f32 0.0, %v2424
    %v2426 = vpop.f32.mrf.mxu0
    %2427 = vmatprep.mubr.f32.mxu0 0.0
    %2428 = vmatmul.mubr.f32.gmra.mxu0 %v1732
    %v2429 = vpop.f32.mrf.mxu0
    %v2430 = vadd.f32 0.0, %v2429
    %v2431 = vpop.f32.mrf.mxu0
    %2432 = vmatprep.mubr.f32.mxu0 0.0
    %2433 = vmatmul.mubr.f32.gmra.mxu0 %v2321
    %v2434 = vpop.f32.mrf.mxu0
    %v2435 = vadd.f32 0.0, %v2434
    %v2436 = vpop.f32.mrf.mxu0
    %2437 = vdwg.mxu0
    %v2438 = vadd.f32 %v2272, %v2390
    %v2439 = vadd.f32 %v2277, %v2395
    %v2440 = vadd.f32 %v2282, %v2400
    %v2441 = vadd.f32 %v2287, %v2405
    %v2442 = vadd.f32 %v2292, %v2410
    %v2443 = vadd.f32 %v2297, %v2415
    %v2444 = vadd.f32 %v2302, %v2420
    %v2445 = vadd.f32 %v2307, %v2425
    %v2446 = vadd.f32 %v2312, %v2430
    %v2447 = vadd.f32 %v2317, %v2435
    %v2449 = vlaneseq
    %v2450 = vshrl.u32 %v2449, 7
    %v2451 = vsub.s32 0, %v2450
    %v2452 = vrot.slane %v2086, %v2451
    %v2454 = vadd.f32 %v2438, %v2452
    %v2455 = vadd.f32 %v2439, %v2452
    %v2456 = vadd.f32 %v2440, %v2452
    %v2457 = vadd.f32 %v2441, %v2452
    %v2458 = vadd.f32 %v2442, %v2452
    %v2459 = vadd.f32 %v2443, %v2452
    %v2460 = vadd.f32 %v2444, %v2452
    %v2461 = vadd.f32 %v2445, %v2452
    %v2462 = vadd.f32 %v2446, %v2452
    %v2463 = vadd.f32 %v2447, %v2452
    %v2464 = vmax.f32 %v2454, 0.0
    %v2465 = vmax.f32 %v2455, 0.0
    %v2466 = vmax.f32 %v2456, 0.0
    %v2467 = vmax.f32 %v2457, 0.0
    %v2468 = vmax.f32 %v2458, 0.0
    %v2469 = vmax.f32 %v2459, 0.0
    %v2470 = vmax.f32 %v2460, 0.0
    %v2471 = vmax.f32 %v2461, 0.0
    %v2472 = vmax.f32 %v2462, 0.0
    %v2473 = vmax.f32 %v2463, 0.0
    %v2474 = vsel %vm1981, %v2464, -inf
    %v2475 = vsel %vm1981, %v2465, -inf
    %v2476 = vsel %vm1981, %v2466, -inf
    %v2477 = vsel %vm1981, %v2467, -inf
    %v2478 = vsel %vm1981, %v2468, -inf
    %v2479 = vmax.f32 %v2474, %v2478
    %v2480 = vsel %vm1981, %v2469, -inf
    %v2481 = vmax.f32 %v2475, %v2480
    %v2482 = vsel %vm1981, %v2470, -inf
    %v2483 = vmax.f32 %v2476, %v2482
    %v2484 = vsel %vm1981, %v2471, -inf
    %v2485 = vmax.f32 %v2477, %v2484
    %v2486 = vsel %vm1981, %v2472, -inf
    %v2487 = vmax.f32 %v2479, %v2486
    %v2488 = vsel %vm1981, %v2473, -inf
    %v2489 = vmax.f32 %v2481, %v2488
    %v2490 = vmax.f32 %v2487, %v2489
    %v2491 = vmax.f32 %v2483, %v2485
    %v2492 = vmax.f32 %v2490, %v2491
    %v2493 = vld [vmem:[%s14] sm:$0xff]
    %v2495 = vsel %vm1981, %v2492, 0
    %2497 = vmatprep.subr.mxu0 0.0
    %2498 = vmatpush1.msra.mxu0 0.0
    %2499 = vmatprep.subr.mxu0 0.0
    %2500 = vmatpush1.msra.mxu0 0.0
    %2501 = vmatprep.subr.mxu0 0.0
    %2502 = vmatpush1.msra.mxu0 0.0
    %2503 = vmatprep.subr.mxu0 0.0
    %2504 = vmatpush1.msra.mxu0 0.0
    %2505 = vmatprep.subr.mxu0 0.0
    %2506 = vmatpush1.msra.mxu0 0.0
    %2507 = vmatprep.subr.mxu0 0.0
    %2508 = vmatpush1.msra.mxu0 0.0
    %2509 = vmatprep.subr.mxu0 0.0
    %2510 = vmatpush1.msra.mxu0 0.0
    %2511 = vmatprep.subr.mxu0 0.0
    %2512 = vmatpush1.msra.mxu0 0.0
    %2513 = vmatprep.subr.mxu0 0.0
    %2514 = vmatpush1.msra.mxu0 0.0
    %2515 = vmatprep.subr.mxu0 0.0
    %2516 = vmatpush1.msra.mxu0 0.0
    %2517 = vmatprep.subr.mxu0 0.0
    %2518 = vmatpush1.msra.mxu0 0.0
    %2519 = vmatprep.subr.mxu0 0.0
    %2520 = vmatpush1.msra.mxu0 0.0
    %2521 = vmatprep.subr.mxu0 0.0
    %2522 = vmatpush1.msra.mxu0 0.0
    %2523 = vmatprep.subr.mxu0 0.0
    %2524 = vmatpush1.msra.mxu0 0.0
    %2525 = vmatprep.subr.mxu0 0.0
    %2526 = vmatpush1.msra.mxu0 0.0
    %2527 = vmatprep.subr.mxu0 0.0
    %2528 = vmatpush1.msra.mxu0 %v2493
    %2529 = vmatprep.subr.mxu0 0.0
    %2530 = vmatpush2.msra.mxu0 0.0
    %2531 = vmatprep.subr.mxu0 0.0
    %2532 = vmatpush2.msra.mxu0 0.0
    %2533 = vmatprep.subr.mxu0 0.0
    %2534 = vmatpush2.msra.mxu0 0.0
    %2535 = vmatprep.subr.mxu0 0.0
    %2536 = vmatpush2.msra.mxu0 0.0
    %2537 = vmatprep.subr.mxu0 0.0
    %2538 = vmatpush2.msra.mxu0 0.0
    %2539 = vmatprep.subr.mxu0 0.0
    %2540 = vmatpush2.msra.mxu0 0.0
    %2541 = vmatprep.subr.mxu0 0.0
    %2542 = vmatpush2.msra.mxu0 0.0
    %2543 = vmatprep.subr.mxu0 0.0
    %2544 = vmatpush2.msra.mxu0 0.0
    %2545 = vmatprep.subr.mxu0 0.0
    %2546 = vmatpush2.msra.mxu0 0.0
    %2547 = vmatprep.subr.mxu0 0.0
    %2548 = vmatpush2.msra.mxu0 0.0
    %2549 = vmatprep.subr.mxu0 0.0
    %2550 = vmatpush2.msra.mxu0 0.0
    %2551 = vmatprep.subr.mxu0 0.0
    %2552 = vmatpush2.msra.mxu0 0.0
    %2553 = vmatprep.subr.mxu0 0.0
    %2554 = vmatpush2.msra.mxu0 0.0
    %2555 = vmatprep.subr.mxu0 0.0
    %2556 = vmatpush2.msra.mxu0 0.0
    %2557 = vmatprep.subr.mxu0 0.0
    %2558 = vmatpush2.msra.mxu0 0.0
    %2559 = vmatprep.subr.mxu0 0.0
    %2560 = vmatpush2.msra.mxu0 0.0
    %2561 = vmatprep.mubr.f32.mxu0 0.0
    %2562 = vmatmul.mubr.f32.gmra.mxu0 %v2495
    %v2563 = vpop.f32.mrf.mxu0
    %v2564 = vadd.f32 0.0, %v2563
    %v2565 = vpop.f32.mrf.mxu0
    %2566 = vdwg.mxu0
    %v2567 = vadd.f32 %v2073, %v2564
    %v2568 = vld [vmem:[%s15] sm:$0x1]
    %v2570 = vlaneseq
    %v2571 = vshrl.u32 %v2570, 7
    %v2572 = vsub.s32 0, %v2571
    %v2573 = vrot.slane %v2568, %v2572
    %v2575 = vadd.f32 %v2567, %v2573
    %v2576 = vmax.f32 %v2575, 0.0
    %v2577 = vmul.f32 %v2576, %v2576
    %vm2578 = vcmask 523264
    %v2579 = vsel %vm2578, %v2577, 0.0
    %2580 = vadd.xlane.f32.xlu0 %v2579
    %v2581 = vpop.xlane.xlu0 %2580
    %v2582 = vadd.f32 %v2581, 1e-12
    %v2583 = vrsqrt.pop %v2582
    %v2584 = vmul.f32 %v2576, %v2583
    %2585 = vst.msk [vmem:[#allocation4] sm:$0xff] %vm2578, %v2584
    // Predicated region
    $region66: #{tpu_custom_call.1} parent=1 // pred_check
      _
    $region67: #{tpu_custom_call.1} parent=1 // pred_check_branch
      %2587 = sbr.rel (0) target = $region69
    $region68: #{tpu_custom_call.1} parent=1 // pred_region
      %s2589 = ssub.s32 128, 128
      %2590 = vsyncadd [#allocation5], %s2589
      %s2592 = sshll.u32 [#allocation4], 4
      %s2593 = int_to_ptr.vmem [resolvable:$true] %s2592
      %2595 = dma.vmem_to_hbm [thread:$0]  %s2593, 128, %s16, [#allocation5]
    $region69: #{tpu_custom_call.1} parent=1 // pred_fallthru
      _
    // Predicated region
    $region70: #{tpu_custom_call.1} parent=1 // pred_check
      _
    $region71: #{tpu_custom_call.1} parent=1 // pred_check_branch
      %2597 = sbr.rel (0) target = $region73
    $region72: #{tpu_custom_call.1} parent=1 // pred_region
      %2598 = dma.done [#allocation5], 128
    $region73: #{tpu_custom_call.1} parent=1 // pred_fallthru
      _
    %2599 = vsyncpa [#allocation5], 1

</llo_original>
